<compile_context>
chip_gen: v7x
topology: tpu7x:2x2x1
jax: 0.10.0
libtpu: 0.0.40
codegen_flags: <defaults>
</compile_context>

<pallas_src>
import math

import numpy as np
import jax
import jax.numpy as jnp
from jax import lax
from jax.experimental import pallas as pl
from jax.experimental.pallas import tpu as pltpu

# -----------------------------------------------------------------------------
# Static geometry / physics constants (from the module spec).
# -----------------------------------------------------------------------------
H, W = 32, 64                    # latents_size
NLEV = 13                        # pressure levels (variable_dim)
RADIUS = 6371.0 * 1000.0
NUM_LAT = H + 2

# Physics constants.
OMEGA = 7.29e-5
L_V = 2500000.0
R_GAS = 8.314
C_P = 1005.0
R_V = 461.5
R_D = 287.0
DIFF_RATIO = 0.05
BLOCK_DT = 300.0                 # inverse_time=False
K_H = 15.0
K_V = 0.1
SIGMA = 5.67e-8
EMISSIVITY = 0.7
PRECIP_THRESHOLD = 0.8

# TODO(synk): the provided spec references `c_lats` / `latitudes` before defining them and
# leaves M_z all-zero; they are reconstructed here (latitude grid from lat(), latitude-circle
# circumference, and a lower-triangular pressure-thickness integration matrix).
_j = np.arange(1, H + 1, dtype=np.float64)
LAT_DEG = 90.0 - _j * 180.0 / float(NUM_LAT - 1)                     # lat(j, num_lat)
LAT_RAD = LAT_DEG * math.pi / 180.0
LATITUDES = jnp.asarray(LAT_RAD.astype(np.float32))                  # (H,) radians
PIXEL_X = (2.0 * math.pi * RADIUS * np.cos(LAT_RAD) / float(W)).astype(np.float32)   # (H,) m
PIXEL_Y = float(math.pi * RADIUS / float(H + 1))                     # scalar, m
PIXEL_Z_NP = np.array([50, 50, 50, 50, 50, 75, 100, 100, 100, 125, 112, 75, 75], np.float32)
PRESSURE_NP = np.array([50, 100, 150, 200, 250, 300, 400, 500, 600, 700, 850, 925, 1000],
                       np.float32)

PIXEL_Z = jnp.asarray(PIXEL_Z_NP.reshape(1, NLEV, 1, 1))
PRESSURE = jnp.asarray(PRESSURE_NP.reshape(1, NLEV, 1, 1))
PIXEL_Z3 = jnp.asarray(PIXEL_Z_NP.reshape(NLEV, 1, 1))
PRESSURE3 = jnp.asarray(PRESSURE_NP.reshape(NLEV, 1, 1))

# Small constant tiles consumed by the Pallas kernels (scales folded at trace time).
INV_PX12 = jnp.asarray(np.tile((1.0 / (12.0 * PIXEL_X))[:, None], (1, W)).astype(np.float32))
INV_PY12 = float(1.0 / (12.0 * PIXEL_Y))
INV_PZ12 = jnp.asarray((1.0 / (12.0 * PIXEL_Z_NP)).reshape(NLEV, 1, 1).astype(np.float32))
F_COR = jnp.asarray(np.tile((2.0 * OMEGA * np.sin(LAT_RAD))[:, None], (1, W)).astype(np.float32))

RK_C = jnp.array([0.0, 0.5, 0.5, 1.0], jnp.float32)   # RK4 input offsets
RK_W = jnp.array([1.0, 2.0, 2.0, 1.0], jnp.float32)   # RK4 tendency weights


# -----------------------------------------------------------------------------
# Shared pointwise helper (usable both inside Pallas kernels and in host JAX).
# -----------------------------------------------------------------------------
def avoid_inf(x, threshold=1.0):
    x = jnp.where(jnp.abs(x) == 0.0, jnp.full_like(x, 0.1), x)
    x = jnp.where(jnp.abs(x) < threshold, jnp.sign(x) * threshold, x)
    return x


# -----------------------------------------------------------------------------
# In-kernel stencil helpers.  All operate on one (NLEV, H, W) field held in VMEM.
#   x-axis (lanes, W=64)      : circular 5-point stencil
#   y-axis (sublanes, H=32)   : replicate-2 edge padding -> 4 masked boundary rows
#   z-axis (levels, NLEV=13)  : replicate-2 edge padding -> 4 explicitly sliced levels
# -----------------------------------------------------------------------------
def _h_masks():
    row = lax.broadcasted_iota(jnp.int32, (NLEV, H, W), 1)
    return (row == 0, row == 1, row == H - 2, row == H - 1)


def _sx(f):
    # circular numerator: f[i-2] - 8 f[i-1] + 8 f[i+1] - f[i+2]
    return (jnp.roll(f, 2, axis=2) - 8.0 * jnp.roll(f, 1, axis=2)
            + 8.0 * jnp.roll(f, -1, axis=2) - jnp.roll(f, -2, axis=2))


def _sy(f, masks):
    # edge-replicated numerator: -f[i-2] + 8 f[i-1] - 8 f[i+1] + f[i+2]
    m2 = jnp.roll(f, 2, axis=1)
    m1 = jnp.roll(f, 1, axis=1)
    p1 = jnp.roll(f, -1, axis=1)
    p2 = jnp.roll(f, -2, axis=1)
    num = -m2 + 8.0 * m1 - 8.0 * p1 + p2
    is0, is1, isn2, isn1 = masks
    num = jnp.where(is0, p2 - f, num)
    num = jnp.where(is1, -f + 8.0 * m1 - 8.0 * p1 + p2, num)
    num = jnp.where(isn2, -m2 + 8.0 * m1 - 8.0 * p1 + f, num)
    num = jnp.where(isn1, f - m2, num)
    return num


def _sz(f):
    # edge-replicated numerator along the level axis; boundary levels patched explicitly
    # (levels are separate vreg blocks, so this is cheap and needs no masks).
    m2 = jnp.roll(f, 2, axis=0)
    m1 = jnp.roll(f, 1, axis=0)
    p1 = jnp.roll(f, -1, axis=0)
    p2 = jnp.roll(f, -2, axis=0)
    num = -m2 + 8.0 * m1 - 8.0 * p1 + p2
    top0 = f[2:3] - f[0:1]
    top1 = -f[1:2] + 8.0 * f[0:1] - 8.0 * f[2:3] + f[3:4]
    bot0 = (-f[NLEV - 4:NLEV - 3] + 8.0 * f[NLEV - 3:NLEV - 2]
            - 8.0 * f[NLEV - 1:NLEV] + f[NLEV - 2:NLEV - 1])
    bot1 = f[NLEV - 1:NLEV] - f[NLEV - 3:NLEV - 2]
    return jnp.concatenate([top0, top1, num[2:NLEV - 2], bot0, bot1], axis=0)


def _cumint_z(f, pz):
    # integral_z: out[k] = sum_{l<=k} pixel_z[l] * f[l]  (exact f32 VPU prefix sum,
    # replaces the (13,13)@(13,HW) MXU matmul).
    g = f * pz
    parts = [g[0:1]]
    for k in range(1, NLEV):
        parts.append(parts[-1] + g[k:k + 1])
    return jnp.concatenate(parts, axis=0)


def _mixing(fx, fy, fz, inv_px, masks, inv_pz):
    # k_h*(f_xx + f_yy) + k_v*f_zz, reusing the already-computed first derivatives.
    fxx = _sx(fx) * inv_px
    fyy = _sy(fy, masks) * INV_PY12
    fzz = _sz(fz) * inv_pz
    return K_H * (fxx + fyy) + K_V * fzz


# -----------------------------------------------------------------------------
# Pallas kernels (one grid step == one batch element, full (13,32,64) blocks).
# -----------------------------------------------------------------------------
def _w_kernel(u_ref, v_ref, invpx_ref, pz_ref, ux_ref, vy_ref, w_ref):
    """get_w: u_x = d_x(u), v_y = d_y(v), w = integral_z(-u_x - v_y)."""
    masks = _h_masks()
    u = u_ref[0]
    v = v_ref[0]
    u_x = _sx(u) * invpx_ref[...]
    v_y = _sy(v, masks) * INV_PY12
    ux_ref[0] = u_x
    vy_ref[0] = v_y
    w_ref[0] = _cumint_z(-(u_x + v_y), pz_ref[...])


def _zdxyz_kernel(z_ref, invpx_ref, invpz_ref, zx_ref, zy_ref, zz_ref):
    """share_z_dxyz: one input DMA, three derivative outputs."""
    masks = _h_masks()
    z = z_ref[0]
    zx_ref[0] = _sx(z) * invpx_ref[...]
    zy_ref[0] = _sy(z, masks) * INV_PY12
    zz_ref[0] = _sz(z) * invpz_ref[...]


def _uv_stage_kernel(u_ref, v_ref, w_ref, ux_ref, vy_ref, zx_ref, zy_ref,
                     invpx_ref, invpz_ref, fcor_ref, ut_ref, vt_ref):
    """get_uv_dt: stencils + mixing + Coriolis + pressure-gradient, fused for u and v."""
    masks = _h_masks()
    inv_px = invpx_ref[...]
    inv_pz = invpz_ref[...]
    fcor = fcor_ref[...]
    u = u_ref[0]
    v = v_ref[0]
    w = w_ref[0]

    u_x = _sx(u) * inv_px                    # fresh (only feeds mixing); advection uses stale u_x
    u_y = _sy(u, masks) * INV_PY12
    u_z = _sz(u) * inv_pz
    v_x = _sx(v) * inv_px
    v_y_f = _sy(v, masks) * INV_PY12         # fresh (only feeds mixing); advection uses stale v_y
    v_z = _sz(v) * inv_pz
    u_mix = _mixing(u_x, u_y, u_z, inv_px, masks, inv_pz)
    v_mix = _mixing(v_x, v_y_f, v_z, inv_px, masks, inv_pz)

    ut_ref[0] = -u * ux_ref[0] - v * u_y - w * u_z + fcor * v - zx_ref[0] + u_mix
    vt_ref[0] = -u * v_x - v * vy_ref[0] - w * v_z - fcor * u - zy_ref[0] + v_mix


def _t_stage_kernel(u_ref, v_ref, w_ref, t_ref, q_ref, zz_ref, qs_ref,
                    invpx_ref, invpz_ref, press_ref, pz_ref, tt_ref, zt_ref):
    """get_t_t (q_s given) fused with get_z_t (z_t = integral_z(-R/p * t_t))."""
    masks = _h_masks()
    inv_px = invpx_ref[...]
    inv_pz = invpz_ref[...]
    press = press_ref[...]
    u = u_ref[0]
    v = v_ref[0]
    w = w_ref[0]
    t = t_ref[0]
    q = q_ref[0]
    z_z = zz_ref[0]
    q_s = qs_ref[0]

    t_x = _sx(t) * inv_px
    t_y = _sy(t, masks) * INV_PY12
    t_z = _sz(t) * inv_pz
    t_mix = _mixing(t_x, t_y, t_z, inv_px, masks, inv_pz)

    Q = -L_V * z_z * w
    t_abs = t + 273.15
    cooling_rate = EMISSIVITY * SIGMA * t_abs ** 4
    radiative = -cooling_rate / (C_P * press * 100.0 / (R_D * t_abs))
    rel_h = q / avoid_inf(q_s)
    precip_mask = (rel_h > PRECIP_THRESHOLD).astype(q.dtype)
    precip_rate = precip_mask * (q - PRECIP_THRESHOLD * q_s) / BLOCK_DT
    latent_heating = precip_rate * L_V / C_P

    t_t = ((Q - z_z * w) / C_P - u * t_x - v * t_y - w * t_z
           + t_mix + radiative + latent_heating)
    tt_ref[0] = t_t
    zt_ref[0] = _cumint_z(-R_GAS / press * t_t, pz_ref[...])


def _q_stage_kernel(u_ref, v_ref, t_ref, w_ref, q_ref, zx_ref, zy_ref, zz_ref, zt_ref, qs_ref,
                    invpx_ref, invpz_ref, qt_ref):
    """get_q_dt (q_s given): stencils + mixing + moisture source/sink terms, fused."""
    masks = _h_masks()
    inv_px = invpx_ref[...]
    inv_pz = invpz_ref[...]
    u = u_ref[0]
    v = v_ref[0]
    t = t_ref[0]
    w = w_ref[0]
    q = q_ref[0]
    z_x = zx_ref[0]
    z_y = zy_ref[0]
    z_z = zz_ref[0]
    z_t = zt_ref[0]
    q_s = qs_ref[0]

    q_x = _sx(q) * inv_px
    q_y = _sy(q, masks) * INV_PY12
    q_z = _sz(q) * inv_pz
    q_mix = _mixing(q_x, q_y, q_z, inv_px, masks, inv_pz)

    adv_z = z_t + u * z_x + v * z_y + w * z_z
    delta = jnp.where(jnp.logical_and(adv_z < 0.0, q >= q_s),
                      jnp.ones_like(adv_z), jnp.zeros_like(adv_z))
    R_m = (1.0 + 0.608 * q) * R_D
    F_ = (L_V * R_m - C_P * R_V * t) / avoid_inf(C_P * R_V * t * t + L_V * L_V * q_s)
    F_ = F_ * q_s * t
    rel_h = q / avoid_inf(q_s)
    precip_mask = (rel_h > PRECIP_THRESHOLD).astype(q.dtype)
    precip_rate = precip_mask * (q - PRECIP_THRESHOLD * q_s) / BLOCK_DT

    qt_ref[0] = (-(u * q_x + v * q_y + w * q_z)
                 + adv_z * delta * F_ / avoid_inf(R_GAS * t)
                 + q_mix - precip_rate)


# -----------------------------------------------------------------------------
# Pallas wrappers (grid over batch, "parallel" so v7x's two TensorCores both get work;
# on single-TC chips the grid is just a cheap sequential loop).
# -----------------------------------------------------------------------------
_PARALLEL_B = pltpu.CompilerParams(dimension_semantics=("parallel",))


def _fs():
    return pl.BlockSpec((1, NLEV, H, W), lambda i: (i, 0, 0, 0))


def _hw_spec():
    return pl.BlockSpec((H, W), lambda i: (0, 0))


def _lev_spec():
    return pl.BlockSpec((NLEV, 1, 1), lambda i: (0, 0, 0))


def _field_out(B):
    return jax.ShapeDtypeStruct((B, NLEV, H, W), jnp.float32)


def get_w(u, v):
    B = u.shape[0]
    out = _field_out(B)
    return pl.pallas_call(
        _w_kernel,
        out_shape=(out, out, out),
        grid=(B,),
        in_specs=[_fs(), _fs(), _hw_spec(), _lev_spec()],
        out_specs=(_fs(), _fs(), _fs()),
        compiler_params=_PARALLEL_B,
    )(u, v, INV_PX12, PIXEL_Z3)


def z_dxyz(z):
    B = z.shape[0]
    out = _field_out(B)
    return pl.pallas_call(
        _zdxyz_kernel,
        out_shape=(out, out, out),
        grid=(B,),
        in_specs=[_fs(), _hw_spec(), _lev_spec()],
        out_specs=(_fs(), _fs(), _fs()),
        compiler_params=_PARALLEL_B,
    )(z, INV_PX12, INV_PZ12)


def uv_stage(u, v, w, u_x, v_y, z_x, z_y):
    B = u.shape[0]
    out = _field_out(B)
    return pl.pallas_call(
        _uv_stage_kernel,
        out_shape=(out, out),
        grid=(B,),
        in_specs=[_fs()] * 7 + [_hw_spec(), _lev_spec(), _hw_spec()],
        out_specs=(_fs(), _fs()),
        compiler_params=_PARALLEL_B,
    )(u, v, w, u_x, v_y, z_x, z_y, INV_PX12, INV_PZ12, F_COR)


def t_stage(u, v, w, t, q, z_z, q_s):
    B = u.shape[0]
    out = _field_out(B)
    return pl.pallas_call(
        _t_stage_kernel,
        out_shape=(out, out),
        grid=(B,),
        in_specs=[_fs()] * 7 + [_hw_spec(), _lev_spec(), _lev_spec(), _lev_spec()],
        out_specs=(_fs(), _fs()),
        compiler_params=_PARALLEL_B,
    )(u, v, w, t, q, z_z, q_s, INV_PX12, INV_PZ12, PRESSURE3, PIXEL_Z3)


def q_stage(u, v, t, w, q, z_x, z_y, z_z, z_t, q_s):
    B = u.shape[0]
    return pl.pallas_call(
        _q_stage_kernel,
        out_shape=_field_out(B),
        grid=(B,),
        in_specs=[_fs()] * 10 + [_hw_spec(), _lev_spec()],
        out_specs=_fs(),
        compiler_params=_PARALLEL_B,
    )(u, v, t, w, q, z_x, z_y, z_z, z_t, q_s, INV_PX12, INV_PZ12)


# -----------------------------------------------------------------------------
# Host-side physics that needs whole-batch reductions, plus conv/batchnorm (XLA).
# TODO(synk): 3x3 convs (variable_norm/variable_innorm) and BatchNorm2d stay on XLA's
# native conv/reduction path instead of being re-implemented in Pallas.
# -----------------------------------------------------------------------------
def scale_tensor(t, a, b):
    mn = jnp.min(t)
    mx = jnp.max(t)
    denom = mx - mn
    # Guard only the degenerate constant-field case (reference would produce NaN/Inf).
    denom = jnp.where(denom == 0.0, jnp.ones_like(denom), denom)
    s = (t - mn) / denom
    return s * (b - a) + a


def scale_diff(diff_x, x):
    x_min, x_mean, x_max = jnp.min(x), jnp.mean(x), jnp.max(x)
    return scale_tensor(diff_x, (x_min - x_mean) * DIFF_RATIO, (x_max - x_mean) * DIFF_RATIO)


def coriolis():
    return 2.0 * OMEGA * jnp.sin(LATITUDES).reshape(1, 1, H, 1)


def calculate_radiative_cooling(t):
    t_abs = t + 273.15
    cooling_rate = EMISSIVITY * SIGMA * t_abs ** 4
    return -cooling_rate / (C_P * PRESSURE * 100.0 / (R_D * t_abs))


def calculate_convective_precipitation(q, q_s):
    rel_humidity = q / avoid_inf(q_s)
    precip_mask = (rel_humidity > PRECIP_THRESHOLD).astype(q.dtype)
    precip_rate = precip_mask * (q - PRECIP_THRESHOLD * q_s) / BLOCK_DT
    latent_heating = precip_rate * L_V / C_P
    return precip_rate, latent_heating


def saturation_q(z_z, t):
    # Needs global min/max (scale_tensor) over the whole batch -> stays in XLA.
    rho = -1.0 / avoid_inf(z_z)
    p = rho * R_GAS * t
    t_c = t - 273.15
    e_s = 6.112 * jnp.exp(scale_tensor(17.67 * t_c / avoid_inf(t_c + 243.5), -3.47, 3.01)) * 100.0
    q_s = 0.622 * e_s / avoid_inf(p - 0.378 * e_s)
    return jnp.maximum(q_s, jnp.full_like(q_s, 1e-6))


def batch_norm_2d(x, eps=1e-5):
    # Training-mode BatchNorm2d with default affine init (gamma=1, beta=0).
    mean = jnp.mean(x, axis=(0, 2, 3), keepdims=True)
    var = jnp.var(x, axis=(0, 2, 3), keepdims=True)
    return (x - mean) * lax.rsqrt(var + eps)


def conv3x3(x, w, b):
    y = lax.conv_general_dilated(x, w, window_strides=(1, 1), padding="SAME",
                                 dimension_numbers=("NCHW", "OIHW", "NCHW"))
    return y + b.reshape(1, -1, 1, 1)


# -----------------------------------------------------------------------------
# RK4 evolutions: lax.scan over (c_i, w_i) so each fused stage kernel is traced once.
# -----------------------------------------------------------------------------
def uv_evolution(st, u, v, w):
    dt = BLOCK_DT
    u_x, v_y, z_x, z_y = st["u_x"], st["v_y"], st["z_x"], st["z_y"]

    def body(carry, cw):
        ku_p, kv_p, acc_u, acc_v = carry
        c, wt = cw
        ku, kv = uv_stage(u + (c * dt) * ku_p, v + (c * dt) * kv_p, w, u_x, v_y, z_x, z_y)
        return (ku, kv, acc_u + wt * ku, acc_v + wt * kv), None

    zeros = jnp.zeros_like(u)
    (_, _, acc_u, acc_v), _ = lax.scan(body, (zeros, zeros, zeros, zeros), (RK_C, RK_W))
    u_new = u + scale_diff((acc_u / 6.0) * dt, u)
    v_new = v + scale_diff((acc_v / 6.0) * dt, v)
    return u_new, v_new


def t_evolution(st, u, v, w, t, q):
    dt = BLOCK_DT
    q_s = st["q_s_old"]          # same value the reference recomputes from t_old
    z_z = st["z_z"]

    def body(carry, cw):
        k_p, acc = carry
        c, wt = cw
        k, _ = t_stage(u, v, w, t + (c * dt) * k_p, q, z_z, q_s)   # z_t output unused here
        return (k, acc + wt * k), None

    zeros = jnp.zeros_like(t)
    (_, acc), _ = lax.scan(body, (zeros, zeros), (RK_C, RK_W))
    return t + scale_diff((acc / 6.0) * dt, t)


def q_evolution(st, u, v, t, w, q):
    dt = BLOCK_DT
    q_s = st["q_s_old"]          # identical across stages in the reference (t fixed)
    z_x, z_y, z_z, z_t = st["z_x"], st["z_y"], st["z_z"], st["z_t"]

    def body(carry, cw):
        k_p, acc = carry
        c, wt = cw
        k = q_stage(u, v, t, w, q + (c * dt) * k_p, z_x, z_y, z_z, z_t, q_s)
        return (k, acc + wt * k), None

    zeros = jnp.zeros_like(q)
    (_, acc), _ = lax.scan(body, (zeros, zeros), (RK_C, RK_W))
    q_new = q + scale_diff((acc / 6.0) * dt, q)
    q_new = jnp.maximum(q_new, jnp.zeros_like(q_new))
    q_new = jnp.minimum(q_new, 1.1 * q_s)
    return q_new


def z_evolution(st, z, u, v, w, t, q):
    dt = BLOCK_DT
    k1_z = st["z_t"]
    # The reference recomputes get_t_t / get_z_t three times with identical (unchanged)
    # arguments; they are pure functions, so k2_z == k3_z == k4_z -- computed once here.
    q_s_new = saturation_q(st["z_z"], t)
    _, k2_z = t_stage(u, v, w, t, q, st["z_z"], q_s_new)
    z_tendency = (k1_z + 2.0 * k2_z + 2.0 * k2_z + k2_z) / 6.0
    return z + scale_diff(z_tendency * dt, z)


@jax.jit
def pde_forward(params, x, zquvtw):
    """Forward pass of PDE_kernel (physics_part_coef given as a scalar)."""
    skip = x
    coef = params["physics_part_coef"]
    zquvtw_old = (1.0 - coef) * conv3x3(x, params["w_norm"], params["b_norm"]) + coef * zquvtw
    z_old, t_old, q_old, u_old, v_old = jnp.split(zquvtw_old, 5, axis=1)

    st = {}
    # get_w: vertical velocity from continuity; caches u_x, v_y (reused stale in get_uv_dt).
    st["u_x"], st["v_y"], w_old = get_w(u_old, v_old)
    # share_z_dxyz
    st["z_x"], st["z_y"], st["z_z"] = z_dxyz(z_old)
    # q_s(t_old): identical value reused by the initial t_t, t_evolution and q_evolution.
    st["q_s_old"] = saturation_q(st["z_z"], t_old)

    # initial t_t and z_t (fused in one launch)
    st["t_t"], st["z_t"] = t_stage(u_old, v_old, w_old, t_old, q_old, st["z_z"], st["q_s_old"])

    u_new, v_new = uv_evolution(st, u_old, v_old, w_old)
    t_new = t_evolution(st, u_old, v_old, w_old, t_old, q_old)
    q_new = q_evolution(st, u_old, v_old, t_old, w_old, q_old)
    z_new = z_evolution(st, z_old, u_old, v_old, w_old, t_new, q_new)

    z_new = batch_norm_2d(z_new)
    q_new = batch_norm_2d(q_new)
    u_new = batch_norm_2d(u_new)
    v_new = batch_norm_2d(v_new)
    t_new = batch_norm_2d(t_new)
    zquvtw_new = jnp.concatenate([z_new, t_new, q_new, u_new, v_new], axis=1)

    x_out = conv3x3(zquvtw_new, params["w_innorm"], params["b_innorm"]) + skip
    x_out = batch_norm_2d(x_out)
    return x_out, zquvtw_new


# -----------------------------------------------------------------------------
# Pure-JAX references (pad-by-concat exactly like the PyTorch code) for self-checks.
# -----------------------------------------------------------------------------
def _ref_d_x(f):
    fp = jnp.concatenate([f[:, :, :, -2:], f, f[:, :, :, :2]], axis=3)
    out = (fp[:, :, :, 0:W] - 8.0 * fp[:, :, :, 1:W + 1]
           + 8.0 * fp[:, :, :, 3:W + 3] - fp[:, :, :, 4:W + 4]) / 12.0
    return out / jnp.asarray(PIXEL_X).reshape(1, 1, H, 1)


def _ref_d_y(f):
    fp = jnp.concatenate([f[:, :, :2], f, f[:, :, -2:]], axis=2)
    out = (-fp[:, :, 0:H] + 8.0 * fp[:, :, 1:H + 1]
           - 8.0 * fp[:, :, 3:H + 3] + fp[:, :, 4:H + 4]) / 12.0
    return out / PIXEL_Y


def _ref_d_z(f):
    fp = jnp.concatenate([f[:, :2], f, f[:, -2:]], axis=1)
    out = (-fp[:, 0:NLEV] + 8.0 * fp[:, 1:NLEV + 1]
           - 8.0 * fp[:, 3:NLEV + 3] + fp[:, 4:NLEV + 4]) / 12.0
    return out / PIXEL_Z


def _ref_integral_z(f):
    return jnp.cumsum(f * PIXEL_Z, axis=1)


def _ref_mixing(f):
    return (K_H * (_ref_d_x(_ref_d_x(f)) + _ref_d_y(_ref_d_y(f)))
            + K_V * _ref_d_z(_ref_d_z(f)))


def _ref_uv_stage(u, v, w, u_x_stale, v_y_stale, z_x, z_y):
    fcor = coriolis()
    u_y, u_z = _ref_d_y(u), _ref_d_z(u)
    v_x, v_z = _ref_d_x(v), _ref_d_z(v)
    u_t = -u * u_x_stale - v * u_y - w * u_z + fcor * v - z_x + _ref_mixing(u)
    v_t = -u * v_x - v * v_y_stale - w * v_z - fcor * u - z_y + _ref_mixing(v)
    return u_t, v_t


def _ref_t_stage(u, v, w, t, q, z_z, q_s):
    t_x, t_y, t_z = _ref_d_x(t), _ref_d_y(t), _ref_d_z(t)
    Q = -L_V * z_z * w
    _, latent = calculate_convective_precipitation(q, q_s)
    t_t = ((Q - z_z * w) / C_P - u * t_x - v * t_y - w * t_z
           + _ref_mixing(t) + calculate_radiative_cooling(t) + latent)
    z_t = _ref_integral_z(-R_GAS / PRESSURE * t_t)
    return t_t, z_t


def _ref_q_stage(u, v, t, w, q, z_x, z_y, z_z, z_t, q_s):
    q_x, q_y, q_z = _ref_d_x(q), _ref_d_y(q), _ref_d_z(q)
    adv_z = z_t + u * z_x + v * z_y + w * z_z
    delta = jnp.where(jnp.logical_and(adv_z < 0.0, q >= q_s), 1.0, 0.0)
    R_m = (1.0 + 0.608 * q) * R_D
    F_ = (L_V * R_m - C_P * R_V * t) / avoid_inf(C_P * R_V * t * t + L_V * L_V * q_s)
    F_ = F_ * q_s * t
    precip_rate, _ = calculate_convective_precipitation(q, q_s)
    return (-(u * q_x + v * q_y + w * q_z)
            + adv_z * delta * F_ / avoid_inf(R_GAS * t)
            + _ref_mixing(q) - precip_rate)


def _assert_close(name, got, ref, rtol=2e-3):
    err = float(jnp.max(jnp.abs(got - ref)))
    scale = float(jnp.max(jnp.abs(ref))) + 1e-30
    assert err <= rtol * scale + 1e-12, f"{name} mismatch: err={err}, scale={scale}"


if __name__ == "__main__":
    in_dim = 32
    B = 2
    key = jax.random.PRNGKey(0)
    k_wn, k_wi, k_x, k_zq, k_f = jax.random.split(key, 5)

    params = {
        "w_norm":   0.05 * jax.random.normal(k_wn, (5 * NLEV, in_dim, 3, 3), jnp.float32),
        "b_norm":   jnp.zeros((5 * NLEV,), jnp.float32),
        "w_innorm": 0.05 * jax.random.normal(k_wi, (in_dim, 5 * NLEV, 3, 3), jnp.float32),
        "b_innorm": jnp.zeros((in_dim,), jnp.float32),
        "physics_part_coef": jnp.float32(0.5),
    }
    x = 0.1 * jax.random.normal(k_x, (B, in_dim, H, W), jnp.float32)
    zquvtw = 0.1 * jax.random.normal(k_zq, (B, 5 * NLEV, H, W), jnp.float32)

    # --- self-check the fused Pallas stages against the pad-by-concat references ---
    kf1, kf2, kf3, kf4, kf5 = jax.random.split(k_f, 5)
    u = 0.1 * jax.random.normal(kf1, (B, NLEV, H, W), jnp.float32)
    v = 0.1 * jax.random.normal(kf2, (B, NLEV, H, W), jnp.float32)
    t = 0.1 * jax.random.normal(kf3, (B, NLEV, H, W), jnp.float32)
    q = 0.1 * jax.random.normal(kf4, (B, NLEV, H, W), jnp.float32)
    z = 0.1 * jax.random.normal(kf5, (B, NLEV, H, W), jnp.float32)

    u_x, v_y, w = jax.block_until_ready(get_w(u, v))
    _assert_close("u_x", u_x, _ref_d_x(u))
    _assert_close("v_y", v_y, _ref_d_y(v))
    _assert_close("w", w, _ref_integral_z(-(_ref_d_x(u) + _ref_d_y(v))))

    z_x, z_y, z_z = jax.block_until_ready(z_dxyz(z))
    _assert_close("z_x", z_x, _ref_d_x(z))
    _assert_close("z_y", z_y, _ref_d_y(z))
    _assert_close("z_z", z_z, _ref_d_z(z))

    u_t, v_t = jax.block_until_ready(uv_stage(u, v, w, u_x, v_y, z_x, z_y))
    ut_ref, vt_ref = _ref_uv_stage(u, v, w, u_x, v_y, z_x, z_y)
    _assert_close("u_t", u_t, ut_ref)
    _assert_close("v_t", v_t, vt_ref)

    q_s = saturation_q(z_z, t)
    t_t, z_t = jax.block_until_ready(t_stage(u, v, w, t, q, z_z, q_s))
    tt_ref, zt_ref = _ref_t_stage(u, v, w, t, q, z_z, q_s)
    _assert_close("t_t", t_t, tt_ref)
    _assert_close("z_t", z_t, zt_ref)

    q_t = jax.block_until_ready(q_stage(u, v, t, w, q, z_x, z_y, z_z, z_t, q_s))
    _assert_close("q_t", q_t, _ref_q_stage(u, v, t, w, q, z_x, z_y, z_z, z_t, q_s))

    # --- full PDE_kernel forward ---
    x_out, zquvtw_new = jax.block_until_ready(pde_forward(params, x, zquvtw))
    assert x_out.shape == (B, in_dim, H, W), x_out.shape
    assert zquvtw_new.shape == (B, 5 * NLEV, H, W), zquvtw_new.shape
    assert bool(jnp.isfinite(x_out).all()), "non-finite x_out"
    assert bool(jnp.isfinite(zquvtw_new).all()), "non-finite zquvtw_new"

    print("KERNEL_OK")
</pallas_src>

<mosaic_0001>
module attributes {stable_mosaic.version = 11 : i64} {
  func.func @_w_kernel(%arg0: i32, %arg1: memref<1x13x32x64xf32, #tpu.memory_space<vmem>>, %arg2: memref<1x13x32x64xf32, #tpu.memory_space<vmem>>, %arg3: memref<32x64xf32, #tpu.memory_space<vmem>>, %arg4: memref<13x1x1xf32, #tpu.memory_space<vmem>>, %arg5: memref<1x13x32x64xf32, #tpu.memory_space<vmem>>, %arg6: memref<1x13x32x64xf32, #tpu.memory_space<vmem>>, %arg7: memref<1x13x32x64xf32, #tpu.memory_space<vmem>>) attributes {dimension_semantics = [#tpu.dimension_semantics<parallel>], iteration_bounds = array<i64: 2>, scalar_prefetch = 0 : i64, scratch_operands = 0 : i64, tpu.core_type = #tpu.core_type<tc>, window_params = [{transform_indices = @transform_0, window_bounds = array<i64: 1, 13, 32, 64>}, {transform_indices = @transform_1, window_bounds = array<i64: 1, 13, 32, 64>}, {pipeline_mode = #tpu.pipeline_mode<synchronous>, transform_indices = @transform_2, window_bounds = array<i64: 32, 64>}, {pipeline_mode = #tpu.pipeline_mode<synchronous>, transform_indices = @transform_3, window_bounds = array<i64: 13, 1, 1>}, {transform_indices = @transform_4, window_bounds = array<i64: 1, 13, 32, 64>}, {transform_indices = @transform_5, window_bounds = array<i64: 1, 13, 32, 64>}, {transform_indices = @transform_6, window_bounds = array<i64: 1, 13, 32, 64>}]} {
    %0 = tpu.iota {dimensions = array<i32: 1>} : vector<13x32x64xi32>
    %c0_i32 = arith.constant 0 : i32
    %1 = vector.broadcast %c0_i32 : i32 to vector<13x32x64xi32>
    %2 = arith.cmpi eq, %0, %1 : vector<13x32x64xi32>
    %c1_i32 = arith.constant 1 : i32
    %3 = vector.broadcast %c1_i32 : i32 to vector<13x32x64xi32>
    %4 = arith.cmpi eq, %0, %3 : vector<13x32x64xi32>
    %c30_i32 = arith.constant 30 : i32
    %5 = vector.broadcast %c30_i32 : i32 to vector<13x32x64xi32>
    %6 = arith.cmpi eq, %0, %5 : vector<13x32x64xi32>
    %c31_i32 = arith.constant 31 : i32
    %7 = vector.broadcast %c31_i32 : i32 to vector<13x32x64xi32>
    %8 = arith.cmpi eq, %0, %7 : vector<13x32x64xi32>
    %c0 = arith.constant 0 : index
    %c0_0 = arith.constant 0 : index
    %c0_1 = arith.constant 0 : index
    %c0_2 = arith.constant 0 : index
    %9 = vector.load %arg1[%c0, %c0_0, %c0_1, %c0_2] : memref<1x13x32x64xf32, #tpu.memory_space<vmem>>, vector<1x13x32x64xf32>
    %10 = vector.shape_cast %9 : vector<1x13x32x64xf32> to vector<13x32x64xf32>
    %c0_3 = arith.constant 0 : index
    %c0_4 = arith.constant 0 : index
    %c0_5 = arith.constant 0 : index
    %c0_6 = arith.constant 0 : index
    %11 = vector.load %arg2[%c0_3, %c0_4, %c0_5, %c0_6] : memref<1x13x32x64xf32, #tpu.memory_space<vmem>>, vector<1x13x32x64xf32>
    %12 = vector.shape_cast %11 : vector<1x13x32x64xf32> to vector<13x32x64xf32>
    %13 = vector.extract_strided_slice %10 {offsets = [0, 0, 62], sizes = [13, 32, 2], strides = [1, 1, 1]} : vector<13x32x64xf32> to vector<13x32x2xf32>
    %14 = vector.extract_strided_slice %10 {offsets = [0, 0, 0], sizes = [13, 32, 62], strides = [1, 1, 1]} : vector<13x32x64xf32> to vector<13x32x62xf32>
    %15 = tpu.concatenate %13, %14 in 2 : vector<13x32x2xf32>, vector<13x32x62xf32> -> vector<13x32x64xf32>
    %16 = vector.extract_strided_slice %10 {offsets = [0, 0, 63], sizes = [13, 32, 1], strides = [1, 1, 1]} : vector<13x32x64xf32> to vector<13x32x1xf32>
    %17 = vector.extract_strided_slice %10 {offsets = [0, 0, 0], sizes = [13, 32, 63], strides = [1, 1, 1]} : vector<13x32x64xf32> to vector<13x32x63xf32>
    %18 = tpu.concatenate %16, %17 in 2 : vector<13x32x1xf32>, vector<13x32x63xf32> -> vector<13x32x64xf32>
    %cst = arith.constant 8.000000e+00 : f32
    %19 = vector.broadcast %cst : f32 to vector<13x32x64xf32>
    %20 = arith.mulf %19, %18 : vector<13x32x64xf32>
    %21 = arith.subf %15, %20 : vector<13x32x64xf32>
    %22 = vector.extract_strided_slice %10 {offsets = [0, 0, 1], sizes = [13, 32, 63], strides = [1, 1, 1]} : vector<13x32x64xf32> to vector<13x32x63xf32>
    %23 = vector.extract_strided_slice %10 {offsets = [0, 0, 0], sizes = [13, 32, 1], strides = [1, 1, 1]} : vector<13x32x64xf32> to vector<13x32x1xf32>
    %24 = tpu.concatenate %22, %23 in 2 : vector<13x32x63xf32>, vector<13x32x1xf32> -> vector<13x32x64xf32>
    %cst_7 = arith.constant 8.000000e+00 : f32
    %25 = vector.broadcast %cst_7 : f32 to vector<13x32x64xf32>
    %26 = arith.mulf %25, %24 : vector<13x32x64xf32>
    %27 = arith.addf %21, %26 : vector<13x32x64xf32>
    %28 = vector.extract_strided_slice %10 {offsets = [0, 0, 2], sizes = [13, 32, 62], strides = [1, 1, 1]} : vector<13x32x64xf32> to vector<13x32x62xf32>
    %29 = vector.extract_strided_slice %10 {offsets = [0, 0, 0], sizes = [13, 32, 2], strides = [1, 1, 1]} : vector<13x32x64xf32> to vector<13x32x2xf32>
    %30 = tpu.concatenate %28, %29 in 2 : vector<13x32x62xf32>, vector<13x32x2xf32> -> vector<13x32x64xf32>
    %31 = arith.subf %27, %30 : vector<13x32x64xf32>
    %c0_8 = arith.constant 0 : index
    %c0_9 = arith.constant 0 : index
    %32 = vector.load %arg3[%c0_8, %c0_9] : memref<32x64xf32, #tpu.memory_space<vmem>>, vector<32x64xf32>
    %33 = vector.shape_cast %32 : vector<32x64xf32> to vector<1x32x64xf32>
    %34 = vector.broadcast %33 : vector<1x32x64xf32> to vector<13x32x64xf32>
    %35 = arith.mulf %31, %34 : vector<13x32x64xf32>
    %36 = vector.extract_strided_slice %12 {offsets = [0, 30, 0], sizes = [13, 2, 64], strides = [1, 1, 1]} : vector<13x32x64xf32> to vector<13x2x64xf32>
    %37 = vector.extract_strided_slice %12 {offsets = [0, 0, 0], sizes = [13, 30, 64], strides = [1, 1, 1]} : vector<13x32x64xf32> to vector<13x30x64xf32>
    %38 = tpu.concatenate %36, %37 in 1 : vector<13x2x64xf32>, vector<13x30x64xf32> -> vector<13x32x64xf32>
    %39 = vector.extract_strided_slice %12 {offsets = [0, 31, 0], sizes = [13, 1, 64], strides = [1, 1, 1]} : vector<13x32x64xf32> to vector<13x1x64xf32>
    %40 = vector.extract_strided_slice %12 {offsets = [0, 0, 0], sizes = [13, 31, 64], strides = [1, 1, 1]} : vector<13x32x64xf32> to vector<13x31x64xf32>
    %41 = tpu.concatenate %39, %40 in 1 : vector<13x1x64xf32>, vector<13x31x64xf32> -> vector<13x32x64xf32>
    %42 = vector.extract_strided_slice %12 {offsets = [0, 1, 0], sizes = [13, 31, 64], strides = [1, 1, 1]} : vector<13x32x64xf32> to vector<13x31x64xf32>
    %43 = vector.extract_strided_slice %12 {offsets = [0, 0, 0], sizes = [13, 1, 64], strides = [1, 1, 1]} : vector<13x32x64xf32> to vector<13x1x64xf32>
    %44 = tpu.concatenate %42, %43 in 1 : vector<13x31x64xf32>, vector<13x1x64xf32> -> vector<13x32x64xf32>
    %45 = vector.extract_strided_slice %12 {offsets = [0, 2, 0], sizes = [13, 30, 64], strides = [1, 1, 1]} : vector<13x32x64xf32> to vector<13x30x64xf32>
    %46 = vector.extract_strided_slice %12 {offsets = [0, 0, 0], sizes = [13, 2, 64], strides = [1, 1, 1]} : vector<13x32x64xf32> to vector<13x2x64xf32>
    %47 = tpu.concatenate %45, %46 in 1 : vector<13x30x64xf32>, vector<13x2x64xf32> -> vector<13x32x64xf32>
    %cst_10 = arith.constant 0.000000e+00 : f32
    %48 = vector.broadcast %cst_10 : f32 to vector<13x32x64xf32>
    %49 = arith.subf %48, %38 : vector<13x32x64xf32>
    %cst_11 = arith.constant 8.000000e+00 : f32
    %50 = vector.broadcast %cst_11 : f32 to vector<13x32x64xf32>
    %51 = arith.mulf %50, %41 : vector<13x32x64xf32>
    %52 = arith.addf %49, %51 : vector<13x32x64xf32>
    %cst_12 = arith.constant 8.000000e+00 : f32
    %53 = vector.broadcast %cst_12 : f32 to vector<13x32x64xf32>
    %54 = arith.mulf %53, %44 : vector<13x32x64xf32>
    %55 = arith.subf %52, %54 : vector<13x32x64xf32>
    %56 = arith.addf %55, %47 : vector<13x32x64xf32>
    %57 = arith.subf %47, %12 : vector<13x32x64xf32>
    %58 = arith.select %2, %57, %56 : vector<13x32x64xi1>, vector<13x32x64xf32>
    %cst_13 = arith.constant 0.000000e+00 : f32
    %59 = vector.broadcast %cst_13 : f32 to vector<13x32x64xf32>
    %60 = arith.subf %59, %12 : vector<13x32x64xf32>
    %cst_14 = arith.constant 8.000000e+00 : f32
    %61 = vector.broadcast %cst_14 : f32 to vector<13x32x64xf32>
    %62 = arith.mulf %61, %41 : vector<13x32x64xf32>
    %63 = arith.addf %60, %62 : vector<13x32x64xf32>
    %cst_15 = arith.constant 8.000000e+00 : f32
    %64 = vector.broadcast %cst_15 : f32 to vector<13x32x64xf32>
    %65 = arith.mulf %64, %44 : vector<13x32x64xf32>
    %66 = arith.subf %63, %65 : vector<13x32x64xf32>
    %67 = arith.addf %66, %47 : vector<13x32x64xf32>
    %68 = arith.select %4, %67, %58 : vector<13x32x64xi1>, vector<13x32x64xf32>
    %cst_16 = arith.constant 0.000000e+00 : f32
    %69 = vector.broadcast %cst_16 : f32 to vector<13x32x64xf32>
    %70 = arith.subf %69, %38 : vector<13x32x64xf32>
    %cst_17 = arith.constant 8.000000e+00 : f32
    %71 = vector.broadcast %cst_17 : f32 to vector<13x32x64xf32>
    %72 = arith.mulf %71, %41 : vector<13x32x64xf32>
    %73 = arith.addf %70, %72 : vector<13x32x64xf32>
    %cst_18 = arith.constant 8.000000e+00 : f32
    %74 = vector.broadcast %cst_18 : f32 to vector<13x32x64xf32>
    %75 = arith.mulf %74, %44 : vector<13x32x64xf32>
    %76 = arith.subf %73, %75 : vector<13x32x64xf32>
    %77 = arith.addf %76, %12 : vector<13x32x64xf32>
    %78 = arith.select %6, %77, %68 : vector<13x32x64xi1>, vector<13x32x64xf32>
    %79 = arith.subf %12, %38 : vector<13x32x64xf32>
    %80 = arith.select %8, %79, %78 : vector<13x32x64xi1>, vector<13x32x64xf32>
    %cst_19 = arith.constant 1.37396356E-7 : f32
    %81 = vector.broadcast %cst_19 : f32 to vector<13x32x64xf32>
    %82 = arith.mulf %80, %81 : vector<13x32x64xf32>
    %c0_20 = arith.constant 0 : index
    %c0_21 = arith.constant 0 : index
    %c0_22 = arith.constant 0 : index
    %c0_23 = arith.constant 0 : index
    %83 = vector.load %arg5[%c0_20, %c0_21, %c0_22, %c0_23] : memref<1x13x32x64xf32, #tpu.memory_space<vmem>>, vector<1x13x32x64xf32>
    %84 = vector.shape_cast %83 : vector<1x13x32x64xf32> to vector<13x32x64xf32>
    %85 = vector.shape_cast %35 : vector<13x32x64xf32> to vector<1x13x32x64xf32>
    tpu.vector_store %arg5[%c0_20, %c0_21, %c0_22, %c0_23], %85 {strides = array<i32>} : memref<1x13x32x64xf32, #tpu.memory_space<vmem>>, vector<1x13x32x64xf32>,
    %c0_24 = arith.constant 0 : index
    %c0_25 = arith.constant 0 : index
    %c0_26 = arith.constant 0 : index
    %c0_27 = arith.constant 0 : index
    %86 = vector.load %arg6[%c0_24, %c0_25, %c0_26, %c0_27] : memref<1x13x32x64xf32, #tpu.memory_space<vmem>>, vector<1x13x32x64xf32>
    %87 = vector.shape_cast %86 : vector<1x13x32x64xf32> to vector<13x32x64xf32>
    %88 = vector.shape_cast %82 : vector<13x32x64xf32> to vector<1x13x32x64xf32>
    tpu.vector_store %arg6[%c0_24, %c0_25, %c0_26, %c0_27], %88 {strides = array<i32>} : memref<1x13x32x64xf32, #tpu.memory_space<vmem>>, vector<1x13x32x64xf32>,
    %89 = arith.addf %35, %82 : vector<13x32x64xf32>
    %cst_28 = arith.constant 0.000000e+00 : f32
    %90 = vector.broadcast %cst_28 : f32 to vector<13x32x64xf32>
    %91 = arith.subf %90, %89 : vector<13x32x64xf32>
    %c0_29 = arith.constant 0 : index
    %c0_30 = arith.constant 0 : index
    %c0_31 = arith.constant 0 : index
    %92 = vector.load %arg4[%c0_29, %c0_30, %c0_31] : memref<13x1x1xf32, #tpu.memory_space<vmem>>, vector<13x1x1xf32>
    %93 = vector.broadcast %92 : vector<13x1x1xf32> to vector<13x32x64xf32>
    %94 = arith.mulf %91, %93 : vector<13x32x64xf32>
    %95 = vector.extract_strided_slice %94 {offsets = [0, 0, 0], sizes = [1, 32, 64], strides = [1, 1, 1]} : vector<13x32x64xf32> to vector<1x32x64xf32>
    %96 = vector.extract_strided_slice %94 {offsets = [1, 0, 0], sizes = [1, 32, 64], strides = [1, 1, 1]} : vector<13x32x64xf32> to vector<1x32x64xf32>
    %97 = arith.addf %95, %96 : vector<1x32x64xf32>
    %98 = vector.extract_strided_slice %94 {offsets = [2, 0, 0], sizes = [1, 32, 64], strides = [1, 1, 1]} : vector<13x32x64xf32> to vector<1x32x64xf32>
    %99 = arith.addf %97, %98 : vector<1x32x64xf32>
    %100 = vector.extract_strided_slice %94 {offsets = [3, 0, 0], sizes = [1, 32, 64], strides = [1, 1, 1]} : vector<13x32x64xf32> to vector<1x32x64xf32>
    %101 = arith.addf %99, %100 : vector<1x32x64xf32>
    %102 = vector.extract_strided_slice %94 {offsets = [4, 0, 0], sizes = [1, 32, 64], strides = [1, 1, 1]} : vector<13x32x64xf32> to vector<1x32x64xf32>
    %103 = arith.addf %101, %102 : vector<1x32x64xf32>
    %104 = vector.extract_strided_slice %94 {offsets = [5, 0, 0], sizes = [1, 32, 64], strides = [1, 1, 1]} : vector<13x32x64xf32> to vector<1x32x64xf32>
    %105 = arith.addf %103, %104 : vector<1x32x64xf32>
    %106 = vector.extract_strided_slice %94 {offsets = [6, 0, 0], sizes = [1, 32, 64], strides = [1, 1, 1]} : vector<13x32x64xf32> to vector<1x32x64xf32>
    %107 = arith.addf %105, %106 : vector<1x32x64xf32>
    %108 = vector.extract_strided_slice %94 {offsets = [7, 0, 0], sizes = [1, 32, 64], strides = [1, 1, 1]} : vector<13x32x64xf32> to vector<1x32x64xf32>
    %109 = arith.addf %107, %108 : vector<1x32x64xf32>
    %110 = vector.extract_strided_slice %94 {offsets = [8, 0, 0], sizes = [1, 32, 64], strides = [1, 1, 1]} : vector<13x32x64xf32> to vector<1x32x64xf32>
    %111 = arith.addf %109, %110 : vector<1x32x64xf32>
    %112 = vector.extract_strided_slice %94 {offsets = [9, 0, 0], sizes = [1, 32, 64], strides = [1, 1, 1]} : vector<13x32x64xf32> to vector<1x32x64xf32>
    %113 = arith.addf %111, %112 : vector<1x32x64xf32>
    %114 = vector.extract_strided_slice %94 {offsets = [10, 0, 0], sizes = [1, 32, 64], strides = [1, 1, 1]} : vector<13x32x64xf32> to vector<1x32x64xf32>
    %115 = arith.addf %113, %114 : vector<1x32x64xf32>
    %116 = vector.extract_strided_slice %94 {offsets = [11, 0, 0], sizes = [1, 32, 64], strides = [1, 1, 1]} : vector<13x32x64xf32> to vector<1x32x64xf32>
    %117 = arith.addf %115, %116 : vector<1x32x64xf32>
    %118 = vector.extract_strided_slice %94 {offsets = [12, 0, 0], sizes = [1, 32, 64], strides = [1, 1, 1]} : vector<13x32x64xf32> to vector<1x32x64xf32>
    %119 = arith.addf %117, %118 : vector<1x32x64xf32>
    %120 = tpu.concatenate %95, %97, %99, %101, %103, %105, %107, %109, %111, %113, %115, %117, %119 in 0 : vector<1x32x64xf32>, vector<1x32x64xf32>, vector<1x32x64xf32>, vector<1x32x64xf32>, vector<1x32x64xf32>, vector<1x32x64xf32>, vector<1x32x64xf32>, vector<1x32x64xf32>, vector<1x32x64xf32>, vector<1x32x64xf32>, vector<1x32x64xf32>, vector<1x32x64xf32>, vector<1x32x64xf32> -> vector<13x32x64xf32>
    %c0_32 = arith.constant 0 : index
    %c0_33 = arith.constant 0 : index
    %c0_34 = arith.constant 0 : index
    %c0_35 = arith.constant 0 : index
    %121 = vector.load %arg7[%c0_32, %c0_33, %c0_34, %c0_35] : memref<1x13x32x64xf32, #tpu.memory_space<vmem>>, vector<1x13x32x64xf32>
    %122 = vector.shape_cast %121 : vector<1x13x32x64xf32> to vector<13x32x64xf32>
    %123 = vector.shape_cast %120 : vector<13x32x64xf32> to vector<1x13x32x64xf32>
    tpu.vector_store %arg7[%c0_32, %c0_33, %c0_34, %c0_35], %123 {strides = array<i32>} : memref<1x13x32x64xf32, #tpu.memory_space<vmem>>, vector<1x13x32x64xf32>,
    return
  }
  func.func @transform_0(%arg0: i32) -> (i32, i32, i32, i32) {
    %c0_i32 = arith.constant 0 : i32
    %c0_i32_0 = arith.constant 0 : i32
    %c0_i32_1 = arith.constant 0 : i32
    %c0_i32_2 = arith.constant 0 : i32
    return %arg0, %c0_i32, %c0_i32_0, %c0_i32_1 : i32, i32, i32, i32
  }
  func.func @transform_1(%arg0: i32) -> (i32, i32, i32, i32) {
    %c0_i32 = arith.constant 0 : i32
    %c0_i32_0 = arith.constant 0 : i32
    %c0_i32_1 = arith.constant 0 : i32
    %c0_i32_2 = arith.constant 0 : i32
    return %arg0, %c0_i32, %c0_i32_0, %c0_i32_1 : i32, i32, i32, i32
  }
  func.func @transform_2(%arg0: i32) -> (i32, i32) {
    %c0_i32 = arith.constant 0 : i32
    %c0_i32_0 = arith.constant 0 : i32
    %c0_i32_1 = arith.constant 0 : i32
    return %c0_i32, %c0_i32_0 : i32, i32
  }
  func.func @transform_3(%arg0: i32) -> (i32, i32, i32) {
    %c0_i32 = arith.constant 0 : i32
    %c0_i32_0 = arith.constant 0 : i32
    %c0_i32_1 = arith.constant 0 : i32
    %c0_i32_2 = arith.constant 0 : i32
    return %c0_i32, %c0_i32_0, %c0_i32_1 : i32, i32, i32
  }
  func.func @transform_4(%arg0: i32) -> (i32, i32, i32, i32) {
    %c0_i32 = arith.constant 0 : i32
    %c0_i32_0 = arith.constant 0 : i32
    %c0_i32_1 = arith.constant 0 : i32
    %c0_i32_2 = arith.constant 0 : i32
    return %arg0, %c0_i32, %c0_i32_0, %c0_i32_1 : i32, i32, i32, i32
  }
  func.func @transform_5(%arg0: i32) -> (i32, i32, i32, i32) {
    %c0_i32 = arith.constant 0 : i32
    %c0_i32_0 = arith.constant 0 : i32
    %c0_i32_1 = arith.constant 0 : i32
    %c0_i32_2 = arith.constant 0 : i32
    return %arg0, %c0_i32, %c0_i32_0, %c0_i32_1 : i32, i32, i32, i32
  }
  func.func @transform_6(%arg0: i32) -> (i32, i32, i32, i32) {
    %c0_i32 = arith.constant 0 : i32
    %c0_i32_0 = arith.constant 0 : i32
    %c0_i32_1 = arith.constant 0 : i32
    %c0_i32_2 = arith.constant 0 : i32
    return %arg0, %c0_i32, %c0_i32_0, %c0_i32_1 : i32, i32, i32, i32
  }
}

</mosaic_0001>

<llo_original>
// kernel: tpu_custom_call.1
$region0: #{tpu_custom_call.1}
  #allocation0 [shape = 'u32[]', space=smem, size = 0x4, offset = 0x4, fixed_abs, tag = 'smem constant byte address 0x4 - core index']
  #allocation1 [shape = 'u32[144,128]{1,0:T(1,128)}', space=vmem, size = 0x12000, scoped, tag = 'internal scratch']
  %s0 = inlined_call_operand.hbm [shape: f32[2,13,32,64], index: 0, kind: input, shape index: {}]
  %s1 = inlined_call_operand.hbm [shape: f32[2,13,32,64], index: 1, kind: input, shape index: {}]
  %s2 = inlined_call_operand.hbm [shape: f32[32,64], index: 2, kind: input, shape index: {}]
  %s3 = inlined_call_operand.vmem [shape: f32[13,1,1], index: 3, kind: input, shape index: {}]
  %s4 = inlined_call_operand.hbm [shape: f32[2,13,32,64], index: 4, kind: output, shape index: {0}]
  %s5 = inlined_call_operand.hbm [shape: f32[2,13,32,64], index: 5, kind: output, shape index: {1}]
  %s6 = inlined_call_operand.hbm [shape: f32[2,13,32,64], index: 6, kind: output, shape index: {2}]
  %7 = xla_tuple %s4, %s5, %s6
  %s8 = sld [smem:[#allocation0]]
  $region77: #{tpu_custom_call.1} parent=0
    _
  %s10 = ssub.s32 1, %s8
  %s11 = scalar_select 0, %s10, %s8
  $region1: #{tpu_custom_call.1} parent=0
    #allocation2 [shape = 'u8[425984]{0}', space=vmem, size = 0x68000, scoped, tag = 'input window, operand 0']
    #allocation3 [shape = 's32[2]{0}', space=sflag, size = 0x8, scoped, tag = 'scoped memory for tpu_custom_call.1']
    #allocation4 [shape = 's32[2]{0}', space=sflag, size = 0x8, scoped, tag = 'scoped memory for tpu_custom_call.1']
    #allocation5 [shape = 'u8[425984]{0}', space=vmem, size = 0x68000, scoped, tag = 'input window, operand 1']
    #allocation6 [shape = 's32[2]{0}', space=sflag, size = 0x8, scoped, tag = 'scoped memory for tpu_custom_call.1']
    #allocation7 [shape = 'u8[16384]{0}', space=vmem, size = 0x4000, scoped, tag = 'input window, operand 2, single buffered']
    #allocation8 [shape = 'u8[425984]{0}', space=vmem, size = 0x68000, scoped, tag = 'output window, operand 0']
    #allocation9 [shape = 'u8[425984]{0}', space=vmem, size = 0x68000, scoped, tag = 'output window, operand 1']
    #allocation10 [shape = 's32[2]{0}', space=sflag, size = 0x8, scoped, tag = 'scoped memory for tpu_custom_call.1']
    #allocation11 [shape = 'u8[425984]{0}', space=vmem, size = 0x68000, scoped, tag = 'output window, operand 2']
    %12 = vsyncpa [#allocation3], 0
    %s13 = scalar_lea.sflag [#allocation3], 1
    %14 = vsyncpa %s13, 0
    %15 = vsyncpa [#allocation6], 0
    %s16 = scalar_lea.sflag [#allocation6], 1
    %17 = vsyncpa %s16, 0
    %18 = vsyncpa [#allocation4], 0
    %s19 = scalar_lea.sflag [#allocation4], 1
    %20 = vsyncpa %s19, 0
    %21 = vsyncpa [#allocation10], 0
    %s22 = scalar_lea.sflag [#allocation10], 1
    %23 = vsyncpa %s22, 0
    loop: start=0, step=1, limit=4
    $region2: #{tpu_custom_call.1} parent=1 // loop_pre_header
      _
    $region3: #{tpu_custom_call.1} parent=1 // loop_header
      %s25 = sphi 0, %s29
      %p26 = scmp.ge.s32.totalorder %s25, 4
      %s35 = sphi 0, %s37
      %s38 = sphi 0, %s35
      %s39 = sphi 0, %s38
      %s55 = sphi 0, %s39
      %s61 = sphi 0, %s63
      %s64 = sphi 0, %s61
      %s65 = sphi 0, %s64
      %s81 = sphi 0, %s65
      %s85 = sphi 0, %s85
      %s87 = sphi 0, %s85
      %s88 = sphi 0, %s87
      %s102 = sphi 0, %s88
      %s106 = sphi 0, %s106
      %s108 = sphi 0, %s106
      %s109 = sphi 0, %s108
      %s123 = sphi 0, %s109
      %s129 = sphi 0, %s131
      %s132 = sphi 0, %s129
      %s133 = sphi 0, %s132
      %s149 = sphi 0, %s133
      %s155 = sphi 0, %s157
      %s158 = sphi 0, %s155
      %s159 = sphi 0, %s158
      %s175 = sphi 0, %s159
      %s181 = sphi 0, %s183
      %s184 = sphi 0, %s181
      %s185 = sphi 0, %s184
      %s201 = sphi 0, %s185
    $region4: #{tpu_custom_call.1} parent=1 // loop_header_branch
      %28 = sbr.rel (%p26) target = $region8
    $region5: #{tpu_custom_call.1} parent=1 // loop_body
      %s30 = ssub.s32 %s25, 1
      %s31 = ssub.s32 %s25, 2
      %s32 = sadd.s32 %s25, 1
      %s33 = ssub.s32 %s25, %s32
      %p34 = scmp.eq.s32.totalorder %s33, 0
      %s36 = sadd.s32 %s35, 1
      %s37 = scalar_select %p34, %s35, %s36
      %p40 = pneg %p34
      %p41 = scmp.eq.s32.totalorder %s25, 1
      %p42 = por %p40, %p41
      %p43 = scmp.ne.s32.totalorder %s35, %s38
      %p44 = scmp.eq.s32.totalorder %s25, 0
      %p45 = por %p43, %p44
      %p46 = scmp.ne.s32.totalorder %s35, %s38
      %p47 = scmp.eq.s32.totalorder %s30, 1
      %p48 = por %p46, %p47
      %p49 = scmp.ne.s32.totalorder %s38, %s39
      %p50 = scmp.eq.s32.totalorder %s30, 0
      %p51 = por %p49, %p50
      %p52 = scmp.ne.s32.totalorder %s38, %s39
      %p53 = scmp.eq.s32.totalorder %s31, 1
      %p54 = por %p52, %p53
      %p56 = scmp.ne.s32.totalorder %s39, %s55
      %p57 = scmp.eq.s32.totalorder %s31, 0
      %p58 = por %p56, %p57
      %s59 = ssub.s32 %s25, %s32
      %p60 = scmp.eq.s32.totalorder %s59, 0
      %s62 = sadd.s32 %s61, 1
      %s63 = scalar_select %p60, %s61, %s62
      %p66 = pneg %p60
      %p67 = scmp.eq.s32.totalorder %s25, 1
      %p68 = por %p66, %p67
      %p69 = scmp.ne.s32.totalorder %s61, %s64
      %p70 = scmp.eq.s32.totalorder %s25, 0
      %p71 = por %p69, %p70
      %p72 = scmp.ne.s32.totalorder %s61, %s64
      %p73 = scmp.eq.s32.totalorder %s30, 1
      %p74 = por %p72, %p73
      %p75 = scmp.ne.s32.totalorder %s64, %s65
      %p76 = scmp.eq.s32.totalorder %s30, 0
      %p77 = por %p75, %p76
      %p78 = scmp.ne.s32.totalorder %s64, %s65
      %p79 = scmp.eq.s32.totalorder %s31, 1
      %p80 = por %p78, %p79
      %p82 = scmp.ne.s32.totalorder %s65, %s81
      %p83 = scmp.eq.s32.totalorder %s31, 0
      %p84 = por %p82, %p83
      %s86 = sadd.s32 %s85, 1
      %p89 = scmp.eq.s32.totalorder %s25, 1
      %p90 = scmp.ne.s32.totalorder %s85, %s87
      %p91 = scmp.eq.s32.totalorder %s25, 0
      %p92 = por %p90, %p91
      %p93 = scmp.ne.s32.totalorder %s85, %s87
      %p94 = scmp.eq.s32.totalorder %s30, 1
      %p95 = por %p93, %p94
      %p96 = scmp.ne.s32.totalorder %s87, %s88
      %p97 = scmp.eq.s32.totalorder %s30, 0
      %p98 = por %p96, %p97
      %p99 = scmp.ne.s32.totalorder %s87, %s88
      %p100 = scmp.eq.s32.totalorder %s31, 1
      %p101 = por %p99, %p100
      %p103 = scmp.ne.s32.totalorder %s88, %s102
      %p104 = scmp.eq.s32.totalorder %s31, 0
      %p105 = por %p103, %p104
      %s107 = sadd.s32 %s106, 1
      %p110 = scmp.eq.s32.totalorder %s25, 1
      %p111 = scmp.ne.s32.totalorder %s106, %s108
      %p112 = scmp.eq.s32.totalorder %s25, 0
      %p113 = por %p111, %p112
      %p114 = scmp.ne.s32.totalorder %s106, %s108
      %p115 = scmp.eq.s32.totalorder %s30, 1
      %p116 = por %p114, %p115
      %p117 = scmp.ne.s32.totalorder %s108, %s109
      %p118 = scmp.eq.s32.totalorder %s30, 0
      %p119 = por %p117, %p118
      %p120 = scmp.ne.s32.totalorder %s108, %s109
      %p121 = scmp.eq.s32.totalorder %s31, 1
      %p122 = por %p120, %p121
      %p124 = scmp.ne.s32.totalorder %s109, %s123
      %p125 = scmp.eq.s32.totalorder %s31, 0
      %p126 = por %p124, %p125
      %s127 = ssub.s32 %s25, %s32
      %p128 = scmp.eq.s32.totalorder %s127, 0
      %s130 = sadd.s32 %s129, 1
      %s131 = scalar_select %p128, %s129, %s130
      %p134 = pneg %p128
      %p135 = scmp.eq.s32.totalorder %s25, 1
      %p136 = por %p134, %p135
      %p137 = scmp.ne.s32.totalorder %s129, %s132
      %p138 = scmp.eq.s32.totalorder %s25, 0
      %p139 = por %p137, %p138
      %p140 = scmp.ne.s32.totalorder %s129, %s132
      %p141 = scmp.eq.s32.totalorder %s30, 1
      %p142 = por %p140, %p141
      %p143 = scmp.ne.s32.totalorder %s132, %s133
      %p144 = scmp.eq.s32.totalorder %s30, 0
      %p145 = por %p143, %p144
      %p146 = scmp.ne.s32.totalorder %s132, %s133
      %p147 = scmp.eq.s32.totalorder %s31, 1
      %p148 = por %p146, %p147
      %p150 = scmp.ne.s32.totalorder %s133, %s149
      %p151 = scmp.eq.s32.totalorder %s31, 0
      %p152 = por %p150, %p151
      %s153 = ssub.s32 %s25, %s32
      %p154 = scmp.eq.s32.totalorder %s153, 0
      %s156 = sadd.s32 %s155, 1
      %s157 = scalar_select %p154, %s155, %s156
      %p160 = pneg %p154
      %p161 = scmp.eq.s32.totalorder %s25, 1
      %p162 = por %p160, %p161
      %p163 = scmp.ne.s32.totalorder %s155, %s158
      %p164 = scmp.eq.s32.totalorder %s25, 0
      %p165 = por %p163, %p164
      %p166 = scmp.ne.s32.totalorder %s155, %s158
      %p167 = scmp.eq.s32.totalorder %s30, 1
      %p168 = por %p166, %p167
      %p169 = scmp.ne.s32.totalorder %s158, %s159
      %p170 = scmp.eq.s32.totalorder %s30, 0
      %p171 = por %p169, %p170
      %p172 = scmp.ne.s32.totalorder %s158, %s159
      %p173 = scmp.eq.s32.totalorder %s31, 1
      %p174 = por %p172, %p173
      %p176 = scmp.ne.s32.totalorder %s159, %s175
      %p177 = scmp.eq.s32.totalorder %s31, 0
      %p178 = por %p176, %p177
      %s179 = ssub.s32 %s25, %s32
      %p180 = scmp.eq.s32.totalorder %s179, 0
      %s182 = sadd.s32 %s181, 1
      %s183 = scalar_select %p180, %s181, %s182
      %p186 = pneg %p180
      %p187 = scmp.eq.s32.totalorder %s25, 1
      %p188 = por %p186, %p187
      %p189 = scmp.ne.s32.totalorder %s181, %s184
      %p190 = scmp.eq.s32.totalorder %s25, 0
      %p191 = por %p189, %p190
      %p192 = scmp.ne.s32.totalorder %s181, %s184
      %p193 = scmp.eq.s32.totalorder %s30, 1
      %p194 = por %p192, %p193
      %p195 = scmp.ne.s32.totalorder %s184, %s185
      %p196 = scmp.eq.s32.totalorder %s30, 0
      %p197 = por %p195, %p196
      %p198 = scmp.ne.s32.totalorder %s184, %s185
      %p199 = scmp.eq.s32.totalorder %s31, 1
      %p200 = por %p198, %p199
      %p202 = scmp.ne.s32.totalorder %s185, %s201
      %p203 = scmp.eq.s32.totalorder %s31, 0
      %p204 = por %p202, %p203
      %p205 = scmp.le.s32.totalorder 1, %s25
      %p206 = scmp.lt.s32.totalorder %s25, 3
      %p207 = pnand %p205, %p206
      %p208 = pneg %p207
      // Predicated region
      $region9: #{tpu_custom_call.1} parent=5 // pred_check
        _
      $region10: #{tpu_custom_call.1} parent=5 // pred_check_branch
        %210 = sbr.rel (%p207) target = $region12
      $region11: #{tpu_custom_call.1} parent=5 // pred_region
        %s211 = ssub.s32 %s25, 1
        // Predicated region
        $region13: #{tpu_custom_call.1} parent=11 // pred_check
          %p212 = pneg %p98
        $region14: #{tpu_custom_call.1} parent=11 // pred_check_branch
          %214 = sbr.rel (%p212) target = $region16
        $region15: #{tpu_custom_call.1} parent=11 // pred_region
          %s216 = ssub.s32 512, 512
          %217 = vsyncadd [#allocation6], %s216
          %s218 = sshll.u32 [#allocation7], 4
          %s219 = int_to_ptr.vmem [resolvable:$true] %s218
          %224 = dma.hbm_to_vmem [thread:$0]  %s2, 512, %s219, [#allocation6], 128, 128, 8
        $region16: #{tpu_custom_call.1} parent=11 // pred_fallthru
          _
        // Predicated region
        $region17: #{tpu_custom_call.1} parent=11 // pred_check
          %p225 = pneg %p119
        $region18: #{tpu_custom_call.1} parent=11 // pred_check_branch
          %227 = sbr.rel (%p225) target = $region20
        $region19: #{tpu_custom_call.1} parent=11 // pred_region
          _
        $region20: #{tpu_custom_call.1} parent=11 // pred_fallthru
          _
      $region12: #{tpu_custom_call.1} parent=5 // pred_fallthru
        _
      %p228 = scmp.lt.s32.totalorder %s25, 2
      // Predicated region
      $region21: #{tpu_custom_call.1} parent=5 // pred_check
        %p229 = pneg %p228
      $region22: #{tpu_custom_call.1} parent=5 // pred_check_branch
        %231 = sbr.rel (%p229) target = $region24
      $region23: #{tpu_custom_call.1} parent=5 // pred_region
        // Predicated region
        $region25: #{tpu_custom_call.1} parent=23 // pred_check
          %p232 = pneg %p45
        $region26: #{tpu_custom_call.1} parent=23 // pred_check_branch
          %234 = sbr.rel (%p232) target = $region28
        $region27: #{tpu_custom_call.1} parent=23 // pred_region
          %s235 = sand.u32 %s35, 1
          %s236 = scalar_lea.sflag [#allocation3], %s235
          %s237 = sand.u32 %s35, 1
          %s238 = smul.addr %s237, 416
          %s239 = scalar_lea.vmem [#allocation2], %s238
          %s241 = ssub.s32 6656, 6656
          %242 = vsyncadd %s236, %s241
          %s243 = smul.addr %s25, 52
          %s244 = smul.addr %s243, 128
          %s245 = scalar_lea.hbm %s0, %s244
          %s246 = sshll.u32 %s239, 4
          %s247 = int_to_ptr.vmem [resolvable:$true] %s246
          %252 = dma.hbm_to_vmem [thread:$0]  %s245, 6656, %s247, %s236, 128, 128, 8
        $region28: #{tpu_custom_call.1} parent=23 // pred_fallthru
          _
        // Predicated region
        $region29: #{tpu_custom_call.1} parent=23 // pred_check
          %p253 = pneg %p71
        $region30: #{tpu_custom_call.1} parent=23 // pred_check_branch
          %255 = sbr.rel (%p253) target = $region32
        $region31: #{tpu_custom_call.1} parent=23 // pred_region
          %s256 = sand.u32 %s25, 1
          %s257 = scalar_lea.sflag [#allocation6], %s256
          %s258 = sand.u32 %s61, 1
          %s259 = smul.addr %s258, 416
          %s260 = scalar_lea.vmem [#allocation5], %s259
          %s262 = ssub.s32 6656, 6656
          %263 = vsyncadd %s257, %s262
          %s264 = smul.addr %s25, 52
          %s265 = smul.addr %s264, 128
          %s266 = scalar_lea.hbm %s1, %s265
          %s267 = sshll.u32 %s260, 4
          %s268 = int_to_ptr.vmem [resolvable:$true] %s267
          %273 = dma.hbm_to_vmem [thread:$0]  %s266, 6656, %s268, %s257, 128, 128, 8
        $region32: #{tpu_custom_call.1} parent=23 // pred_fallthru
          _
      $region24: #{tpu_custom_call.1} parent=5 // pred_fallthru
        _
      %p274 = scmp.le.s32.totalorder 1, %s25
      %p275 = scmp.lt.s32.totalorder %s25, 3
      %p276 = pnand %p274, %p275
      %p277 = pneg %p276
      // Predicated region
      $region33: #{tpu_custom_call.1} parent=5 // pred_check
        _
      $region34: #{tpu_custom_call.1} parent=5 // pred_check_branch
        %279 = sbr.rel (%p276) target = $region36
      $region35: #{tpu_custom_call.1} parent=5 // pred_region
        %s280 = ssub.s32 %s25, 1
        %s281 = sand.u32 %s38, 1
        %s282 = scalar_lea.sflag [#allocation3], %s281
        %s283 = sand.u32 %s38, 1
        %s284 = smul.addr %s283, 416
        %s285 = scalar_lea.vmem [#allocation2], %s284
        // Predicated region
        $region37: #{tpu_custom_call.1} parent=35 // pred_check
          %p286 = pneg %p51
        $region38: #{tpu_custom_call.1} parent=35 // pred_check_branch
          %288 = sbr.rel (%p286) target = $region40
        $region39: #{tpu_custom_call.1} parent=35 // pred_region
          %289 = dma.done %s282, 6656
        $region40: #{tpu_custom_call.1} parent=35 // pred_fallthru
          _
        %s290 = sand.u32 %s30, 1
        %s291 = scalar_lea.sflag [#allocation6], %s290
        %s292 = sand.u32 %s64, 1
        %s293 = smul.addr %s292, 416
        %s294 = scalar_lea.vmem [#allocation5], %s293
        // Predicated region
        $region41: #{tpu_custom_call.1} parent=35 // pred_check
          %p295 = pneg %p77
        $region42: #{tpu_custom_call.1} parent=35 // pred_check_branch
          %297 = sbr.rel (%p295) target = $region44
        $region43: #{tpu_custom_call.1} parent=35 // pred_region
          %298 = dma.done %s291, 6656
        $region44: #{tpu_custom_call.1} parent=35 // pred_fallthru
          _
        // Predicated region
        $region45: #{tpu_custom_call.1} parent=35 // pred_check
          %p299 = pneg %p98
        $region46: #{tpu_custom_call.1} parent=35 // pred_check_branch
          %301 = sbr.rel (%p299) target = $region48
        $region47: #{tpu_custom_call.1} parent=35 // pred_region
          %302 = dma.done [#allocation6], 512
        $region48: #{tpu_custom_call.1} parent=35 // pred_fallthru
          _
        %s303 = sand.u32 %s38, 1
        %s304 = scalar_lea.sflag [#allocation3], %s303
        %s305 = sand.u32 %s38, 1
        %s306 = smul.addr %s305, 416
        %s307 = scalar_lea.vmem [#allocation2], %s306
        %p308 = pneg %p51
        %p309 = pneg %p48
        %s310 = sand.u32 %s30, 1
        %s311 = scalar_lea.sflag [#allocation6], %s310
        %s312 = sand.u32 %s64, 1
        %s313 = smul.addr %s312, 416
        %s314 = scalar_lea.vmem [#allocation5], %s313
        %p315 = pneg %p77
        %p316 = pneg %p74
        %p317 = pneg %p98
        %p318 = pneg %p95
        %p319 = pneg %p119
        %p320 = pneg %p116
        %p321 = pneg %p145
        %p322 = pneg %p142
        %s323 = sand.u32 %s132, 1
        %s324 = scalar_lea.sflag [#allocation4], %s323
        %s325 = sand.u32 %s132, 1
        %s326 = smul.addr %s325, 416
        %s327 = scalar_lea.vmem [#allocation8], %s326
        %p328 = pneg %p171
        %p329 = pneg %p168
        %s330 = sand.u32 %s30, 1
        %s331 = scalar_lea.sflag [#allocation10], %s330
        %s332 = sand.u32 %s158, 1
        %s333 = smul.addr %s332, 416
        %s334 = scalar_lea.vmem [#allocation9], %s333
        %p335 = pneg %p197
        %p336 = pneg %p194
        %s337 = sand.u32 %s30, 1
        %s338 = scalar_lea.sflag [#allocation10], %s337
        %s339 = sand.u32 %s184, 1
        %s340 = smul.addr %s339, 416
        %s341 = scalar_lea.vmem [#allocation11], %s340
        %v342 = vlaneseq
        %v343 = vshrl.u32 %v342, 7
        %v344 = vadd.s32 %v343, 8
        %v345 = vadd.s32 %v343, 16
        %v346 = vadd.s32 %v343, 24
        %vm347 = vcmp.eq.s32.totalorder %v343, 0
        %vm348 = vcmp.eq.s32.totalorder %v344, 0
        %vm349 = vcmp.eq.s32.totalorder %v345, 0
        %vm350 = vcmp.eq.s32.totalorder %v346, 0
        %vm351 = vcmp.eq.s32.totalorder %v343, 1
        %vm352 = vcmp.eq.s32.totalorder %v344, 1
        %vm353 = vcmp.eq.s32.totalorder %v345, 1
        %vm354 = vcmp.eq.s32.totalorder %v346, 1
        %vm355 = vcmp.eq.s32.totalorder %v343, 30
        %vm356 = vcmp.eq.s32.totalorder %v344, 30
        %vm357 = vcmp.eq.s32.totalorder %v345, 30
        %vm358 = vcmp.eq.s32.totalorder %v346, 30
        %vm359 = vcmp.eq.s32.totalorder %v343, 31
        %vm360 = vcmp.eq.s32.totalorder %v344, 31
        %vm361 = vcmp.eq.s32.totalorder %v345, 31
        %vm362 = vcmp.eq.s32.totalorder %v346, 31
        %v363 = vld [vmem:[%s285] sm:$0xff]
        %v364 = vld [vmem:[%s285 + $0x8] sm:$0xff]
        %v365 = vld [vmem:[%s285 + $0x10] sm:$0xff]
        %v366 = vld [vmem:[%s285 + $0x18] sm:$0xff]
        %v367 = vld [vmem:[%s285 + $0x20] sm:$0xff]
        %v368 = vld [vmem:[%s285 + $0x28] sm:$0xff]
        %v369 = vld [vmem:[%s285 + $0x30] sm:$0xff]
        %v370 = vld [vmem:[%s285 + $0x38] sm:$0xff]
        %v371 = vld [vmem:[%s285 + $0x40] sm:$0xff]
        %v372 = vld [vmem:[%s285 + $0x48] sm:$0xff]
        %v373 = vld [vmem:[%s285 + $0x50] sm:$0xff]
        %v374 = vld [vmem:[%s285 + $0x58] sm:$0xff]
        %v375 = vld [vmem:[%s285 + $0x60] sm:$0xff]
        %v376 = vld [vmem:[%s285 + $0x68] sm:$0xff]
        %v377 = vld [vmem:[%s285 + $0x70] sm:$0xff]
        %v378 = vld [vmem:[%s285 + $0x78] sm:$0xff]
        %v379 = vld [vmem:[%s285 + $0x80] sm:$0xff]
        %v380 = vld [vmem:[%s285 + $0x88] sm:$0xff]
        %v381 = vld [vmem:[%s285 + $0x90] sm:$0xff]
        %v382 = vld [vmem:[%s285 + $0x98] sm:$0xff]
        %v383 = vld [vmem:[%s285 + $0xa0] sm:$0xff]
        %v384 = vld [vmem:[%s285 + $0xa8] sm:$0xff]
        %v385 = vld [vmem:[%s285 + $0xb0] sm:$0xff]
        %v386 = vld [vmem:[%s285 + $0xb8] sm:$0xff]
        %v387 = vld [vmem:[%s285 + $0xc0] sm:$0xff]
        %v388 = vld [vmem:[%s285 + $0xc8] sm:$0xff]
        %v389 = vld [vmem:[%s285 + $0xd0] sm:$0xff]
        %v390 = vld [vmem:[%s285 + $0xd8] sm:$0xff]
        %v391 = vld [vmem:[%s285 + $0xe0] sm:$0xff]
        %v392 = vld [vmem:[%s285 + $0xe8] sm:$0xff]
        %v393 = vld [vmem:[%s285 + $0xf0] sm:$0xff]
        %v394 = vld [vmem:[%s285 + $0xf8] sm:$0xff]
        %v395 = vld [vmem:[%s285 + $0x100] sm:$0xff]
        %v396 = vld [vmem:[%s285 + $0x108] sm:$0xff]
        %v397 = vld [vmem:[%s285 + $0x110] sm:$0xff]
        %v398 = vld [vmem:[%s285 + $0x118] sm:$0xff]
        %v399 = vld [vmem:[%s285 + $0x120] sm:$0xff]
        %v400 = vld [vmem:[%s285 + $0x128] sm:$0xff]
        %v401 = vld [vmem:[%s285 + $0x130] sm:$0xff]
        %v402 = vld [vmem:[%s285 + $0x138] sm:$0xff]
        %v403 = vld [vmem:[%s285 + $0x140] sm:$0xff]
        %v404 = vld [vmem:[%s285 + $0x148] sm:$0xff]
        %v405 = vld [vmem:[%s285 + $0x150] sm:$0xff]
        %v406 = vld [vmem:[%s285 + $0x158] sm:$0xff]
        %v407 = vld [vmem:[%s285 + $0x160] sm:$0xff]
        %v408 = vld [vmem:[%s285 + $0x168] sm:$0xff]
        %v409 = vld [vmem:[%s285 + $0x170] sm:$0xff]
        %v410 = vld [vmem:[%s285 + $0x178] sm:$0xff]
        %v411 = vld [vmem:[%s285 + $0x180] sm:$0xff]
        %v412 = vld [vmem:[%s285 + $0x188] sm:$0xff]
        %v413 = vld [vmem:[%s285 + $0x190] sm:$0xff]
        %v414 = vld [vmem:[%s285 + $0x198] sm:$0xff]
        %v415 = vld [vmem:[%s294] sm:$0xff]
        %v416 = vld [vmem:[%s294 + $0x8] sm:$0xff]
        %v417 = vld [vmem:[%s294 + $0x10] sm:$0xff]
        %v418 = vld [vmem:[%s294 + $0x18] sm:$0xff]
        %v419 = vld [vmem:[%s294 + $0x20] sm:$0xff]
        %v420 = vld [vmem:[%s294 + $0x28] sm:$0xff]
        %v421 = vld [vmem:[%s294 + $0x30] sm:$0xff]
        %v422 = vld [vmem:[%s294 + $0x38] sm:$0xff]
        %v423 = vld [vmem:[%s294 + $0x40] sm:$0xff]
        %v424 = vld [vmem:[%s294 + $0x48] sm:$0xff]
        %v425 = vld [vmem:[%s294 + $0x50] sm:$0xff]
        %v426 = vld [vmem:[%s294 + $0x58] sm:$0xff]
        %v427 = vld [vmem:[%s294 + $0x60] sm:$0xff]
        %v428 = vld [vmem:[%s294 + $0x68] sm:$0xff]
        %v429 = vld [vmem:[%s294 + $0x70] sm:$0xff]
        %v430 = vld [vmem:[%s294 + $0x78] sm:$0xff]
        %v431 = vld [vmem:[%s294 + $0x80] sm:$0xff]
        %v432 = vld [vmem:[%s294 + $0x88] sm:$0xff]
        %v433 = vld [vmem:[%s294 + $0x90] sm:$0xff]
        %v434 = vld [vmem:[%s294 + $0x98] sm:$0xff]
        %v435 = vld [vmem:[%s294 + $0xa0] sm:$0xff]
        %v436 = vld [vmem:[%s294 + $0xa8] sm:$0xff]
        %v437 = vld [vmem:[%s294 + $0xb0] sm:$0xff]
        %v438 = vld [vmem:[%s294 + $0xb8] sm:$0xff]
        %v439 = vld [vmem:[%s294 + $0xc0] sm:$0xff]
        %v440 = vld [vmem:[%s294 + $0xc8] sm:$0xff]
        %v441 = vld [vmem:[%s294 + $0xd0] sm:$0xff]
        %v442 = vld [vmem:[%s294 + $0xd8] sm:$0xff]
        %v443 = vld [vmem:[%s294 + $0xe0] sm:$0xff]
        %v444 = vld [vmem:[%s294 + $0xe8] sm:$0xff]
        %v445 = vld [vmem:[%s294 + $0xf0] sm:$0xff]
        %v446 = vld [vmem:[%s294 + $0xf8] sm:$0xff]
        %v447 = vld [vmem:[%s294 + $0x100] sm:$0xff]
        %v448 = vld [vmem:[%s294 + $0x108] sm:$0xff]
        %v449 = vld [vmem:[%s294 + $0x110] sm:$0xff]
        %v450 = vld [vmem:[%s294 + $0x118] sm:$0xff]
        %v451 = vld [vmem:[%s294 + $0x120] sm:$0xff]
        %v452 = vld [vmem:[%s294 + $0x128] sm:$0xff]
        %v453 = vld [vmem:[%s294 + $0x130] sm:$0xff]
        %v454 = vld [vmem:[%s294 + $0x138] sm:$0xff]
        %v455 = vld [vmem:[%s294 + $0x140] sm:$0xff]
        %v456 = vld [vmem:[%s294 + $0x148] sm:$0xff]
        %v457 = vld [vmem:[%s294 + $0x150] sm:$0xff]
        %v458 = vld [vmem:[%s294 + $0x158] sm:$0xff]
        %v459 = vld [vmem:[%s294 + $0x160] sm:$0xff]
        %v460 = vld [vmem:[%s294 + $0x168] sm:$0xff]
        %v461 = vld [vmem:[%s294 + $0x170] sm:$0xff]
        %v462 = vld [vmem:[%s294 + $0x178] sm:$0xff]
        %v463 = vld [vmem:[%s294 + $0x180] sm:$0xff]
        %v464 = vld [vmem:[%s294 + $0x188] sm:$0xff]
        %v465 = vld [vmem:[%s294 + $0x190] sm:$0xff]
        %v466 = vld [vmem:[%s294 + $0x198] sm:$0xff]
        %519 = vrot.lane.b32.xlu0 %v363, 66
        %v520 = vpop.permute.xlu0 %519
        %521 = vrot.lane.b32.xlu0 %v364, 66
        %v522 = vpop.permute.xlu0 %521
        %523 = vrot.lane.b32.xlu0 %v365, 66
        %v524 = vpop.permute.xlu0 %523
        %525 = vrot.lane.b32.xlu0 %v366, 66
        %v526 = vpop.permute.xlu0 %525
        %527 = vrot.lane.b32.xlu0 %v367, 66
        %v528 = vpop.permute.xlu0 %527
        %529 = vrot.lane.b32.xlu0 %v368, 66
        %v530 = vpop.permute.xlu0 %529
        %531 = vrot.lane.b32.xlu0 %v369, 66
        %v532 = vpop.permute.xlu0 %531
        %533 = vrot.lane.b32.xlu0 %v370, 66
        %v534 = vpop.permute.xlu0 %533
        %535 = vrot.lane.b32.xlu0 %v371, 66
        %v536 = vpop.permute.xlu0 %535
        %537 = vrot.lane.b32.xlu0 %v372, 66
        %v538 = vpop.permute.xlu0 %537
        %539 = vrot.lane.b32.xlu0 %v373, 66
        %v540 = vpop.permute.xlu0 %539
        %541 = vrot.lane.b32.xlu0 %v374, 66
        %v542 = vpop.permute.xlu0 %541
        %543 = vrot.lane.b32.xlu0 %v375, 66
        %v544 = vpop.permute.xlu0 %543
        %545 = vrot.lane.b32.xlu0 %v376, 66
        %v546 = vpop.permute.xlu0 %545
        %547 = vrot.lane.b32.xlu0 %v377, 66
        %v548 = vpop.permute.xlu0 %547
        %549 = vrot.lane.b32.xlu0 %v378, 66
        %v550 = vpop.permute.xlu0 %549
        %551 = vrot.lane.b32.xlu0 %v379, 66
        %v552 = vpop.permute.xlu0 %551
        %553 = vrot.lane.b32.xlu0 %v380, 66
        %v554 = vpop.permute.xlu0 %553
        %555 = vrot.lane.b32.xlu0 %v381, 66
        %v556 = vpop.permute.xlu0 %555
        %557 = vrot.lane.b32.xlu0 %v382, 66
        %v558 = vpop.permute.xlu0 %557
        %559 = vrot.lane.b32.xlu0 %v383, 66
        %v560 = vpop.permute.xlu0 %559
        %561 = vrot.lane.b32.xlu0 %v384, 66
        %v562 = vpop.permute.xlu0 %561
        %563 = vrot.lane.b32.xlu0 %v385, 66
        %v564 = vpop.permute.xlu0 %563
        %565 = vrot.lane.b32.xlu0 %v386, 66
        %v566 = vpop.permute.xlu0 %565
        %567 = vrot.lane.b32.xlu0 %v387, 66
        %v568 = vpop.permute.xlu0 %567
        %569 = vrot.lane.b32.xlu0 %v388, 66
        %v570 = vpop.permute.xlu0 %569
        %571 = vrot.lane.b32.xlu0 %v389, 66
        %v572 = vpop.permute.xlu0 %571
        %573 = vrot.lane.b32.xlu0 %v390, 66
        %v574 = vpop.permute.xlu0 %573
        %575 = vrot.lane.b32.xlu0 %v391, 66
        %v576 = vpop.permute.xlu0 %575
        %577 = vrot.lane.b32.xlu0 %v392, 66
        %v578 = vpop.permute.xlu0 %577
        %579 = vrot.lane.b32.xlu0 %v393, 66
        %v580 = vpop.permute.xlu0 %579
        %581 = vrot.lane.b32.xlu0 %v394, 66
        %v582 = vpop.permute.xlu0 %581
        %583 = vrot.lane.b32.xlu0 %v395, 66
        %v584 = vpop.permute.xlu0 %583
        %585 = vrot.lane.b32.xlu0 %v396, 66
        %v586 = vpop.permute.xlu0 %585
        %587 = vrot.lane.b32.xlu0 %v397, 66
        %v588 = vpop.permute.xlu0 %587
        %589 = vrot.lane.b32.xlu0 %v398, 66
        %v590 = vpop.permute.xlu0 %589
        %591 = vrot.lane.b32.xlu0 %v399, 66
        %v592 = vpop.permute.xlu0 %591
        %593 = vrot.lane.b32.xlu0 %v400, 66
        %v594 = vpop.permute.xlu0 %593
        %595 = vrot.lane.b32.xlu0 %v401, 66
        %v596 = vpop.permute.xlu0 %595
        %597 = vrot.lane.b32.xlu0 %v402, 66
        %v598 = vpop.permute.xlu0 %597
        %599 = vrot.lane.b32.xlu0 %v403, 66
        %v600 = vpop.permute.xlu0 %599
        %601 = vrot.lane.b32.xlu0 %v404, 66
        %v602 = vpop.permute.xlu0 %601
        %603 = vrot.lane.b32.xlu0 %v405, 66
        %v604 = vpop.permute.xlu0 %603
        %605 = vrot.lane.b32.xlu0 %v406, 66
        %v606 = vpop.permute.xlu0 %605
        %607 = vrot.lane.b32.xlu0 %v407, 66
        %v608 = vpop.permute.xlu0 %607
        %609 = vrot.lane.b32.xlu0 %v408, 66
        %v610 = vpop.permute.xlu0 %609
        %611 = vrot.lane.b32.xlu0 %v409, 66
        %v612 = vpop.permute.xlu0 %611
        %613 = vrot.lane.b32.xlu0 %v410, 66
        %v614 = vpop.permute.xlu0 %613
        %615 = vrot.lane.b32.xlu0 %v411, 66
        %v616 = vpop.permute.xlu0 %615
        %617 = vrot.lane.b32.xlu0 %v412, 66
        %v618 = vpop.permute.xlu0 %617
        %619 = vrot.lane.b32.xlu0 %v413, 66
        %v620 = vpop.permute.xlu0 %619
        %621 = vrot.lane.b32.xlu0 %v414, 66
        %v622 = vpop.permute.xlu0 %621
        %675 = vrot.lane.b32.xlu0 %v363, 2
        %v676 = vpop.permute.xlu0 %675
        %677 = vrot.lane.b32.xlu0 %v364, 2
        %v678 = vpop.permute.xlu0 %677
        %679 = vrot.lane.b32.xlu0 %v365, 2
        %v680 = vpop.permute.xlu0 %679
        %681 = vrot.lane.b32.xlu0 %v366, 2
        %v682 = vpop.permute.xlu0 %681
        %683 = vrot.lane.b32.xlu0 %v367, 2
        %v684 = vpop.permute.xlu0 %683
        %685 = vrot.lane.b32.xlu0 %v368, 2
        %v686 = vpop.permute.xlu0 %685
        %687 = vrot.lane.b32.xlu0 %v369, 2
        %v688 = vpop.permute.xlu0 %687
        %689 = vrot.lane.b32.xlu0 %v370, 2
        %v690 = vpop.permute.xlu0 %689
        %691 = vrot.lane.b32.xlu0 %v371, 2
        %v692 = vpop.permute.xlu0 %691
        %693 = vrot.lane.b32.xlu0 %v372, 2
        %v694 = vpop.permute.xlu0 %693
        %695 = vrot.lane.b32.xlu0 %v373, 2
        %v696 = vpop.permute.xlu0 %695
        %697 = vrot.lane.b32.xlu0 %v374, 2
        %v698 = vpop.permute.xlu0 %697
        %699 = vrot.lane.b32.xlu0 %v375, 2
        %v700 = vpop.permute.xlu0 %699
        %701 = vrot.lane.b32.xlu0 %v376, 2
        %v702 = vpop.permute.xlu0 %701
        %703 = vrot.lane.b32.xlu0 %v377, 2
        %v704 = vpop.permute.xlu0 %703
        %705 = vrot.lane.b32.xlu0 %v378, 2
        %v706 = vpop.permute.xlu0 %705
        %707 = vrot.lane.b32.xlu0 %v379, 2
        %v708 = vpop.permute.xlu0 %707
        %709 = vrot.lane.b32.xlu0 %v380, 2
        %v710 = vpop.permute.xlu0 %709
        %711 = vrot.lane.b32.xlu0 %v381, 2
        %v712 = vpop.permute.xlu0 %711
        %713 = vrot.lane.b32.xlu0 %v382, 2
        %v714 = vpop.permute.xlu0 %713
        %715 = vrot.lane.b32.xlu0 %v383, 2
        %v716 = vpop.permute.xlu0 %715
        %717 = vrot.lane.b32.xlu0 %v384, 2
        %v718 = vpop.permute.xlu0 %717
        %719 = vrot.lane.b32.xlu0 %v385, 2
        %v720 = vpop.permute.xlu0 %719
        %721 = vrot.lane.b32.xlu0 %v386, 2
        %v722 = vpop.permute.xlu0 %721
        %723 = vrot.lane.b32.xlu0 %v387, 2
        %v724 = vpop.permute.xlu0 %723
        %725 = vrot.lane.b32.xlu0 %v388, 2
        %v726 = vpop.permute.xlu0 %725
        %727 = vrot.lane.b32.xlu0 %v389, 2
        %v728 = vpop.permute.xlu0 %727
        %729 = vrot.lane.b32.xlu0 %v390, 2
        %v730 = vpop.permute.xlu0 %729
        %731 = vrot.lane.b32.xlu0 %v391, 2
        %v732 = vpop.permute.xlu0 %731
        %733 = vrot.lane.b32.xlu0 %v392, 2
        %v734 = vpop.permute.xlu0 %733
        %735 = vrot.lane.b32.xlu0 %v393, 2
        %v736 = vpop.permute.xlu0 %735
        %737 = vrot.lane.b32.xlu0 %v394, 2
        %v738 = vpop.permute.xlu0 %737
        %739 = vrot.lane.b32.xlu0 %v395, 2
        %v740 = vpop.permute.xlu0 %739
        %741 = vrot.lane.b32.xlu0 %v396, 2
        %v742 = vpop.permute.xlu0 %741
        %743 = vrot.lane.b32.xlu0 %v397, 2
        %v744 = vpop.permute.xlu0 %743
        %745 = vrot.lane.b32.xlu0 %v398, 2
        %v746 = vpop.permute.xlu0 %745
        %747 = vrot.lane.b32.xlu0 %v399, 2
        %v748 = vpop.permute.xlu0 %747
        %749 = vrot.lane.b32.xlu0 %v400, 2
        %v750 = vpop.permute.xlu0 %749
        %751 = vrot.lane.b32.xlu0 %v401, 2
        %v752 = vpop.permute.xlu0 %751
        %753 = vrot.lane.b32.xlu0 %v402, 2
        %v754 = vpop.permute.xlu0 %753
        %755 = vrot.lane.b32.xlu0 %v403, 2
        %v756 = vpop.permute.xlu0 %755
        %757 = vrot.lane.b32.xlu0 %v404, 2
        %v758 = vpop.permute.xlu0 %757
        %759 = vrot.lane.b32.xlu0 %v405, 2
        %v760 = vpop.permute.xlu0 %759
        %761 = vrot.lane.b32.xlu0 %v406, 2
        %v762 = vpop.permute.xlu0 %761
        %763 = vrot.lane.b32.xlu0 %v407, 2
        %v764 = vpop.permute.xlu0 %763
        %765 = vrot.lane.b32.xlu0 %v408, 2
        %v766 = vpop.permute.xlu0 %765
        %767 = vrot.lane.b32.xlu0 %v409, 2
        %v768 = vpop.permute.xlu0 %767
        %769 = vrot.lane.b32.xlu0 %v410, 2
        %v770 = vpop.permute.xlu0 %769
        %771 = vrot.lane.b32.xlu0 %v411, 2
        %v772 = vpop.permute.xlu0 %771
        %773 = vrot.lane.b32.xlu0 %v412, 2
        %v774 = vpop.permute.xlu0 %773
        %775 = vrot.lane.b32.xlu0 %v413, 2
        %v776 = vpop.permute.xlu0 %775
        %777 = vrot.lane.b32.xlu0 %v414, 2
        %v778 = vpop.permute.xlu0 %777
        %vm831 = vcmask 15360
        %v832 = vsel %vm831, %v520, %v676
        %v833 = vsel %vm831, %v522, %v678
        %v834 = vsel %vm831, %v524, %v680
        %v835 = vsel %vm831, %v526, %v682
        %v836 = vsel %vm831, %v528, %v684
        %v837 = vsel %vm831, %v530, %v686
        %v838 = vsel %vm831, %v532, %v688
        %v839 = vsel %vm831, %v534, %v690
        %v840 = vsel %vm831, %v536, %v692
        %v841 = vsel %vm831, %v538, %v694
        %v842 = vsel %vm831, %v540, %v696
        %v843 = vsel %vm831, %v542, %v698
        %v844 = vsel %vm831, %v544, %v700
        %v845 = vsel %vm831, %v546, %v702
        %v846 = vsel %vm831, %v548, %v704
        %v847 = vsel %vm831, %v550, %v706
        %v848 = vsel %vm831, %v552, %v708
        %v849 = vsel %vm831, %v554, %v710
        %v850 = vsel %vm831, %v556, %v712
        %v851 = vsel %vm831, %v558, %v714
        %v852 = vsel %vm831, %v560, %v716
        %v853 = vsel %vm831, %v562, %v718
        %v854 = vsel %vm831, %v564, %v720
        %v855 = vsel %vm831, %v566, %v722
        %v856 = vsel %vm831, %v568, %v724
        %v857 = vsel %vm831, %v570, %v726
        %v858 = vsel %vm831, %v572, %v728
        %v859 = vsel %vm831, %v574, %v730
        %v860 = vsel %vm831, %v576, %v732
        %v861 = vsel %vm831, %v578, %v734
        %v862 = vsel %vm831, %v580, %v736
        %v863 = vsel %vm831, %v582, %v738
        %v864 = vsel %vm831, %v584, %v740
        %v865 = vsel %vm831, %v586, %v742
        %v866 = vsel %vm831, %v588, %v744
        %v867 = vsel %vm831, %v590, %v746
        %v868 = vsel %vm831, %v592, %v748
        %v869 = vsel %vm831, %v594, %v750
        %v870 = vsel %vm831, %v596, %v752
        %v871 = vsel %vm831, %v598, %v754
        %v872 = vsel %vm831, %v600, %v756
        %v873 = vsel %vm831, %v602, %v758
        %v874 = vsel %vm831, %v604, %v760
        %v875 = vsel %vm831, %v606, %v762
        %v876 = vsel %vm831, %v608, %v764
        %v877 = vsel %vm831, %v610, %v766
        %v878 = vsel %vm831, %v612, %v768
        %v879 = vsel %vm831, %v614, %v770
        %v880 = vsel %vm831, %v616, %v772
        %v881 = vsel %vm831, %v618, %v774
        %v882 = vsel %vm831, %v620, %v776
        %v883 = vsel %vm831, %v622, %v778
        %884 = vrot.lane.b32.xlu0 %v363, 65
        %v885 = vpop.permute.xlu0 %884
        %886 = vrot.lane.b32.xlu0 %v364, 65
        %v887 = vpop.permute.xlu0 %886
        %888 = vrot.lane.b32.xlu0 %v365, 65
        %v889 = vpop.permute.xlu0 %888
        %890 = vrot.lane.b32.xlu0 %v366, 65
        %v891 = vpop.permute.xlu0 %890
        %892 = vrot.lane.b32.xlu0 %v367, 65
        %v893 = vpop.permute.xlu0 %892
        %894 = vrot.lane.b32.xlu0 %v368, 65
        %v895 = vpop.permute.xlu0 %894
        %896 = vrot.lane.b32.xlu0 %v369, 65
        %v897 = vpop.permute.xlu0 %896
        %898 = vrot.lane.b32.xlu0 %v370, 65
        %v899 = vpop.permute.xlu0 %898
        %900 = vrot.lane.b32.xlu0 %v371, 65
        %v901 = vpop.permute.xlu0 %900
        %902 = vrot.lane.b32.xlu0 %v372, 65
        %v903 = vpop.permute.xlu0 %902
        %904 = vrot.lane.b32.xlu0 %v373, 65
        %v905 = vpop.permute.xlu0 %904
        %906 = vrot.lane.b32.xlu0 %v374, 65
        %v907 = vpop.permute.xlu0 %906
        %908 = vrot.lane.b32.xlu0 %v375, 65
        %v909 = vpop.permute.xlu0 %908
        %910 = vrot.lane.b32.xlu0 %v376, 65
        %v911 = vpop.permute.xlu0 %910
        %912 = vrot.lane.b32.xlu0 %v377, 65
        %v913 = vpop.permute.xlu0 %912
        %914 = vrot.lane.b32.xlu0 %v378, 65
        %v915 = vpop.permute.xlu0 %914
        %916 = vrot.lane.b32.xlu0 %v379, 65
        %v917 = vpop.permute.xlu0 %916
        %918 = vrot.lane.b32.xlu0 %v380, 65
        %v919 = vpop.permute.xlu0 %918
        %920 = vrot.lane.b32.xlu0 %v381, 65
        %v921 = vpop.permute.xlu0 %920
        %922 = vrot.lane.b32.xlu0 %v382, 65
        %v923 = vpop.permute.xlu0 %922
        %924 = vrot.lane.b32.xlu0 %v383, 65
        %v925 = vpop.permute.xlu0 %924
        %926 = vrot.lane.b32.xlu0 %v384, 65
        %v927 = vpop.permute.xlu0 %926
        %928 = vrot.lane.b32.xlu0 %v385, 65
        %v929 = vpop.permute.xlu0 %928
        %930 = vrot.lane.b32.xlu0 %v386, 65
        %v931 = vpop.permute.xlu0 %930
        %932 = vrot.lane.b32.xlu0 %v387, 65
        %v933 = vpop.permute.xlu0 %932
        %934 = vrot.lane.b32.xlu0 %v388, 65
        %v935 = vpop.permute.xlu0 %934
        %936 = vrot.lane.b32.xlu0 %v389, 65
        %v937 = vpop.permute.xlu0 %936
        %938 = vrot.lane.b32.xlu0 %v390, 65
        %v939 = vpop.permute.xlu0 %938
        %940 = vrot.lane.b32.xlu0 %v391, 65
        %v941 = vpop.permute.xlu0 %940
        %942 = vrot.lane.b32.xlu0 %v392, 65
        %v943 = vpop.permute.xlu0 %942
        %944 = vrot.lane.b32.xlu0 %v393, 65
        %v945 = vpop.permute.xlu0 %944
        %946 = vrot.lane.b32.xlu0 %v394, 65
        %v947 = vpop.permute.xlu0 %946
        %948 = vrot.lane.b32.xlu0 %v395, 65
        %v949 = vpop.permute.xlu0 %948
        %950 = vrot.lane.b32.xlu0 %v396, 65
        %v951 = vpop.permute.xlu0 %950
        %952 = vrot.lane.b32.xlu0 %v397, 65
        %v953 = vpop.permute.xlu0 %952
        %954 = vrot.lane.b32.xlu0 %v398, 65
        %v955 = vpop.permute.xlu0 %954
        %956 = vrot.lane.b32.xlu0 %v399, 65
        %v957 = vpop.permute.xlu0 %956
        %958 = vrot.lane.b32.xlu0 %v400, 65
        %v959 = vpop.permute.xlu0 %958
        %960 = vrot.lane.b32.xlu0 %v401, 65
        %v961 = vpop.permute.xlu0 %960
        %962 = vrot.lane.b32.xlu0 %v402, 65
        %v963 = vpop.permute.xlu0 %962
        %964 = vrot.lane.b32.xlu0 %v403, 65
        %v965 = vpop.permute.xlu0 %964
        %966 = vrot.lane.b32.xlu0 %v404, 65
        %v967 = vpop.permute.xlu0 %966
        %968 = vrot.lane.b32.xlu0 %v405, 65
        %v969 = vpop.permute.xlu0 %968
        %970 = vrot.lane.b32.xlu0 %v406, 65
        %v971 = vpop.permute.xlu0 %970
        %972 = vrot.lane.b32.xlu0 %v407, 65
        %v973 = vpop.permute.xlu0 %972
        %974 = vrot.lane.b32.xlu0 %v408, 65
        %v975 = vpop.permute.xlu0 %974
        %976 = vrot.lane.b32.xlu0 %v409, 65
        %v977 = vpop.permute.xlu0 %976
        %978 = vrot.lane.b32.xlu0 %v410, 65
        %v979 = vpop.permute.xlu0 %978
        %980 = vrot.lane.b32.xlu0 %v411, 65
        %v981 = vpop.permute.xlu0 %980
        %982 = vrot.lane.b32.xlu0 %v412, 65
        %v983 = vpop.permute.xlu0 %982
        %984 = vrot.lane.b32.xlu0 %v413, 65
        %v985 = vpop.permute.xlu0 %984
        %986 = vrot.lane.b32.xlu0 %v414, 65
        %v987 = vpop.permute.xlu0 %986
        %1040 = vrot.lane.b32.xlu0 %v363, 1
        %v1041 = vpop.permute.xlu0 %1040
        %1042 = vrot.lane.b32.xlu0 %v364, 1
        %v1043 = vpop.permute.xlu0 %1042
        %1044 = vrot.lane.b32.xlu0 %v365, 1
        %v1045 = vpop.permute.xlu0 %1044
        %1046 = vrot.lane.b32.xlu0 %v366, 1
        %v1047 = vpop.permute.xlu0 %1046
        %1048 = vrot.lane.b32.xlu0 %v367, 1
        %v1049 = vpop.permute.xlu0 %1048
        %1050 = vrot.lane.b32.xlu0 %v368, 1
        %v1051 = vpop.permute.xlu0 %1050
        %1052 = vrot.lane.b32.xlu0 %v369, 1
        %v1053 = vpop.permute.xlu0 %1052
        %1054 = vrot.lane.b32.xlu0 %v370, 1
        %v1055 = vpop.permute.xlu0 %1054
        %1056 = vrot.lane.b32.xlu0 %v371, 1
        %v1057 = vpop.permute.xlu0 %1056
        %1058 = vrot.lane.b32.xlu0 %v372, 1
        %v1059 = vpop.permute.xlu0 %1058
        %1060 = vrot.lane.b32.xlu0 %v373, 1
        %v1061 = vpop.permute.xlu0 %1060
        %1062 = vrot.lane.b32.xlu0 %v374, 1
        %v1063 = vpop.permute.xlu0 %1062
        %1064 = vrot.lane.b32.xlu0 %v375, 1
        %v1065 = vpop.permute.xlu0 %1064
        %1066 = vrot.lane.b32.xlu0 %v376, 1
        %v1067 = vpop.permute.xlu0 %1066
        %1068 = vrot.lane.b32.xlu0 %v377, 1
        %v1069 = vpop.permute.xlu0 %1068
        %1070 = vrot.lane.b32.xlu0 %v378, 1
        %v1071 = vpop.permute.xlu0 %1070
        %1072 = vrot.lane.b32.xlu0 %v379, 1
        %v1073 = vpop.permute.xlu0 %1072
        %1074 = vrot.lane.b32.xlu0 %v380, 1
        %v1075 = vpop.permute.xlu0 %1074
        %1076 = vrot.lane.b32.xlu0 %v381, 1
        %v1077 = vpop.permute.xlu0 %1076
        %1078 = vrot.lane.b32.xlu0 %v382, 1
        %v1079 = vpop.permute.xlu0 %1078
        %1080 = vrot.lane.b32.xlu0 %v383, 1
        %v1081 = vpop.permute.xlu0 %1080
        %1082 = vrot.lane.b32.xlu0 %v384, 1
        %v1083 = vpop.permute.xlu0 %1082
        %1084 = vrot.lane.b32.xlu0 %v385, 1
        %v1085 = vpop.permute.xlu0 %1084
        %1086 = vrot.lane.b32.xlu0 %v386, 1
        %v1087 = vpop.permute.xlu0 %1086
        %1088 = vrot.lane.b32.xlu0 %v387, 1
        %v1089 = vpop.permute.xlu0 %1088
        %1090 = vrot.lane.b32.xlu0 %v388, 1
        %v1091 = vpop.permute.xlu0 %1090
        %1092 = vrot.lane.b32.xlu0 %v389, 1
        %v1093 = vpop.permute.xlu0 %1092
        %1094 = vrot.lane.b32.xlu0 %v390, 1
        %v1095 = vpop.permute.xlu0 %1094
        %1096 = vrot.lane.b32.xlu0 %v391, 1
        %v1097 = vpop.permute.xlu0 %1096
        %1098 = vrot.lane.b32.xlu0 %v392, 1
        %v1099 = vpop.permute.xlu0 %1098
        %1100 = vrot.lane.b32.xlu0 %v393, 1
        %v1101 = vpop.permute.xlu0 %1100
        %1102 = vrot.lane.b32.xlu0 %v394, 1
        %v1103 = vpop.permute.xlu0 %1102
        %1104 = vrot.lane.b32.xlu0 %v395, 1
        %v1105 = vpop.permute.xlu0 %1104
        %1106 = vrot.lane.b32.xlu0 %v396, 1
        %v1107 = vpop.permute.xlu0 %1106
        %1108 = vrot.lane.b32.xlu0 %v397, 1
        %v1109 = vpop.permute.xlu0 %1108
        %1110 = vrot.lane.b32.xlu0 %v398, 1
        %v1111 = vpop.permute.xlu0 %1110
        %1112 = vrot.lane.b32.xlu0 %v399, 1
        %v1113 = vpop.permute.xlu0 %1112
        %1114 = vrot.lane.b32.xlu0 %v400, 1
        %v1115 = vpop.permute.xlu0 %1114
        %1116 = vrot.lane.b32.xlu0 %v401, 1
        %v1117 = vpop.permute.xlu0 %1116
        %1118 = vrot.lane.b32.xlu0 %v402, 1
        %v1119 = vpop.permute.xlu0 %1118
        %1120 = vrot.lane.b32.xlu0 %v403, 1
        %v1121 = vpop.permute.xlu0 %1120
        %1122 = vrot.lane.b32.xlu0 %v404, 1
        %v1123 = vpop.permute.xlu0 %1122
        %1124 = vrot.lane.b32.xlu0 %v405, 1
        %v1125 = vpop.permute.xlu0 %1124
        %1126 = vrot.lane.b32.xlu0 %v406, 1
        %v1127 = vpop.permute.xlu0 %1126
        %1128 = vrot.lane.b32.xlu0 %v407, 1
        %v1129 = vpop.permute.xlu0 %1128
        %1130 = vrot.lane.b32.xlu0 %v408, 1
        %v1131 = vpop.permute.xlu0 %1130
        %1132 = vrot.lane.b32.xlu0 %v409, 1
        %v1133 = vpop.permute.xlu0 %1132
        %1134 = vrot.lane.b32.xlu0 %v410, 1
        %v1135 = vpop.permute.xlu0 %1134
        %1136 = vrot.lane.b32.xlu0 %v411, 1
        %v1137 = vpop.permute.xlu0 %1136
        %1138 = vrot.lane.b32.xlu0 %v412, 1
        %v1139 = vpop.permute.xlu0 %1138
        %1140 = vrot.lane.b32.xlu0 %v413, 1
        %v1141 = vpop.permute.xlu0 %1140
        %1142 = vrot.lane.b32.xlu0 %v414, 1
        %v1143 = vpop.permute.xlu0 %1142
        %vm1196 = vcmask 7168
        %v1197 = vsel %vm1196, %v885, %v1041
        %v1198 = vsel %vm1196, %v887, %v1043
        %v1199 = vsel %vm1196, %v889, %v1045
        %v1200 = vsel %vm1196, %v891, %v1047
        %v1201 = vsel %vm1196, %v893, %v1049
        %v1202 = vsel %vm1196, %v895, %v1051
        %v1203 = vsel %vm1196, %v897, %v1053
        %v1204 = vsel %vm1196, %v899, %v1055
        %v1205 = vsel %vm1196, %v901, %v1057
        %v1206 = vsel %vm1196, %v903, %v1059
        %v1207 = vsel %vm1196, %v905, %v1061
        %v1208 = vsel %vm1196, %v907, %v1063
        %v1209 = vsel %vm1196, %v909, %v1065
        %v1210 = vsel %vm1196, %v911, %v1067
        %v1211 = vsel %vm1196, %v913, %v1069
        %v1212 = vsel %vm1196, %v915, %v1071
        %v1213 = vsel %vm1196, %v917, %v1073
        %v1214 = vsel %vm1196, %v919, %v1075
        %v1215 = vsel %vm1196, %v921, %v1077
        %v1216 = vsel %vm1196, %v923, %v1079
        %v1217 = vsel %vm1196, %v925, %v1081
        %v1218 = vsel %vm1196, %v927, %v1083
        %v1219 = vsel %vm1196, %v929, %v1085
        %v1220 = vsel %vm1196, %v931, %v1087
        %v1221 = vsel %vm1196, %v933, %v1089
        %v1222 = vsel %vm1196, %v935, %v1091
        %v1223 = vsel %vm1196, %v937, %v1093
        %v1224 = vsel %vm1196, %v939, %v1095
        %v1225 = vsel %vm1196, %v941, %v1097
        %v1226 = vsel %vm1196, %v943, %v1099
        %v1227 = vsel %vm1196, %v945, %v1101
        %v1228 = vsel %vm1196, %v947, %v1103
        %v1229 = vsel %vm1196, %v949, %v1105
        %v1230 = vsel %vm1196, %v951, %v1107
        %v1231 = vsel %vm1196, %v953, %v1109
        %v1232 = vsel %vm1196, %v955, %v1111
        %v1233 = vsel %vm1196, %v957, %v1113
        %v1234 = vsel %vm1196, %v959, %v1115
        %v1235 = vsel %vm1196, %v961, %v1117
        %v1236 = vsel %vm1196, %v963, %v1119
        %v1237 = vsel %vm1196, %v965, %v1121
        %v1238 = vsel %vm1196, %v967, %v1123
        %v1239 = vsel %vm1196, %v969, %v1125
        %v1240 = vsel %vm1196, %v971, %v1127
        %v1241 = vsel %vm1196, %v973, %v1129
        %v1242 = vsel %vm1196, %v975, %v1131
        %v1243 = vsel %vm1196, %v977, %v1133
        %v1244 = vsel %vm1196, %v979, %v1135
        %v1245 = vsel %vm1196, %v981, %v1137
        %v1246 = vsel %vm1196, %v983, %v1139
        %v1247 = vsel %vm1196, %v985, %v1141
        %v1248 = vsel %vm1196, %v987, %v1143
        %v1249 = vmul.f32 %v1197, 8.0
        %v1250 = vmul.f32 %v1198, 8.0
        %v1251 = vmul.f32 %v1199, 8.0
        %v1252 = vmul.f32 %v1200, 8.0
        %v1253 = vmul.f32 %v1201, 8.0
        %v1254 = vmul.f32 %v1202, 8.0
        %v1255 = vmul.f32 %v1203, 8.0
        %v1256 = vmul.f32 %v1204, 8.0
        %v1257 = vmul.f32 %v1205, 8.0
        %v1258 = vmul.f32 %v1206, 8.0
        %v1259 = vmul.f32 %v1207, 8.0
        %v1260 = vmul.f32 %v1208, 8.0
        %v1261 = vmul.f32 %v1209, 8.0
        %v1262 = vmul.f32 %v1210, 8.0
        %v1263 = vmul.f32 %v1211, 8.0
        %v1264 = vmul.f32 %v1212, 8.0
        %v1265 = vmul.f32 %v1213, 8.0
        %v1266 = vmul.f32 %v1214, 8.0
        %v1267 = vmul.f32 %v1215, 8.0
        %v1268 = vmul.f32 %v1216, 8.0
        %v1269 = vmul.f32 %v1217, 8.0
        %v1270 = vmul.f32 %v1218, 8.0
        %v1271 = vmul.f32 %v1219, 8.0
        %v1272 = vmul.f32 %v1220, 8.0
        %v1273 = vmul.f32 %v1221, 8.0
        %v1274 = vmul.f32 %v1222, 8.0
        %v1275 = vmul.f32 %v1223, 8.0
        %v1276 = vmul.f32 %v1224, 8.0
        %v1277 = vmul.f32 %v1225, 8.0
        %v1278 = vmul.f32 %v1226, 8.0
        %v1279 = vmul.f32 %v1227, 8.0
        %v1280 = vmul.f32 %v1228, 8.0
        %v1281 = vmul.f32 %v1229, 8.0
        %v1282 = vmul.f32 %v1230, 8.0
        %v1283 = vmul.f32 %v1231, 8.0
        %v1284 = vmul.f32 %v1232, 8.0
        %v1285 = vmul.f32 %v1233, 8.0
        %v1286 = vmul.f32 %v1234, 8.0
        %v1287 = vmul.f32 %v1235, 8.0
        %v1288 = vmul.f32 %v1236, 8.0
        %v1289 = vmul.f32 %v1237, 8.0
        %v1290 = vmul.f32 %v1238, 8.0
        %v1291 = vmul.f32 %v1239, 8.0
        %v1292 = vmul.f32 %v1240, 8.0
        %v1293 = vmul.f32 %v1241, 8.0
        %v1294 = vmul.f32 %v1242, 8.0
        %v1295 = vmul.f32 %v1243, 8.0
        %v1296 = vmul.f32 %v1244, 8.0
        %v1297 = vmul.f32 %v1245, 8.0
        %v1298 = vmul.f32 %v1246, 8.0
        %v1299 = vmul.f32 %v1247, 8.0
        %v1300 = vmul.f32 %v1248, 8.0
        %v1301 = vsub.f32 %v832, %v1249
        %v1302 = vsub.f32 %v833, %v1250
        %v1303 = vsub.f32 %v834, %v1251
        %v1304 = vsub.f32 %v835, %v1252
        %v1305 = vsub.f32 %v836, %v1253
        %v1306 = vsub.f32 %v837, %v1254
        %v1307 = vsub.f32 %v838, %v1255
        %v1308 = vsub.f32 %v839, %v1256
        %v1309 = vsub.f32 %v840, %v1257
        %v1310 = vsub.f32 %v841, %v1258
        %v1311 = vsub.f32 %v842, %v1259
        %v1312 = vsub.f32 %v843, %v1260
        %v1313 = vsub.f32 %v844, %v1261
        %v1314 = vsub.f32 %v845, %v1262
        %v1315 = vsub.f32 %v846, %v1263
        %v1316 = vsub.f32 %v847, %v1264
        %v1317 = vsub.f32 %v848, %v1265
        %v1318 = vsub.f32 %v849, %v1266
        %v1319 = vsub.f32 %v850, %v1267
        %v1320 = vsub.f32 %v851, %v1268
        %v1321 = vsub.f32 %v852, %v1269
        %v1322 = vsub.f32 %v853, %v1270
        %v1323 = vsub.f32 %v854, %v1271
        %v1324 = vsub.f32 %v855, %v1272
        %v1325 = vsub.f32 %v856, %v1273
        %v1326 = vsub.f32 %v857, %v1274
        %v1327 = vsub.f32 %v858, %v1275
        %v1328 = vsub.f32 %v859, %v1276
        %v1329 = vsub.f32 %v860, %v1277
        %v1330 = vsub.f32 %v861, %v1278
        %v1331 = vsub.f32 %v862, %v1279
        %v1332 = vsub.f32 %v863, %v1280
        %v1333 = vsub.f32 %v864, %v1281
        %v1334 = vsub.f32 %v865, %v1282
        %v1335 = vsub.f32 %v866, %v1283
        %v1336 = vsub.f32 %v867, %v1284
        %v1337 = vsub.f32 %v868, %v1285
        %v1338 = vsub.f32 %v869, %v1286
        %v1339 = vsub.f32 %v870, %v1287
        %v1340 = vsub.f32 %v871, %v1288
        %v1341 = vsub.f32 %v872, %v1289
        %v1342 = vsub.f32 %v873, %v1290
        %v1343 = vsub.f32 %v874, %v1291
        %v1344 = vsub.f32 %v875, %v1292
        %v1345 = vsub.f32 %v876, %v1293
        %v1346 = vsub.f32 %v877, %v1294
        %v1347 = vsub.f32 %v878, %v1295
        %v1348 = vsub.f32 %v879, %v1296
        %v1349 = vsub.f32 %v880, %v1297
        %v1350 = vsub.f32 %v881, %v1298
        %v1351 = vsub.f32 %v882, %v1299
        %v1352 = vsub.f32 %v883, %v1300
        %1353 = vrot.lane.b32.xlu0 %v363, 127
        %v1354 = vpop.permute.xlu0 %1353
        %1355 = vrot.lane.b32.xlu0 %v364, 127
        %v1356 = vpop.permute.xlu0 %1355
        %1357 = vrot.lane.b32.xlu0 %v365, 127
        %v1358 = vpop.permute.xlu0 %1357
        %1359 = vrot.lane.b32.xlu0 %v366, 127
        %v1360 = vpop.permute.xlu0 %1359
        %1361 = vrot.lane.b32.xlu0 %v367, 127
        %v1362 = vpop.permute.xlu0 %1361
        %1363 = vrot.lane.b32.xlu0 %v368, 127
        %v1364 = vpop.permute.xlu0 %1363
        %1365 = vrot.lane.b32.xlu0 %v369, 127
        %v1366 = vpop.permute.xlu0 %1365
        %1367 = vrot.lane.b32.xlu0 %v370, 127
        %v1368 = vpop.permute.xlu0 %1367
        %1369 = vrot.lane.b32.xlu0 %v371, 127
        %v1370 = vpop.permute.xlu0 %1369
        %1371 = vrot.lane.b32.xlu0 %v372, 127
        %v1372 = vpop.permute.xlu0 %1371
        %1373 = vrot.lane.b32.xlu0 %v373, 127
        %v1374 = vpop.permute.xlu0 %1373
        %1375 = vrot.lane.b32.xlu0 %v374, 127
        %v1376 = vpop.permute.xlu0 %1375
        %1377 = vrot.lane.b32.xlu0 %v375, 127
        %v1378 = vpop.permute.xlu0 %1377
        %1379 = vrot.lane.b32.xlu0 %v376, 127
        %v1380 = vpop.permute.xlu0 %1379
        %1381 = vrot.lane.b32.xlu0 %v377, 127
        %v1382 = vpop.permute.xlu0 %1381
        %1383 = vrot.lane.b32.xlu0 %v378, 127
        %v1384 = vpop.permute.xlu0 %1383
        %1385 = vrot.lane.b32.xlu0 %v379, 127
        %v1386 = vpop.permute.xlu0 %1385
        %1387 = vrot.lane.b32.xlu0 %v380, 127
        %v1388 = vpop.permute.xlu0 %1387
        %1389 = vrot.lane.b32.xlu0 %v381, 127
        %v1390 = vpop.permute.xlu0 %1389
        %1391 = vrot.lane.b32.xlu0 %v382, 127
        %v1392 = vpop.permute.xlu0 %1391
        %1393 = vrot.lane.b32.xlu0 %v383, 127
        %v1394 = vpop.permute.xlu0 %1393
        %1395 = vrot.lane.b32.xlu0 %v384, 127
        %v1396 = vpop.permute.xlu0 %1395
        %1397 = vrot.lane.b32.xlu0 %v385, 127
        %v1398 = vpop.permute.xlu0 %1397
        %1399 = vrot.lane.b32.xlu0 %v386, 127
        %v1400 = vpop.permute.xlu0 %1399
        %1401 = vrot.lane.b32.xlu0 %v387, 127
        %v1402 = vpop.permute.xlu0 %1401
        %1403 = vrot.lane.b32.xlu0 %v388, 127
        %v1404 = vpop.permute.xlu0 %1403
        %1405 = vrot.lane.b32.xlu0 %v389, 127
        %v1406 = vpop.permute.xlu0 %1405
        %1407 = vrot.lane.b32.xlu0 %v390, 127
        %v1408 = vpop.permute.xlu0 %1407
        %1409 = vrot.lane.b32.xlu0 %v391, 127
        %v1410 = vpop.permute.xlu0 %1409
        %1411 = vrot.lane.b32.xlu0 %v392, 127
        %v1412 = vpop.permute.xlu0 %1411
        %1413 = vrot.lane.b32.xlu0 %v393, 127
        %v1414 = vpop.permute.xlu0 %1413
        %1415 = vrot.lane.b32.xlu0 %v394, 127
        %v1416 = vpop.permute.xlu0 %1415
        %1417 = vrot.lane.b32.xlu0 %v395, 127
        %v1418 = vpop.permute.xlu0 %1417
        %1419 = vrot.lane.b32.xlu0 %v396, 127
        %v1420 = vpop.permute.xlu0 %1419
        %1421 = vrot.lane.b32.xlu0 %v397, 127
        %v1422 = vpop.permute.xlu0 %1421
        %1423 = vrot.lane.b32.xlu0 %v398, 127
        %v1424 = vpop.permute.xlu0 %1423
        %1425 = vrot.lane.b32.xlu0 %v399, 127
        %v1426 = vpop.permute.xlu0 %1425
        %1427 = vrot.lane.b32.xlu0 %v400, 127
        %v1428 = vpop.permute.xlu0 %1427
        %1429 = vrot.lane.b32.xlu0 %v401, 127
        %v1430 = vpop.permute.xlu0 %1429
        %1431 = vrot.lane.b32.xlu0 %v402, 127
        %v1432 = vpop.permute.xlu0 %1431
        %1433 = vrot.lane.b32.xlu0 %v403, 127
        %v1434 = vpop.permute.xlu0 %1433
        %1435 = vrot.lane.b32.xlu0 %v404, 127
        %v1436 = vpop.permute.xlu0 %1435
        %1437 = vrot.lane.b32.xlu0 %v405, 127
        %v1438 = vpop.permute.xlu0 %1437
        %1439 = vrot.lane.b32.xlu0 %v406, 127
        %v1440 = vpop.permute.xlu0 %1439
        %1441 = vrot.lane.b32.xlu0 %v407, 127
        %v1442 = vpop.permute.xlu0 %1441
        %1443 = vrot.lane.b32.xlu0 %v408, 127
        %v1444 = vpop.permute.xlu0 %1443
        %1445 = vrot.lane.b32.xlu0 %v409, 127
        %v1446 = vpop.permute.xlu0 %1445
        %1447 = vrot.lane.b32.xlu0 %v410, 127
        %v1448 = vpop.permute.xlu0 %1447
        %1449 = vrot.lane.b32.xlu0 %v411, 127
        %v1450 = vpop.permute.xlu0 %1449
        %1451 = vrot.lane.b32.xlu0 %v412, 127
        %v1452 = vpop.permute.xlu0 %1451
        %1453 = vrot.lane.b32.xlu0 %v413, 127
        %v1454 = vpop.permute.xlu0 %1453
        %1455 = vrot.lane.b32.xlu0 %v414, 127
        %v1456 = vpop.permute.xlu0 %1455
        %1509 = vrot.lane.b32.xlu0 %v363, 63
        %v1510 = vpop.permute.xlu0 %1509
        %1511 = vrot.lane.b32.xlu0 %v364, 63
        %v1512 = vpop.permute.xlu0 %1511
        %1513 = vrot.lane.b32.xlu0 %v365, 63
        %v1514 = vpop.permute.xlu0 %1513
        %1515 = vrot.lane.b32.xlu0 %v366, 63
        %v1516 = vpop.permute.xlu0 %1515
        %1517 = vrot.lane.b32.xlu0 %v367, 63
        %v1518 = vpop.permute.xlu0 %1517
        %1519 = vrot.lane.b32.xlu0 %v368, 63
        %v1520 = vpop.permute.xlu0 %1519
        %1521 = vrot.lane.b32.xlu0 %v369, 63
        %v1522 = vpop.permute.xlu0 %1521
        %1523 = vrot.lane.b32.xlu0 %v370, 63
        %v1524 = vpop.permute.xlu0 %1523
        %1525 = vrot.lane.b32.xlu0 %v371, 63
        %v1526 = vpop.permute.xlu0 %1525
        %1527 = vrot.lane.b32.xlu0 %v372, 63
        %v1528 = vpop.permute.xlu0 %1527
        %1529 = vrot.lane.b32.xlu0 %v373, 63
        %v1530 = vpop.permute.xlu0 %1529
        %1531 = vrot.lane.b32.xlu0 %v374, 63
        %v1532 = vpop.permute.xlu0 %1531
        %1533 = vrot.lane.b32.xlu0 %v375, 63
        %v1534 = vpop.permute.xlu0 %1533
        %1535 = vrot.lane.b32.xlu0 %v376, 63
        %v1536 = vpop.permute.xlu0 %1535
        %1537 = vrot.lane.b32.xlu0 %v377, 63
        %v1538 = vpop.permute.xlu0 %1537
        %1539 = vrot.lane.b32.xlu0 %v378, 63
        %v1540 = vpop.permute.xlu0 %1539
        %1541 = vrot.lane.b32.xlu0 %v379, 63
        %v1542 = vpop.permute.xlu0 %1541
        %1543 = vrot.lane.b32.xlu0 %v380, 63
        %v1544 = vpop.permute.xlu0 %1543
        %1545 = vrot.lane.b32.xlu0 %v381, 63
        %v1546 = vpop.permute.xlu0 %1545
        %1547 = vrot.lane.b32.xlu0 %v382, 63
        %v1548 = vpop.permute.xlu0 %1547
        %1549 = vrot.lane.b32.xlu0 %v383, 63
        %v1550 = vpop.permute.xlu0 %1549
        %1551 = vrot.lane.b32.xlu0 %v384, 63
        %v1552 = vpop.permute.xlu0 %1551
        %1553 = vrot.lane.b32.xlu0 %v385, 63
        %v1554 = vpop.permute.xlu0 %1553
        %1555 = vrot.lane.b32.xlu0 %v386, 63
        %v1556 = vpop.permute.xlu0 %1555
        %1557 = vrot.lane.b32.xlu0 %v387, 63
        %v1558 = vpop.permute.xlu0 %1557
        %1559 = vrot.lane.b32.xlu0 %v388, 63
        %v1560 = vpop.permute.xlu0 %1559
        %1561 = vrot.lane.b32.xlu0 %v389, 63
        %v1562 = vpop.permute.xlu0 %1561
        %1563 = vrot.lane.b32.xlu0 %v390, 63
        %v1564 = vpop.permute.xlu0 %1563
        %1565 = vrot.lane.b32.xlu0 %v391, 63
        %v1566 = vpop.permute.xlu0 %1565
        %1567 = vrot.lane.b32.xlu0 %v392, 63
        %v1568 = vpop.permute.xlu0 %1567
        %1569 = vrot.lane.b32.xlu0 %v393, 63
        %v1570 = vpop.permute.xlu0 %1569
        %1571 = vrot.lane.b32.xlu0 %v394, 63
        %v1572 = vpop.permute.xlu0 %1571
        %1573 = vrot.lane.b32.xlu0 %v395, 63
        %v1574 = vpop.permute.xlu0 %1573
        %1575 = vrot.lane.b32.xlu0 %v396, 63
        %v1576 = vpop.permute.xlu0 %1575
        %1577 = vrot.lane.b32.xlu0 %v397, 63
        %v1578 = vpop.permute.xlu0 %1577
        %1579 = vrot.lane.b32.xlu0 %v398, 63
        %v1580 = vpop.permute.xlu0 %1579
        %1581 = vrot.lane.b32.xlu0 %v399, 63
        %v1582 = vpop.permute.xlu0 %1581
        %1583 = vrot.lane.b32.xlu0 %v400, 63
        %v1584 = vpop.permute.xlu0 %1583
        %1585 = vrot.lane.b32.xlu0 %v401, 63
        %v1586 = vpop.permute.xlu0 %1585
        %1587 = vrot.lane.b32.xlu0 %v402, 63
        %v1588 = vpop.permute.xlu0 %1587
        %1589 = vrot.lane.b32.xlu0 %v403, 63
        %v1590 = vpop.permute.xlu0 %1589
        %1591 = vrot.lane.b32.xlu0 %v404, 63
        %v1592 = vpop.permute.xlu0 %1591
        %1593 = vrot.lane.b32.xlu0 %v405, 63
        %v1594 = vpop.permute.xlu0 %1593
        %1595 = vrot.lane.b32.xlu0 %v406, 63
        %v1596 = vpop.permute.xlu0 %1595
        %1597 = vrot.lane.b32.xlu0 %v407, 63
        %v1598 = vpop.permute.xlu0 %1597
        %1599 = vrot.lane.b32.xlu0 %v408, 63
        %v1600 = vpop.permute.xlu0 %1599
        %1601 = vrot.lane.b32.xlu0 %v409, 63
        %v1602 = vpop.permute.xlu0 %1601
        %1603 = vrot.lane.b32.xlu0 %v410, 63
        %v1604 = vpop.permute.xlu0 %1603
        %1605 = vrot.lane.b32.xlu0 %v411, 63
        %v1606 = vpop.permute.xlu0 %1605
        %1607 = vrot.lane.b32.xlu0 %v412, 63
        %v1608 = vpop.permute.xlu0 %1607
        %1609 = vrot.lane.b32.xlu0 %v413, 63
        %v1610 = vpop.permute.xlu0 %1609
        %1611 = vrot.lane.b32.xlu0 %v414, 63
        %v1612 = vpop.permute.xlu0 %1611
        %vm1665 = vcmask 515072
        %v1666 = vsel %vm1665, %v1354, %v1510
        %v1667 = vsel %vm1665, %v1356, %v1512
        %v1668 = vsel %vm1665, %v1358, %v1514
        %v1669 = vsel %vm1665, %v1360, %v1516
        %v1670 = vsel %vm1665, %v1362, %v1518
        %v1671 = vsel %vm1665, %v1364, %v1520
        %v1672 = vsel %vm1665, %v1366, %v1522
        %v1673 = vsel %vm1665, %v1368, %v1524
        %v1674 = vsel %vm1665, %v1370, %v1526
        %v1675 = vsel %vm1665, %v1372, %v1528
        %v1676 = vsel %vm1665, %v1374, %v1530
        %v1677 = vsel %vm1665, %v1376, %v1532
        %v1678 = vsel %vm1665, %v1378, %v1534
        %v1679 = vsel %vm1665, %v1380, %v1536
        %v1680 = vsel %vm1665, %v1382, %v1538
        %v1681 = vsel %vm1665, %v1384, %v1540
        %v1682 = vsel %vm1665, %v1386, %v1542
        %v1683 = vsel %vm1665, %v1388, %v1544
        %v1684 = vsel %vm1665, %v1390, %v1546
        %v1685 = vsel %vm1665, %v1392, %v1548
        %v1686 = vsel %vm1665, %v1394, %v1550
        %v1687 = vsel %vm1665, %v1396, %v1552
        %v1688 = vsel %vm1665, %v1398, %v1554
        %v1689 = vsel %vm1665, %v1400, %v1556
        %v1690 = vsel %vm1665, %v1402, %v1558
        %v1691 = vsel %vm1665, %v1404, %v1560
        %v1692 = vsel %vm1665, %v1406, %v1562
        %v1693 = vsel %vm1665, %v1408, %v1564
        %v1694 = vsel %vm1665, %v1410, %v1566
        %v1695 = vsel %vm1665, %v1412, %v1568
        %v1696 = vsel %vm1665, %v1414, %v1570
        %v1697 = vsel %vm1665, %v1416, %v1572
        %v1698 = vsel %vm1665, %v1418, %v1574
        %v1699 = vsel %vm1665, %v1420, %v1576
        %v1700 = vsel %vm1665, %v1422, %v1578
        %v1701 = vsel %vm1665, %v1424, %v1580
        %v1702 = vsel %vm1665, %v1426, %v1582
        %v1703 = vsel %vm1665, %v1428, %v1584
        %v1704 = vsel %vm1665, %v1430, %v1586
        %v1705 = vsel %vm1665, %v1432, %v1588
        %v1706 = vsel %vm1665, %v1434, %v1590
        %v1707 = vsel %vm1665, %v1436, %v1592
        %v1708 = vsel %vm1665, %v1438, %v1594
        %v1709 = vsel %vm1665, %v1440, %v1596
        %v1710 = vsel %vm1665, %v1442, %v1598
        %v1711 = vsel %vm1665, %v1444, %v1600
        %v1712 = vsel %vm1665, %v1446, %v1602
        %v1713 = vsel %vm1665, %v1448, %v1604
        %v1714 = vsel %vm1665, %v1450, %v1606
        %v1715 = vsel %vm1665, %v1452, %v1608
        %v1716 = vsel %vm1665, %v1454, %v1610
        %v1717 = vsel %vm1665, %v1456, %v1612
        %v1718 = vmul.f32 %v1666, 8.0
        %v1719 = vmul.f32 %v1667, 8.0
        %v1720 = vmul.f32 %v1668, 8.0
        %v1721 = vmul.f32 %v1669, 8.0
        %v1722 = vmul.f32 %v1670, 8.0
        %v1723 = vmul.f32 %v1671, 8.0
        %v1724 = vmul.f32 %v1672, 8.0
        %v1725 = vmul.f32 %v1673, 8.0
        %v1726 = vmul.f32 %v1674, 8.0
        %v1727 = vmul.f32 %v1675, 8.0
        %v1728 = vmul.f32 %v1676, 8.0
        %v1729 = vmul.f32 %v1677, 8.0
        %v1730 = vmul.f32 %v1678, 8.0
        %v1731 = vmul.f32 %v1679, 8.0
        %v1732 = vmul.f32 %v1680, 8.0
        %v1733 = vmul.f32 %v1681, 8.0
        %v1734 = vmul.f32 %v1682, 8.0
        %v1735 = vmul.f32 %v1683, 8.0
        %v1736 = vmul.f32 %v1684, 8.0
        %v1737 = vmul.f32 %v1685, 8.0
        %v1738 = vmul.f32 %v1686, 8.0
        %v1739 = vmul.f32 %v1687, 8.0
        %v1740 = vmul.f32 %v1688, 8.0
        %v1741 = vmul.f32 %v1689, 8.0
        %v1742 = vmul.f32 %v1690, 8.0
        %v1743 = vmul.f32 %v1691, 8.0
        %v1744 = vmul.f32 %v1692, 8.0
        %v1745 = vmul.f32 %v1693, 8.0
        %v1746 = vmul.f32 %v1694, 8.0
        %v1747 = vmul.f32 %v1695, 8.0
        %v1748 = vmul.f32 %v1696, 8.0
        %v1749 = vmul.f32 %v1697, 8.0
        %v1750 = vmul.f32 %v1698, 8.0
        %v1751 = vmul.f32 %v1699, 8.0
        %v1752 = vmul.f32 %v1700, 8.0
        %v1753 = vmul.f32 %v1701, 8.0
        %v1754 = vmul.f32 %v1702, 8.0
        %v1755 = vmul.f32 %v1703, 8.0
        %v1756 = vmul.f32 %v1704, 8.0
        %v1757 = vmul.f32 %v1705, 8.0
        %v1758 = vmul.f32 %v1706, 8.0
        %v1759 = vmul.f32 %v1707, 8.0
        %v1760 = vmul.f32 %v1708, 8.0
        %v1761 = vmul.f32 %v1709, 8.0
        %v1762 = vmul.f32 %v1710, 8.0
        %v1763 = vmul.f32 %v1711, 8.0
        %v1764 = vmul.f32 %v1712, 8.0
        %v1765 = vmul.f32 %v1713, 8.0
        %v1766 = vmul.f32 %v1714, 8.0
        %v1767 = vmul.f32 %v1715, 8.0
        %v1768 = vmul.f32 %v1716, 8.0
        %v1769 = vmul.f32 %v1717, 8.0
        %v1770 = vadd.f32 %v1301, %v1718
        %v1771 = vadd.f32 %v1302, %v1719
        %v1772 = vadd.f32 %v1303, %v1720
        %v1773 = vadd.f32 %v1304, %v1721
        %v1774 = vadd.f32 %v1305, %v1722
        %v1775 = vadd.f32 %v1306, %v1723
        %v1776 = vadd.f32 %v1307, %v1724
        %v1777 = vadd.f32 %v1308, %v1725
        %v1778 = vadd.f32 %v1309, %v1726
        %v1779 = vadd.f32 %v1310, %v1727
        %v1780 = vadd.f32 %v1311, %v1728
        %v1781 = vadd.f32 %v1312, %v1729
        %v1782 = vadd.f32 %v1313, %v1730
        %v1783 = vadd.f32 %v1314, %v1731
        %v1784 = vadd.f32 %v1315, %v1732
        %v1785 = vadd.f32 %v1316, %v1733
        %v1786 = vadd.f32 %v1317, %v1734
        %v1787 = vadd.f32 %v1318, %v1735
        %v1788 = vadd.f32 %v1319, %v1736
        %v1789 = vadd.f32 %v1320, %v1737
        %v1790 = vadd.f32 %v1321, %v1738
        %v1791 = vadd.f32 %v1322, %v1739
        %v1792 = vadd.f32 %v1323, %v1740
        %v1793 = vadd.f32 %v1324, %v1741
        %v1794 = vadd.f32 %v1325, %v1742
        %v1795 = vadd.f32 %v1326, %v1743
        %v1796 = vadd.f32 %v1327, %v1744
        %v1797 = vadd.f32 %v1328, %v1745
        %v1798 = vadd.f32 %v1329, %v1746
        %v1799 = vadd.f32 %v1330, %v1747
        %v1800 = vadd.f32 %v1331, %v1748
        %v1801 = vadd.f32 %v1332, %v1749
        %v1802 = vadd.f32 %v1333, %v1750
        %v1803 = vadd.f32 %v1334, %v1751
        %v1804 = vadd.f32 %v1335, %v1752
        %v1805 = vadd.f32 %v1336, %v1753
        %v1806 = vadd.f32 %v1337, %v1754
        %v1807 = vadd.f32 %v1338, %v1755
        %v1808 = vadd.f32 %v1339, %v1756
        %v1809 = vadd.f32 %v1340, %v1757
        %v1810 = vadd.f32 %v1341, %v1758
        %v1811 = vadd.f32 %v1342, %v1759
        %v1812 = vadd.f32 %v1343, %v1760
        %v1813 = vadd.f32 %v1344, %v1761
        %v1814 = vadd.f32 %v1345, %v1762
        %v1815 = vadd.f32 %v1346, %v1763
        %v1816 = vadd.f32 %v1347, %v1764
        %v1817 = vadd.f32 %v1348, %v1765
        %v1818 = vadd.f32 %v1349, %v1766
        %v1819 = vadd.f32 %v1350, %v1767
        %v1820 = vadd.f32 %v1351, %v1768
        %v1821 = vadd.f32 %v1352, %v1769
        %1822 = vrot.lane.b32.xlu0 %v363, 126
        %v1823 = vpop.permute.xlu0 %1822
        %1824 = vrot.lane.b32.xlu0 %v364, 126
        %v1825 = vpop.permute.xlu0 %1824
        %1826 = vrot.lane.b32.xlu0 %v365, 126
        %v1827 = vpop.permute.xlu0 %1826
        %1828 = vrot.lane.b32.xlu0 %v366, 126
        %v1829 = vpop.permute.xlu0 %1828
        %1830 = vrot.lane.b32.xlu0 %v367, 126
        %v1831 = vpop.permute.xlu0 %1830
        %1832 = vrot.lane.b32.xlu0 %v368, 126
        %v1833 = vpop.permute.xlu0 %1832
        %1834 = vrot.lane.b32.xlu0 %v369, 126
        %v1835 = vpop.permute.xlu0 %1834
        %1836 = vrot.lane.b32.xlu0 %v370, 126
        %v1837 = vpop.permute.xlu0 %1836
        %1838 = vrot.lane.b32.xlu0 %v371, 126
        %v1839 = vpop.permute.xlu0 %1838
        %1840 = vrot.lane.b32.xlu0 %v372, 126
        %v1841 = vpop.permute.xlu0 %1840
        %1842 = vrot.lane.b32.xlu0 %v373, 126
        %v1843 = vpop.permute.xlu0 %1842
        %1844 = vrot.lane.b32.xlu0 %v374, 126
        %v1845 = vpop.permute.xlu0 %1844
        %1846 = vrot.lane.b32.xlu0 %v375, 126
        %v1847 = vpop.permute.xlu0 %1846
        %1848 = vrot.lane.b32.xlu0 %v376, 126
        %v1849 = vpop.permute.xlu0 %1848
        %1850 = vrot.lane.b32.xlu0 %v377, 126
        %v1851 = vpop.permute.xlu0 %1850
        %1852 = vrot.lane.b32.xlu0 %v378, 126
        %v1853 = vpop.permute.xlu0 %1852
        %1854 = vrot.lane.b32.xlu0 %v379, 126
        %v1855 = vpop.permute.xlu0 %1854
        %1856 = vrot.lane.b32.xlu0 %v380, 126
        %v1857 = vpop.permute.xlu0 %1856
        %1858 = vrot.lane.b32.xlu0 %v381, 126
        %v1859 = vpop.permute.xlu0 %1858
        %1860 = vrot.lane.b32.xlu0 %v382, 126
        %v1861 = vpop.permute.xlu0 %1860
        %1862 = vrot.lane.b32.xlu0 %v383, 126
        %v1863 = vpop.permute.xlu0 %1862
        %1864 = vrot.lane.b32.xlu0 %v384, 126
        %v1865 = vpop.permute.xlu0 %1864
        %1866 = vrot.lane.b32.xlu0 %v385, 126
        %v1867 = vpop.permute.xlu0 %1866
        %1868 = vrot.lane.b32.xlu0 %v386, 126
        %v1869 = vpop.permute.xlu0 %1868
        %1870 = vrot.lane.b32.xlu0 %v387, 126
        %v1871 = vpop.permute.xlu0 %1870
        %1872 = vrot.lane.b32.xlu0 %v388, 126
        %v1873 = vpop.permute.xlu0 %1872
        %1874 = vrot.lane.b32.xlu0 %v389, 126
        %v1875 = vpop.permute.xlu0 %1874
        %1876 = vrot.lane.b32.xlu0 %v390, 126
        %v1877 = vpop.permute.xlu0 %1876
        %1878 = vrot.lane.b32.xlu0 %v391, 126
        %v1879 = vpop.permute.xlu0 %1878
        %1880 = vrot.lane.b32.xlu0 %v392, 126
        %v1881 = vpop.permute.xlu0 %1880
        %1882 = vrot.lane.b32.xlu0 %v393, 126
        %v1883 = vpop.permute.xlu0 %1882
        %1884 = vrot.lane.b32.xlu0 %v394, 126
        %v1885 = vpop.permute.xlu0 %1884
        %1886 = vrot.lane.b32.xlu0 %v395, 126
        %v1887 = vpop.permute.xlu0 %1886
        %1888 = vrot.lane.b32.xlu0 %v396, 126
        %v1889 = vpop.permute.xlu0 %1888
        %1890 = vrot.lane.b32.xlu0 %v397, 126
        %v1891 = vpop.permute.xlu0 %1890
        %1892 = vrot.lane.b32.xlu0 %v398, 126
        %v1893 = vpop.permute.xlu0 %1892
        %1894 = vrot.lane.b32.xlu0 %v399, 126
        %v1895 = vpop.permute.xlu0 %1894
        %1896 = vrot.lane.b32.xlu0 %v400, 126
        %v1897 = vpop.permute.xlu0 %1896
        %1898 = vrot.lane.b32.xlu0 %v401, 126
        %v1899 = vpop.permute.xlu0 %1898
        %1900 = vrot.lane.b32.xlu0 %v402, 126
        %v1901 = vpop.permute.xlu0 %1900
        %1902 = vrot.lane.b32.xlu0 %v403, 126
        %v1903 = vpop.permute.xlu0 %1902
        %1904 = vrot.lane.b32.xlu0 %v404, 126
        %v1905 = vpop.permute.xlu0 %1904
        %1906 = vrot.lane.b32.xlu0 %v405, 126
        %v1907 = vpop.permute.xlu0 %1906
        %1908 = vrot.lane.b32.xlu0 %v406, 126
        %v1909 = vpop.permute.xlu0 %1908
        %1910 = vrot.lane.b32.xlu0 %v407, 126
        %v1911 = vpop.permute.xlu0 %1910
        %1912 = vrot.lane.b32.xlu0 %v408, 126
        %v1913 = vpop.permute.xlu0 %1912
        %1914 = vrot.lane.b32.xlu0 %v409, 126
        %v1915 = vpop.permute.xlu0 %1914
        %1916 = vrot.lane.b32.xlu0 %v410, 126
        %v1917 = vpop.permute.xlu0 %1916
        %1918 = vrot.lane.b32.xlu0 %v411, 126
        %v1919 = vpop.permute.xlu0 %1918
        %1920 = vrot.lane.b32.xlu0 %v412, 126
        %v1921 = vpop.permute.xlu0 %1920
        %1922 = vrot.lane.b32.xlu0 %v413, 126
        %v1923 = vpop.permute.xlu0 %1922
        %1924 = vrot.lane.b32.xlu0 %v414, 126
        %v1925 = vpop.permute.xlu0 %1924
        %1978 = vrot.lane.b32.xlu0 %v363, 62
        %v1979 = vpop.permute.xlu0 %1978
        %1980 = vrot.lane.b32.xlu0 %v364, 62
        %v1981 = vpop.permute.xlu0 %1980
        %1982 = vrot.lane.b32.xlu0 %v365, 62
        %v1983 = vpop.permute.xlu0 %1982
        %1984 = vrot.lane.b32.xlu0 %v366, 62
        %v1985 = vpop.permute.xlu0 %1984
        %1986 = vrot.lane.b32.xlu0 %v367, 62
        %v1987 = vpop.permute.xlu0 %1986
        %1988 = vrot.lane.b32.xlu0 %v368, 62
        %v1989 = vpop.permute.xlu0 %1988
        %1990 = vrot.lane.b32.xlu0 %v369, 62
        %v1991 = vpop.permute.xlu0 %1990
        %1992 = vrot.lane.b32.xlu0 %v370, 62
        %v1993 = vpop.permute.xlu0 %1992
        %1994 = vrot.lane.b32.xlu0 %v371, 62
        %v1995 = vpop.permute.xlu0 %1994
        %1996 = vrot.lane.b32.xlu0 %v372, 62
        %v1997 = vpop.permute.xlu0 %1996
        %1998 = vrot.lane.b32.xlu0 %v373, 62
        %v1999 = vpop.permute.xlu0 %1998
        %2000 = vrot.lane.b32.xlu0 %v374, 62
        %v2001 = vpop.permute.xlu0 %2000
        %2002 = vrot.lane.b32.xlu0 %v375, 62
        %v2003 = vpop.permute.xlu0 %2002
        %2004 = vrot.lane.b32.xlu0 %v376, 62
        %v2005 = vpop.permute.xlu0 %2004
        %2006 = vrot.lane.b32.xlu0 %v377, 62
        %v2007 = vpop.permute.xlu0 %2006
        %2008 = vrot.lane.b32.xlu0 %v378, 62
        %v2009 = vpop.permute.xlu0 %2008
        %2010 = vrot.lane.b32.xlu0 %v379, 62
        %v2011 = vpop.permute.xlu0 %2010
        %2012 = vrot.lane.b32.xlu0 %v380, 62
        %v2013 = vpop.permute.xlu0 %2012
        %2014 = vrot.lane.b32.xlu0 %v381, 62
        %v2015 = vpop.permute.xlu0 %2014
        %2016 = vrot.lane.b32.xlu0 %v382, 62
        %v2017 = vpop.permute.xlu0 %2016
        %2018 = vrot.lane.b32.xlu0 %v383, 62
        %v2019 = vpop.permute.xlu0 %2018
        %2020 = vrot.lane.b32.xlu0 %v384, 62
        %v2021 = vpop.permute.xlu0 %2020
        %2022 = vrot.lane.b32.xlu0 %v385, 62
        %v2023 = vpop.permute.xlu0 %2022
        %2024 = vrot.lane.b32.xlu0 %v386, 62
        %v2025 = vpop.permute.xlu0 %2024
        %2026 = vrot.lane.b32.xlu0 %v387, 62
        %v2027 = vpop.permute.xlu0 %2026
        %2028 = vrot.lane.b32.xlu0 %v388, 62
        %v2029 = vpop.permute.xlu0 %2028
        %2030 = vrot.lane.b32.xlu0 %v389, 62
        %v2031 = vpop.permute.xlu0 %2030
        %2032 = vrot.lane.b32.xlu0 %v390, 62
        %v2033 = vpop.permute.xlu0 %2032
        %2034 = vrot.lane.b32.xlu0 %v391, 62
        %v2035 = vpop.permute.xlu0 %2034
        %2036 = vrot.lane.b32.xlu0 %v392, 62
        %v2037 = vpop.permute.xlu0 %2036
        %2038 = vrot.lane.b32.xlu0 %v393, 62
        %v2039 = vpop.permute.xlu0 %2038
        %2040 = vrot.lane.b32.xlu0 %v394, 62
        %v2041 = vpop.permute.xlu0 %2040
        %2042 = vrot.lane.b32.xlu0 %v395, 62
        %v2043 = vpop.permute.xlu0 %2042
        %2044 = vrot.lane.b32.xlu0 %v396, 62
        %v2045 = vpop.permute.xlu0 %2044
        %2046 = vrot.lane.b32.xlu0 %v397, 62
        %v2047 = vpop.permute.xlu0 %2046
        %2048 = vrot.lane.b32.xlu0 %v398, 62
        %v2049 = vpop.permute.xlu0 %2048
        %2050 = vrot.lane.b32.xlu0 %v399, 62
        %v2051 = vpop.permute.xlu0 %2050
        %2052 = vrot.lane.b32.xlu0 %v400, 62
        %v2053 = vpop.permute.xlu0 %2052
        %2054 = vrot.lane.b32.xlu0 %v401, 62
        %v2055 = vpop.permute.xlu0 %2054
        %2056 = vrot.lane.b32.xlu0 %v402, 62
        %v2057 = vpop.permute.xlu0 %2056
        %2058 = vrot.lane.b32.xlu0 %v403, 62
        %v2059 = vpop.permute.xlu0 %2058
        %2060 = vrot.lane.b32.xlu0 %v404, 62
        %v2061 = vpop.permute.xlu0 %2060
        %2062 = vrot.lane.b32.xlu0 %v405, 62
        %v2063 = vpop.permute.xlu0 %2062
        %2064 = vrot.lane.b32.xlu0 %v406, 62
        %v2065 = vpop.permute.xlu0 %2064
        %2066 = vrot.lane.b32.xlu0 %v407, 62
        %v2067 = vpop.permute.xlu0 %2066
        %2068 = vrot.lane.b32.xlu0 %v408, 62
        %v2069 = vpop.permute.xlu0 %2068
        %2070 = vrot.lane.b32.xlu0 %v409, 62
        %v2071 = vpop.permute.xlu0 %2070
        %2072 = vrot.lane.b32.xlu0 %v410, 62
        %v2073 = vpop.permute.xlu0 %2072
        %2074 = vrot.lane.b32.xlu0 %v411, 62
        %v2075 = vpop.permute.xlu0 %2074
        %2076 = vrot.lane.b32.xlu0 %v412, 62
        %v2077 = vpop.permute.xlu0 %2076
        %2078 = vrot.lane.b32.xlu0 %v413, 62
        %v2079 = vpop.permute.xlu0 %2078
        %2080 = vrot.lane.b32.xlu0 %v414, 62
        %v2081 = vpop.permute.xlu0 %2080
        %vm2134 = vcmask 506880
        %v2135 = vsel %vm2134, %v1823, %v1979
        %v2136 = vsel %vm2134, %v1825, %v1981
        %v2137 = vsel %vm2134, %v1827, %v1983
        %v2138 = vsel %vm2134, %v1829, %v1985
        %v2139 = vsel %vm2134, %v1831, %v1987
        %v2140 = vsel %vm2134, %v1833, %v1989
        %v2141 = vsel %vm2134, %v1835, %v1991
        %v2142 = vsel %vm2134, %v1837, %v1993
        %v2143 = vsel %vm2134, %v1839, %v1995
        %v2144 = vsel %vm2134, %v1841, %v1997
        %v2145 = vsel %vm2134, %v1843, %v1999
        %v2146 = vsel %vm2134, %v1845, %v2001
        %v2147 = vsel %vm2134, %v1847, %v2003
        %v2148 = vsel %vm2134, %v1849, %v2005
        %v2149 = vsel %vm2134, %v1851, %v2007
        %v2150 = vsel %vm2134, %v1853, %v2009
        %v2151 = vsel %vm2134, %v1855, %v2011
        %v2152 = vsel %vm2134, %v1857, %v2013
        %v2153 = vsel %vm2134, %v1859, %v2015
        %v2154 = vsel %vm2134, %v1861, %v2017
        %v2155 = vsel %vm2134, %v1863, %v2019
        %v2156 = vsel %vm2134, %v1865, %v2021
        %v2157 = vsel %vm2134, %v1867, %v2023
        %v2158 = vsel %vm2134, %v1869, %v2025
        %v2159 = vsel %vm2134, %v1871, %v2027
        %v2160 = vsel %vm2134, %v1873, %v2029
        %v2161 = vsel %vm2134, %v1875, %v2031
        %v2162 = vsel %vm2134, %v1877, %v2033
        %v2163 = vsel %vm2134, %v1879, %v2035
        %v2164 = vsel %vm2134, %v1881, %v2037
        %v2165 = vsel %vm2134, %v1883, %v2039
        %v2166 = vsel %vm2134, %v1885, %v2041
        %v2167 = vsel %vm2134, %v1887, %v2043
        %v2168 = vsel %vm2134, %v1889, %v2045
        %v2169 = vsel %vm2134, %v1891, %v2047
        %v2170 = vsel %vm2134, %v1893, %v2049
        %v2171 = vsel %vm2134, %v1895, %v2051
        %v2172 = vsel %vm2134, %v1897, %v2053
        %v2173 = vsel %vm2134, %v1899, %v2055
        %v2174 = vsel %vm2134, %v1901, %v2057
        %v2175 = vsel %vm2134, %v1903, %v2059
        %v2176 = vsel %vm2134, %v1905, %v2061
        %v2177 = vsel %vm2134, %v1907, %v2063
        %v2178 = vsel %vm2134, %v1909, %v2065
        %v2179 = vsel %vm2134, %v1911, %v2067
        %v2180 = vsel %vm2134, %v1913, %v2069
        %v2181 = vsel %vm2134, %v1915, %v2071
        %v2182 = vsel %vm2134, %v1917, %v2073
        %v2183 = vsel %vm2134, %v1919, %v2075
        %v2184 = vsel %vm2134, %v1921, %v2077
        %v2185 = vsel %vm2134, %v1923, %v2079
        %v2186 = vsel %vm2134, %v1925, %v2081
        %v2187 = vsub.f32 %v1770, %v2135
        %v2188 = vsub.f32 %v1771, %v2136
        %v2189 = vsub.f32 %v1772, %v2137
        %v2190 = vsub.f32 %v1773, %v2138
        %v2191 = vsub.f32 %v1774, %v2139
        %v2192 = vsub.f32 %v1775, %v2140
        %v2193 = vsub.f32 %v1776, %v2141
        %v2194 = vsub.f32 %v1777, %v2142
        %v2195 = vsub.f32 %v1778, %v2143
        %v2196 = vsub.f32 %v1779, %v2144
        %v2197 = vsub.f32 %v1780, %v2145
        %v2198 = vsub.f32 %v1781, %v2146
        %v2199 = vsub.f32 %v1782, %v2147
        %v2200 = vsub.f32 %v1783, %v2148
        %v2201 = vsub.f32 %v1784, %v2149
        %v2202 = vsub.f32 %v1785, %v2150
        %v2203 = vsub.f32 %v1786, %v2151
        %v2204 = vsub.f32 %v1787, %v2152
        %v2205 = vsub.f32 %v1788, %v2153
        %v2206 = vsub.f32 %v1789, %v2154
        %v2207 = vsub.f32 %v1790, %v2155
        %v2208 = vsub.f32 %v1791, %v2156
        %v2209 = vsub.f32 %v1792, %v2157
        %v2210 = vsub.f32 %v1793, %v2158
        %v2211 = vsub.f32 %v1794, %v2159
        %v2212 = vsub.f32 %v1795, %v2160
        %v2213 = vsub.f32 %v1796, %v2161
        %v2214 = vsub.f32 %v1797, %v2162
        %v2215 = vsub.f32 %v1798, %v2163
        %v2216 = vsub.f32 %v1799, %v2164
        %v2217 = vsub.f32 %v1800, %v2165
        %v2218 = vsub.f32 %v1801, %v2166
        %v2219 = vsub.f32 %v1802, %v2167
        %v2220 = vsub.f32 %v1803, %v2168
        %v2221 = vsub.f32 %v1804, %v2169
        %v2222 = vsub.f32 %v1805, %v2170
        %v2223 = vsub.f32 %v1806, %v2171
        %v2224 = vsub.f32 %v1807, %v2172
        %v2225 = vsub.f32 %v1808, %v2173
        %v2226 = vsub.f32 %v1809, %v2174
        %v2227 = vsub.f32 %v1810, %v2175
        %v2228 = vsub.f32 %v1811, %v2176
        %v2229 = vsub.f32 %v1812, %v2177
        %v2230 = vsub.f32 %v1813, %v2178
        %v2231 = vsub.f32 %v1814, %v2179
        %v2232 = vsub.f32 %v1815, %v2180
        %v2233 = vsub.f32 %v1816, %v2181
        %v2234 = vsub.f32 %v1817, %v2182
        %v2235 = vsub.f32 %v1818, %v2183
        %v2236 = vsub.f32 %v1819, %v2184
        %v2237 = vsub.f32 %v1820, %v2185
        %v2238 = vsub.f32 %v1821, %v2186
        %v2239 = vld [vmem:[#allocation7] sm:$0xff]
        %v2240 = vld [vmem:[#allocation7 + $0x8] sm:$0xff]
        %v2241 = vld [vmem:[#allocation7 + $0x10] sm:$0xff]
        %v2242 = vld [vmem:[#allocation7 + $0x18] sm:$0xff]
        %v2243 = vmul.f32 %v2187, %v2239
        %v2244 = vmul.f32 %v2188, %v2240
        %v2245 = vmul.f32 %v2189, %v2241
        %v2246 = vmul.f32 %v2190, %v2242
        %v2247 = vmul.f32 %v2191, %v2239
        %v2248 = vmul.f32 %v2192, %v2240
        %v2249 = vmul.f32 %v2193, %v2241
        %v2250 = vmul.f32 %v2194, %v2242
        %v2251 = vmul.f32 %v2195, %v2239
        %v2252 = vmul.f32 %v2196, %v2240
        %v2253 = vmul.f32 %v2197, %v2241
        %v2254 = vmul.f32 %v2198, %v2242
        %v2255 = vmul.f32 %v2199, %v2239
        %v2256 = vmul.f32 %v2200, %v2240
        %v2257 = vmul.f32 %v2201, %v2241
        %v2258 = vmul.f32 %v2202, %v2242
        %v2259 = vmul.f32 %v2203, %v2239
        %v2260 = vmul.f32 %v2204, %v2240
        %v2261 = vmul.f32 %v2205, %v2241
        %v2262 = vmul.f32 %v2206, %v2242
        %v2263 = vmul.f32 %v2207, %v2239
        %v2264 = vmul.f32 %v2208, %v2240
        %v2265 = vmul.f32 %v2209, %v2241
        %v2266 = vmul.f32 %v2210, %v2242
        %v2267 = vmul.f32 %v2211, %v2239
        %v2268 = vmul.f32 %v2212, %v2240
        %v2269 = vmul.f32 %v2213, %v2241
        %v2270 = vmul.f32 %v2214, %v2242
        %v2271 = vmul.f32 %v2215, %v2239
        %v2272 = vmul.f32 %v2216, %v2240
        %v2273 = vmul.f32 %v2217, %v2241
        %v2274 = vmul.f32 %v2218, %v2242
        %v2275 = vmul.f32 %v2219, %v2239
        %v2276 = vmul.f32 %v2220, %v2240
        %v2277 = vmul.f32 %v2221, %v2241
        %v2278 = vmul.f32 %v2222, %v2242
        %v2279 = vmul.f32 %v2223, %v2239
        %v2280 = vmul.f32 %v2224, %v2240
        %v2281 = vmul.f32 %v2225, %v2241
        %v2282 = vmul.f32 %v2226, %v2242
        %v2283 = vmul.f32 %v2227, %v2239
        %v2284 = vmul.f32 %v2228, %v2240
        %v2285 = vmul.f32 %v2229, %v2241
        %v2286 = vmul.f32 %v2230, %v2242
        %v2287 = vmul.f32 %v2231, %v2239
        %v2288 = vmul.f32 %v2232, %v2240
        %v2289 = vmul.f32 %v2233, %v2241
        %v2290 = vmul.f32 %v2234, %v2242
        %v2291 = vmul.f32 %v2235, %v2239
        %v2292 = vmul.f32 %v2236, %v2240
        %v2293 = vmul.f32 %v2237, %v2241
        %v2294 = vmul.f32 %v2238, %v2242
        %v2308 = vrot.slane %v418, 6
        %v2309 = vrot.slane %v422, 6
        %v2310 = vrot.slane %v426, 6
        %v2311 = vrot.slane %v430, 6
        %v2312 = vrot.slane %v434, 6
        %v2313 = vrot.slane %v438, 6
        %v2314 = vrot.slane %v442, 6
        %v2315 = vrot.slane %v446, 6
        %v2316 = vrot.slane %v450, 6
        %v2317 = vrot.slane %v454, 6
        %v2318 = vrot.slane %v458, 6
        %v2319 = vrot.slane %v462, 6
        %v2320 = vrot.slane %v466, 6
        %vm2373 = vcmask 1041408
        %v2374 = vrot.slane %v415, 6
        %v2375 = vrot.slane %v416, 6
        %v2376 = vsel %vm2373, %v2374, %v2375
        %v2377 = vrot.slane %v417, 6
        %v2378 = vsel %vm2373, %v2375, %v2377
        %v2379 = vsel %vm2373, %v2377, %v2308
        %v2380 = vrot.slane %v419, 6
        %v2381 = vrot.slane %v420, 6
        %v2382 = vsel %vm2373, %v2380, %v2381
        %v2383 = vrot.slane %v421, 6
        %v2384 = vsel %vm2373, %v2381, %v2383
        %v2385 = vsel %vm2373, %v2383, %v2309
        %v2386 = vrot.slane %v423, 6
        %v2387 = vrot.slane %v424, 6
        %v2388 = vsel %vm2373, %v2386, %v2387
        %v2389 = vrot.slane %v425, 6
        %v2390 = vsel %vm2373, %v2387, %v2389
        %v2391 = vsel %vm2373, %v2389, %v2310
        %v2392 = vrot.slane %v427, 6
        %v2393 = vrot.slane %v428, 6
        %v2394 = vsel %vm2373, %v2392, %v2393
        %v2395 = vrot.slane %v429, 6
        %v2396 = vsel %vm2373, %v2393, %v2395
        %v2397 = vsel %vm2373, %v2395, %v2311
        %v2398 = vrot.slane %v431, 6
        %v2399 = vrot.slane %v432, 6
        %v2400 = vsel %vm2373, %v2398, %v2399
        %v2401 = vrot.slane %v433, 6
        %v2402 = vsel %vm2373, %v2399, %v2401
        %v2403 = vsel %vm2373, %v2401, %v2312
        %v2404 = vrot.slane %v435, 6
        %v2405 = vrot.slane %v436, 6
        %v2406 = vsel %vm2373, %v2404, %v2405
        %v2407 = vrot.slane %v437, 6
        %v2408 = vsel %vm2373, %v2405, %v2407
        %v2409 = vsel %vm2373, %v2407, %v2313
        %v2410 = vrot.slane %v439, 6
        %v2411 = vrot.slane %v440, 6
        %v2412 = vsel %vm2373, %v2410, %v2411
        %v2413 = vrot.slane %v441, 6
        %v2414 = vsel %vm2373, %v2411, %v2413
        %v2415 = vsel %vm2373, %v2413, %v2314
        %v2416 = vrot.slane %v443, 6
        %v2417 = vrot.slane %v444, 6
        %v2418 = vsel %vm2373, %v2416, %v2417
        %v2419 = vrot.slane %v445, 6
        %v2420 = vsel %vm2373, %v2417, %v2419
        %v2421 = vsel %vm2373, %v2419, %v2315
        %v2422 = vrot.slane %v447, 6
        %v2423 = vrot.slane %v448, 6
        %v2424 = vsel %vm2373, %v2422, %v2423
        %v2425 = vrot.slane %v449, 6
        %v2426 = vsel %vm2373, %v2423, %v2425
        %v2427 = vsel %vm2373, %v2425, %v2316
        %v2428 = vrot.slane %v451, 6
        %v2429 = vrot.slane %v452, 6
        %v2430 = vsel %vm2373, %v2428, %v2429
        %v2431 = vrot.slane %v453, 6
        %v2432 = vsel %vm2373, %v2429, %v2431
        %v2433 = vsel %vm2373, %v2431, %v2317
        %v2434 = vrot.slane %v455, 6
        %v2435 = vrot.slane %v456, 6
        %v2436 = vsel %vm2373, %v2434, %v2435
        %v2437 = vrot.slane %v457, 6
        %v2438 = vsel %vm2373, %v2435, %v2437
        %v2439 = vsel %vm2373, %v2437, %v2318
        %v2440 = vrot.slane %v459, 6
        %v2441 = vrot.slane %v460, 6
        %v2442 = vsel %vm2373, %v2440, %v2441
        %v2443 = vrot.slane %v461, 6
        %v2444 = vsel %vm2373, %v2441, %v2443
        %v2445 = vsel %vm2373, %v2443, %v2319
        %v2446 = vrot.slane %v463, 6
        %v2447 = vrot.slane %v464, 6
        %v2448 = vsel %vm2373, %v2446, %v2447
        %v2449 = vrot.slane %v465, 6
        %v2450 = vsel %vm2373, %v2447, %v2449
        %v2451 = vsel %vm2373, %v2449, %v2320
        %v2504 = vsel %vm2373, %v2308, %v2374
        %v2505 = vsel %vm2373, %v2309, %v2380
        %v2506 = vsel %vm2373, %v2310, %v2386
        %v2507 = vsel %vm2373, %v2311, %v2392
        %v2508 = vsel %vm2373, %v2312, %v2398
        %v2509 = vsel %vm2373, %v2313, %v2404
        %v2510 = vsel %vm2373, %v2314, %v2410
        %v2511 = vsel %vm2373, %v2315, %v2416
        %v2512 = vsel %vm2373, %v2316, %v2422
        %v2513 = vsel %vm2373, %v2317, %v2428
        %v2514 = vsel %vm2373, %v2318, %v2434
        %v2515 = vsel %vm2373, %v2319, %v2440
        %v2516 = vsel %vm2373, %v2320, %v2446
        %v2517 = vrot.slane %v418, 7
        %v2518 = vrot.slane %v422, 7
        %v2519 = vrot.slane %v426, 7
        %v2520 = vrot.slane %v430, 7
        %v2521 = vrot.slane %v434, 7
        %v2522 = vrot.slane %v438, 7
        %v2523 = vrot.slane %v442, 7
        %v2524 = vrot.slane %v446, 7
        %v2525 = vrot.slane %v450, 7
        %v2526 = vrot.slane %v454, 7
        %v2527 = vrot.slane %v458, 7
        %v2528 = vrot.slane %v462, 7
        %v2529 = vrot.slane %v466, 7
        %vm2543 = vcmask 1040384
        %v2544 = vrot.slane %v415, 7
        %v2545 = vrot.slane %v416, 7
        %v2546 = vsel %vm2543, %v2544, %v2545
        %v2547 = vrot.slane %v417, 7
        %v2548 = vsel %vm2543, %v2545, %v2547
        %v2549 = vsel %vm2543, %v2547, %v2517
        %v2550 = vrot.slane %v419, 7
        %v2551 = vrot.slane %v420, 7
        %v2552 = vsel %vm2543, %v2550, %v2551
        %v2553 = vrot.slane %v421, 7
        %v2554 = vsel %vm2543, %v2551, %v2553
        %v2555 = vsel %vm2543, %v2553, %v2518
        %v2556 = vrot.slane %v423, 7
        %v2557 = vrot.slane %v424, 7
        %v2558 = vsel %vm2543, %v2556, %v2557
        %v2559 = vrot.slane %v425, 7
        %v2560 = vsel %vm2543, %v2557, %v2559
        %v2561 = vsel %vm2543, %v2559, %v2519
        %v2562 = vrot.slane %v427, 7
        %v2563 = vrot.slane %v428, 7
        %v2564 = vsel %vm2543, %v2562, %v2563
        %v2565 = vrot.slane %v429, 7
        %v2566 = vsel %vm2543, %v2563, %v2565
        %v2567 = vsel %vm2543, %v2565, %v2520
        %v2568 = vrot.slane %v431, 7
        %v2569 = vrot.slane %v432, 7
        %v2570 = vsel %vm2543, %v2568, %v2569
        %v2571 = vrot.slane %v433, 7
        %v2572 = vsel %vm2543, %v2569, %v2571
        %v2573 = vsel %vm2543, %v2571, %v2521
        %v2574 = vrot.slane %v435, 7
        %v2575 = vrot.slane %v436, 7
        %v2576 = vsel %vm2543, %v2574, %v2575
        %v2577 = vrot.slane %v437, 7
        %v2578 = vsel %vm2543, %v2575, %v2577
        %v2579 = vsel %vm2543, %v2577, %v2522
        %v2580 = vrot.slane %v439, 7
        %v2581 = vrot.slane %v440, 7
        %v2582 = vsel %vm2543, %v2580, %v2581
        %v2583 = vrot.slane %v441, 7
        %v2584 = vsel %vm2543, %v2581, %v2583
        %v2585 = vsel %vm2543, %v2583, %v2523
        %v2586 = vrot.slane %v443, 7
        %v2587 = vrot.slane %v444, 7
        %v2588 = vsel %vm2543, %v2586, %v2587
        %v2589 = vrot.slane %v445, 7
        %v2590 = vsel %vm2543, %v2587, %v2589
        %v2591 = vsel %vm2543, %v2589, %v2524
        %v2592 = vrot.slane %v447, 7
        %v2593 = vrot.slane %v448, 7
        %v2594 = vsel %vm2543, %v2592, %v2593
        %v2595 = vrot.slane %v449, 7
        %v2596 = vsel %vm2543, %v2593, %v2595
        %v2597 = vsel %vm2543, %v2595, %v2525
        %v2598 = vrot.slane %v451, 7
        %v2599 = vrot.slane %v452, 7
        %v2600 = vsel %vm2543, %v2598, %v2599
        %v2601 = vrot.slane %v453, 7
        %v2602 = vsel %vm2543, %v2599, %v2601
        %v2603 = vsel %vm2543, %v2601, %v2526
        %v2604 = vrot.slane %v455, 7
        %v2605 = vrot.slane %v456, 7
        %v2606 = vsel %vm2543, %v2604, %v2605
        %v2607 = vrot.slane %v457, 7
        %v2608 = vsel %vm2543, %v2605, %v2607
        %v2609 = vsel %vm2543, %v2607, %v2527
        %v2610 = vrot.slane %v459, 7
        %v2611 = vrot.slane %v460, 7
        %v2612 = vsel %vm2543, %v2610, %v2611
        %v2613 = vrot.slane %v461, 7
        %v2614 = vsel %vm2543, %v2611, %v2613
        %v2615 = vsel %vm2543, %v2613, %v2528
        %v2616 = vrot.slane %v463, 7
        %v2617 = vrot.slane %v464, 7
        %v2618 = vsel %vm2543, %v2616, %v2617
        %v2619 = vrot.slane %v465, 7
        %v2620 = vsel %vm2543, %v2617, %v2619
        %v2621 = vsel %vm2543, %v2619, %v2529
        %v2674 = vsel %vm2543, %v2517, %v2544
        %v2675 = vsel %vm2543, %v2518, %v2550
        %v2676 = vsel %vm2543, %v2519, %v2556
        %v2677 = vsel %vm2543, %v2520, %v2562
        %v2678 = vsel %vm2543, %v2521, %v2568
        %v2679 = vsel %vm2543, %v2522, %v2574
        %v2680 = vsel %vm2543, %v2523, %v2580
        %v2681 = vsel %vm2543, %v2524, %v2586
        %v2682 = vsel %vm2543, %v2525, %v2592
        %v2683 = vsel %vm2543, %v2526, %v2598
        %v2684 = vsel %vm2543, %v2527, %v2604
        %v2685 = vsel %vm2543, %v2528, %v2610
        %v2686 = vsel %vm2543, %v2529, %v2616
        %vm2687 = vcmask 1046528
        %v2688 = vrot.slane %v415, 1
        %v2689 = vrot.slane %v416, 1
        %v2690 = vsel %vm2687, %v2688, %v2689
        %v2691 = vrot.slane %v417, 1
        %v2692 = vsel %vm2687, %v2689, %v2691
        %v2693 = vrot.slane %v418, 1
        %v2694 = vsel %vm2687, %v2691, %v2693
        %v2695 = vrot.slane %v419, 1
        %v2696 = vrot.slane %v420, 1
        %v2697 = vsel %vm2687, %v2695, %v2696
        %v2698 = vrot.slane %v421, 1
        %v2699 = vsel %vm2687, %v2696, %v2698
        %v2700 = vrot.slane %v422, 1
        %v2701 = vsel %vm2687, %v2698, %v2700
        %v2702 = vrot.slane %v423, 1
        %v2703 = vrot.slane %v424, 1
        %v2704 = vsel %vm2687, %v2702, %v2703
        %v2705 = vrot.slane %v425, 1
        %v2706 = vsel %vm2687, %v2703, %v2705
        %v2707 = vrot.slane %v426, 1
        %v2708 = vsel %vm2687, %v2705, %v2707
        %v2709 = vrot.slane %v427, 1
        %v2710 = vrot.slane %v428, 1
        %v2711 = vsel %vm2687, %v2709, %v2710
        %v2712 = vrot.slane %v429, 1
        %v2713 = vsel %vm2687, %v2710, %v2712
        %v2714 = vrot.slane %v430, 1
        %v2715 = vsel %vm2687, %v2712, %v2714
        %v2716 = vrot.slane %v431, 1
        %v2717 = vrot.slane %v432, 1
        %v2718 = vsel %vm2687, %v2716, %v2717
        %v2719 = vrot.slane %v433, 1
        %v2720 = vsel %vm2687, %v2717, %v2719
        %v2721 = vrot.slane %v434, 1
        %v2722 = vsel %vm2687, %v2719, %v2721
        %v2723 = vrot.slane %v435, 1
        %v2724 = vrot.slane %v436, 1
        %v2725 = vsel %vm2687, %v2723, %v2724
        %v2726 = vrot.slane %v437, 1
        %v2727 = vsel %vm2687, %v2724, %v2726
        %v2728 = vrot.slane %v438, 1
        %v2729 = vsel %vm2687, %v2726, %v2728
        %v2730 = vrot.slane %v439, 1
        %v2731 = vrot.slane %v440, 1
        %v2732 = vsel %vm2687, %v2730, %v2731
        %v2733 = vrot.slane %v441, 1
        %v2734 = vsel %vm2687, %v2731, %v2733
        %v2735 = vrot.slane %v442, 1
        %v2736 = vsel %vm2687, %v2733, %v2735
        %v2737 = vrot.slane %v443, 1
        %v2738 = vrot.slane %v444, 1
        %v2739 = vsel %vm2687, %v2737, %v2738
        %v2740 = vrot.slane %v445, 1
        %v2741 = vsel %vm2687, %v2738, %v2740
        %v2742 = vrot.slane %v446, 1
        %v2743 = vsel %vm2687, %v2740, %v2742
        %v2744 = vrot.slane %v447, 1
        %v2745 = vrot.slane %v448, 1
        %v2746 = vsel %vm2687, %v2744, %v2745
        %v2747 = vrot.slane %v449, 1
        %v2748 = vsel %vm2687, %v2745, %v2747
        %v2749 = vrot.slane %v450, 1
        %v2750 = vsel %vm2687, %v2747, %v2749
        %v2751 = vrot.slane %v451, 1
        %v2752 = vrot.slane %v452, 1
        %v2753 = vsel %vm2687, %v2751, %v2752
        %v2754 = vrot.slane %v453, 1
        %v2755 = vsel %vm2687, %v2752, %v2754
        %v2756 = vrot.slane %v454, 1
        %v2757 = vsel %vm2687, %v2754, %v2756
        %v2758 = vrot.slane %v455, 1
        %v2759 = vrot.slane %v456, 1
        %v2760 = vsel %vm2687, %v2758, %v2759
        %v2761 = vrot.slane %v457, 1
        %v2762 = vsel %vm2687, %v2759, %v2761
        %v2763 = vrot.slane %v458, 1
        %v2764 = vsel %vm2687, %v2761, %v2763
        %v2765 = vrot.slane %v459, 1
        %v2766 = vrot.slane %v460, 1
        %v2767 = vsel %vm2687, %v2765, %v2766
        %v2768 = vrot.slane %v461, 1
        %v2769 = vsel %vm2687, %v2766, %v2768
        %v2770 = vrot.slane %v462, 1
        %v2771 = vsel %vm2687, %v2768, %v2770
        %v2772 = vrot.slane %v463, 1
        %v2773 = vrot.slane %v464, 1
        %v2774 = vsel %vm2687, %v2772, %v2773
        %v2775 = vrot.slane %v465, 1
        %v2776 = vsel %vm2687, %v2773, %v2775
        %v2777 = vrot.slane %v466, 1
        %v2778 = vsel %vm2687, %v2775, %v2777
        %v2844 = vsel %vm2687, %v2693, %v2688
        %v2845 = vsel %vm2687, %v2700, %v2695
        %v2846 = vsel %vm2687, %v2707, %v2702
        %v2847 = vsel %vm2687, %v2714, %v2709
        %v2848 = vsel %vm2687, %v2721, %v2716
        %v2849 = vsel %vm2687, %v2728, %v2723
        %v2850 = vsel %vm2687, %v2735, %v2730
        %v2851 = vsel %vm2687, %v2742, %v2737
        %v2852 = vsel %vm2687, %v2749, %v2744
        %v2853 = vsel %vm2687, %v2756, %v2751
        %v2854 = vsel %vm2687, %v2763, %v2758
        %v2855 = vsel %vm2687, %v2770, %v2765
        %v2856 = vsel %vm2687, %v2777, %v2772
        %vm2857 = vcmask 1045504
        %v2858 = vrot.slane %v415, 2
        %v2859 = vrot.slane %v416, 2
        %v2860 = vsel %vm2857, %v2858, %v2859
        %v2861 = vrot.slane %v417, 2
        %v2862 = vsel %vm2857, %v2859, %v2861
        %v2863 = vrot.slane %v418, 2
        %v2864 = vsel %vm2857, %v2861, %v2863
        %v2865 = vrot.slane %v419, 2
        %v2866 = vrot.slane %v420, 2
        %v2867 = vsel %vm2857, %v2865, %v2866
        %v2868 = vrot.slane %v421, 2
        %v2869 = vsel %vm2857, %v2866, %v2868
        %v2870 = vrot.slane %v422, 2
        %v2871 = vsel %vm2857, %v2868, %v2870
        %v2872 = vrot.slane %v423, 2
        %v2873 = vrot.slane %v424, 2
        %v2874 = vsel %vm2857, %v2872, %v2873
        %v2875 = vrot.slane %v425, 2
        %v2876 = vsel %vm2857, %v2873, %v2875
        %v2877 = vrot.slane %v426, 2
        %v2878 = vsel %vm2857, %v2875, %v2877
        %v2879 = vrot.slane %v427, 2
        %v2880 = vrot.slane %v428, 2
        %v2881 = vsel %vm2857, %v2879, %v2880
        %v2882 = vrot.slane %v429, 2
        %v2883 = vsel %vm2857, %v2880, %v2882
        %v2884 = vrot.slane %v430, 2
        %v2885 = vsel %vm2857, %v2882, %v2884
        %v2886 = vrot.slane %v431, 2
        %v2887 = vrot.slane %v432, 2
        %v2888 = vsel %vm2857, %v2886, %v2887
        %v2889 = vrot.slane %v433, 2
        %v2890 = vsel %vm2857, %v2887, %v2889
        %v2891 = vrot.slane %v434, 2
        %v2892 = vsel %vm2857, %v2889, %v2891
        %v2893 = vrot.slane %v435, 2
        %v2894 = vrot.slane %v436, 2
        %v2895 = vsel %vm2857, %v2893, %v2894
        %v2896 = vrot.slane %v437, 2
        %v2897 = vsel %vm2857, %v2894, %v2896
        %v2898 = vrot.slane %v438, 2
        %v2899 = vsel %vm2857, %v2896, %v2898
        %v2900 = vrot.slane %v439, 2
        %v2901 = vrot.slane %v440, 2
        %v2902 = vsel %vm2857, %v2900, %v2901
        %v2903 = vrot.slane %v441, 2
        %v2904 = vsel %vm2857, %v2901, %v2903
        %v2905 = vrot.slane %v442, 2
        %v2906 = vsel %vm2857, %v2903, %v2905
        %v2907 = vrot.slane %v443, 2
        %v2908 = vrot.slane %v444, 2
        %v2909 = vsel %vm2857, %v2907, %v2908
        %v2910 = vrot.slane %v445, 2
        %v2911 = vsel %vm2857, %v2908, %v2910
        %v2912 = vrot.slane %v446, 2
        %v2913 = vsel %vm2857, %v2910, %v2912
        %v2914 = vrot.slane %v447, 2
        %v2915 = vrot.slane %v448, 2
        %v2916 = vsel %vm2857, %v2914, %v2915
        %v2917 = vrot.slane %v449, 2
        %v2918 = vsel %vm2857, %v2915, %v2917
        %v2919 = vrot.slane %v450, 2
        %v2920 = vsel %vm2857, %v2917, %v2919
        %v2921 = vrot.slane %v451, 2
        %v2922 = vrot.slane %v452, 2
        %v2923 = vsel %vm2857, %v2921, %v2922
        %v2924 = vrot.slane %v453, 2
        %v2925 = vsel %vm2857, %v2922, %v2924
        %v2926 = vrot.slane %v454, 2
        %v2927 = vsel %vm2857, %v2924, %v2926
        %v2928 = vrot.slane %v455, 2
        %v2929 = vrot.slane %v456, 2
        %v2930 = vsel %vm2857, %v2928, %v2929
        %v2931 = vrot.slane %v457, 2
        %v2932 = vsel %vm2857, %v2929, %v2931
        %v2933 = vrot.slane %v458, 2
        %v2934 = vsel %vm2857, %v2931, %v2933
        %v2935 = vrot.slane %v459, 2
        %v2936 = vrot.slane %v460, 2
        %v2937 = vsel %vm2857, %v2935, %v2936
        %v2938 = vrot.slane %v461, 2
        %v2939 = vsel %vm2857, %v2936, %v2938
        %v2940 = vrot.slane %v462, 2
        %v2941 = vsel %vm2857, %v2938, %v2940
        %v2942 = vrot.slane %v463, 2
        %v2943 = vrot.slane %v464, 2
        %v2944 = vsel %vm2857, %v2942, %v2943
        %v2945 = vrot.slane %v465, 2
        %v2946 = vsel %vm2857, %v2943, %v2945
        %v2947 = vrot.slane %v466, 2
        %v2948 = vsel %vm2857, %v2945, %v2947
        %v3014 = vsel %vm2857, %v2863, %v2858
        %v3015 = vsel %vm2857, %v2870, %v2865
        %v3016 = vsel %vm2857, %v2877, %v2872
        %v3017 = vsel %vm2857, %v2884, %v2879
        %v3018 = vsel %vm2857, %v2891, %v2886
        %v3019 = vsel %vm2857, %v2898, %v2893
        %v3020 = vsel %vm2857, %v2905, %v2900
        %v3021 = vsel %vm2857, %v2912, %v2907
        %v3022 = vsel %vm2857, %v2919, %v2914
        %v3023 = vsel %vm2857, %v2926, %v2921
        %v3024 = vsel %vm2857, %v2933, %v2928
        %v3025 = vsel %vm2857, %v2940, %v2935
        %v3026 = vsel %vm2857, %v2947, %v2942
        %v3027 = vsub.f32 0.0, %v2504
        %v3028 = vsub.f32 0.0, %v2376
        %v3029 = vsub.f32 0.0, %v2378
        %v3030 = vsub.f32 0.0, %v2379
        %v3031 = vsub.f32 0.0, %v2505
        %v3032 = vsub.f32 0.0, %v2382
        %v3033 = vsub.f32 0.0, %v2384
        %v3034 = vsub.f32 0.0, %v2385
        %v3035 = vsub.f32 0.0, %v2506
        %v3036 = vsub.f32 0.0, %v2388
        %v3037 = vsub.f32 0.0, %v2390
        %v3038 = vsub.f32 0.0, %v2391
        %v3039 = vsub.f32 0.0, %v2507
        %v3040 = vsub.f32 0.0, %v2394
        %v3041 = vsub.f32 0.0, %v2396
        %v3042 = vsub.f32 0.0, %v2397
        %v3043 = vsub.f32 0.0, %v2508
        %v3044 = vsub.f32 0.0, %v2400
        %v3045 = vsub.f32 0.0, %v2402
        %v3046 = vsub.f32 0.0, %v2403
        %v3047 = vsub.f32 0.0, %v2509
        %v3048 = vsub.f32 0.0, %v2406
        %v3049 = vsub.f32 0.0, %v2408
        %v3050 = vsub.f32 0.0, %v2409
        %v3051 = vsub.f32 0.0, %v2510
        %v3052 = vsub.f32 0.0, %v2412
        %v3053 = vsub.f32 0.0, %v2414
        %v3054 = vsub.f32 0.0, %v2415
        %v3055 = vsub.f32 0.0, %v2511
        %v3056 = vsub.f32 0.0, %v2418
        %v3057 = vsub.f32 0.0, %v2420
        %v3058 = vsub.f32 0.0, %v2421
        %v3059 = vsub.f32 0.0, %v2512
        %v3060 = vsub.f32 0.0, %v2424
        %v3061 = vsub.f32 0.0, %v2426
        %v3062 = vsub.f32 0.0, %v2427
        %v3063 = vsub.f32 0.0, %v2513
        %v3064 = vsub.f32 0.0, %v2430
        %v3065 = vsub.f32 0.0, %v2432
        %v3066 = vsub.f32 0.0, %v2433
        %v3067 = vsub.f32 0.0, %v2514
        %v3068 = vsub.f32 0.0, %v2436
        %v3069 = vsub.f32 0.0, %v2438
        %v3070 = vsub.f32 0.0, %v2439
        %v3071 = vsub.f32 0.0, %v2515
        %v3072 = vsub.f32 0.0, %v2442
        %v3073 = vsub.f32 0.0, %v2444
        %v3074 = vsub.f32 0.0, %v2445
        %v3075 = vsub.f32 0.0, %v2516
        %v3076 = vsub.f32 0.0, %v2448
        %v3077 = vsub.f32 0.0, %v2450
        %v3078 = vsub.f32 0.0, %v2451
        %v3079 = vmul.f32 %v2674, 8.0
        %v3080 = vmul.f32 %v2546, 8.0
        %v3081 = vmul.f32 %v2548, 8.0
        %v3082 = vmul.f32 %v2549, 8.0
        %v3083 = vmul.f32 %v2675, 8.0
        %v3084 = vmul.f32 %v2552, 8.0
        %v3085 = vmul.f32 %v2554, 8.0
        %v3086 = vmul.f32 %v2555, 8.0
        %v3087 = vmul.f32 %v2676, 8.0
        %v3088 = vmul.f32 %v2558, 8.0
        %v3089 = vmul.f32 %v2560, 8.0
        %v3090 = vmul.f32 %v2561, 8.0
        %v3091 = vmul.f32 %v2677, 8.0
        %v3092 = vmul.f32 %v2564, 8.0
        %v3093 = vmul.f32 %v2566, 8.0
        %v3094 = vmul.f32 %v2567, 8.0
        %v3095 = vmul.f32 %v2678, 8.0
        %v3096 = vmul.f32 %v2570, 8.0
        %v3097 = vmul.f32 %v2572, 8.0
        %v3098 = vmul.f32 %v2573, 8.0
        %v3099 = vmul.f32 %v2679, 8.0
        %v3100 = vmul.f32 %v2576, 8.0
        %v3101 = vmul.f32 %v2578, 8.0
        %v3102 = vmul.f32 %v2579, 8.0
        %v3103 = vmul.f32 %v2680, 8.0
        %v3104 = vmul.f32 %v2582, 8.0
        %v3105 = vmul.f32 %v2584, 8.0
        %v3106 = vmul.f32 %v2585, 8.0
        %v3107 = vmul.f32 %v2681, 8.0
        %v3108 = vmul.f32 %v2588, 8.0
        %v3109 = vmul.f32 %v2590, 8.0
        %v3110 = vmul.f32 %v2591, 8.0
        %v3111 = vmul.f32 %v2682, 8.0
        %v3112 = vmul.f32 %v2594, 8.0
        %v3113 = vmul.f32 %v2596, 8.0
        %v3114 = vmul.f32 %v2597, 8.0
        %v3115 = vmul.f32 %v2683, 8.0
        %v3116 = vmul.f32 %v2600, 8.0
        %v3117 = vmul.f32 %v2602, 8.0
        %v3118 = vmul.f32 %v2603, 8.0
        %v3119 = vmul.f32 %v2684, 8.0
        %v3120 = vmul.f32 %v2606, 8.0
        %v3121 = vmul.f32 %v2608, 8.0
        %v3122 = vmul.f32 %v2609, 8.0
        %v3123 = vmul.f32 %v2685, 8.0
        %v3124 = vmul.f32 %v2612, 8.0
        %v3125 = vmul.f32 %v2614, 8.0
        %v3126 = vmul.f32 %v2615, 8.0
        %v3127 = vmul.f32 %v2686, 8.0
        %v3128 = vmul.f32 %v2618, 8.0
        %v3129 = vmul.f32 %v2620, 8.0
        %v3130 = vmul.f32 %v2621, 8.0
        %v3131 = vadd.f32 %v3027, %v3079
        %v3132 = vadd.f32 %v3028, %v3080
        %v3133 = vadd.f32 %v3029, %v3081
        %v3134 = vadd.f32 %v3030, %v3082
        %v3135 = vadd.f32 %v3031, %v3083
        %v3136 = vadd.f32 %v3032, %v3084
        %v3137 = vadd.f32 %v3033, %v3085
        %v3138 = vadd.f32 %v3034, %v3086
        %v3139 = vadd.f32 %v3035, %v3087
        %v3140 = vadd.f32 %v3036, %v3088
        %v3141 = vadd.f32 %v3037, %v3089
        %v3142 = vadd.f32 %v3038, %v3090
        %v3143 = vadd.f32 %v3039, %v3091
        %v3144 = vadd.f32 %v3040, %v3092
        %v3145 = vadd.f32 %v3041, %v3093
        %v3146 = vadd.f32 %v3042, %v3094
        %v3147 = vadd.f32 %v3043, %v3095
        %v3148 = vadd.f32 %v3044, %v3096
        %v3149 = vadd.f32 %v3045, %v3097
        %v3150 = vadd.f32 %v3046, %v3098
        %v3151 = vadd.f32 %v3047, %v3099
        %v3152 = vadd.f32 %v3048, %v3100
        %v3153 = vadd.f32 %v3049, %v3101
        %v3154 = vadd.f32 %v3050, %v3102
        %v3155 = vadd.f32 %v3051, %v3103
        %v3156 = vadd.f32 %v3052, %v3104
        %v3157 = vadd.f32 %v3053, %v3105
        %v3158 = vadd.f32 %v3054, %v3106
        %v3159 = vadd.f32 %v3055, %v3107
        %v3160 = vadd.f32 %v3056, %v3108
        %v3161 = vadd.f32 %v3057, %v3109
        %v3162 = vadd.f32 %v3058, %v3110
        %v3163 = vadd.f32 %v3059, %v3111
        %v3164 = vadd.f32 %v3060, %v3112
        %v3165 = vadd.f32 %v3061, %v3113
        %v3166 = vadd.f32 %v3062, %v3114
        %v3167 = vadd.f32 %v3063, %v3115
        %v3168 = vadd.f32 %v3064, %v3116
        %v3169 = vadd.f32 %v3065, %v3117
        %v3170 = vadd.f32 %v3066, %v3118
        %v3171 = vadd.f32 %v3067, %v3119
        %v3172 = vadd.f32 %v3068, %v3120
        %v3173 = vadd.f32 %v3069, %v3121
        %v3174 = vadd.f32 %v3070, %v3122
        %v3175 = vadd.f32 %v3071, %v3123
        %v3176 = vadd.f32 %v3072, %v3124
        %v3177 = vadd.f32 %v3073, %v3125
        %v3178 = vadd.f32 %v3074, %v3126
        %v3179 = vadd.f32 %v3075, %v3127
        %v3180 = vadd.f32 %v3076, %v3128
        %v3181 = vadd.f32 %v3077, %v3129
        %v3182 = vadd.f32 %v3078, %v3130
        %v3183 = vmul.f32 %v2690, 8.0
        %v3184 = vmul.f32 %v2692, 8.0
        %v3185 = vmul.f32 %v2694, 8.0
        %v3186 = vmul.f32 %v2844, 8.0
        %v3187 = vmul.f32 %v2697, 8.0
        %v3188 = vmul.f32 %v2699, 8.0
        %v3189 = vmul.f32 %v2701, 8.0
        %v3190 = vmul.f32 %v2845, 8.0
        %v3191 = vmul.f32 %v2704, 8.0
        %v3192 = vmul.f32 %v2706, 8.0
        %v3193 = vmul.f32 %v2708, 8.0
        %v3194 = vmul.f32 %v2846, 8.0
        %v3195 = vmul.f32 %v2711, 8.0
        %v3196 = vmul.f32 %v2713, 8.0
        %v3197 = vmul.f32 %v2715, 8.0
        %v3198 = vmul.f32 %v2847, 8.0
        %v3199 = vmul.f32 %v2718, 8.0
        %v3200 = vmul.f32 %v2720, 8.0
        %v3201 = vmul.f32 %v2722, 8.0
        %v3202 = vmul.f32 %v2848, 8.0
        %v3203 = vmul.f32 %v2725, 8.0
        %v3204 = vmul.f32 %v2727, 8.0
        %v3205 = vmul.f32 %v2729, 8.0
        %v3206 = vmul.f32 %v2849, 8.0
        %v3207 = vmul.f32 %v2732, 8.0
        %v3208 = vmul.f32 %v2734, 8.0
        %v3209 = vmul.f32 %v2736, 8.0
        %v3210 = vmul.f32 %v2850, 8.0
        %v3211 = vmul.f32 %v2739, 8.0
        %v3212 = vmul.f32 %v2741, 8.0
        %v3213 = vmul.f32 %v2743, 8.0
        %v3214 = vmul.f32 %v2851, 8.0
        %v3215 = vmul.f32 %v2746, 8.0
        %v3216 = vmul.f32 %v2748, 8.0
        %v3217 = vmul.f32 %v2750, 8.0
        %v3218 = vmul.f32 %v2852, 8.0
        %v3219 = vmul.f32 %v2753, 8.0
        %v3220 = vmul.f32 %v2755, 8.0
        %v3221 = vmul.f32 %v2757, 8.0
        %v3222 = vmul.f32 %v2853, 8.0
        %v3223 = vmul.f32 %v2760, 8.0
        %v3224 = vmul.f32 %v2762, 8.0
        %v3225 = vmul.f32 %v2764, 8.0
        %v3226 = vmul.f32 %v2854, 8.0
        %v3227 = vmul.f32 %v2767, 8.0
        %v3228 = vmul.f32 %v2769, 8.0
        %v3229 = vmul.f32 %v2771, 8.0
        %v3230 = vmul.f32 %v2855, 8.0
        %v3231 = vmul.f32 %v2774, 8.0
        %v3232 = vmul.f32 %v2776, 8.0
        %v3233 = vmul.f32 %v2778, 8.0
        %v3234 = vmul.f32 %v2856, 8.0
        %v3235 = vsub.f32 %v3131, %v3183
        %v3236 = vsub.f32 %v3132, %v3184
        %v3237 = vsub.f32 %v3133, %v3185
        %v3238 = vsub.f32 %v3134, %v3186
        %v3239 = vsub.f32 %v3135, %v3187
        %v3240 = vsub.f32 %v3136, %v3188
        %v3241 = vsub.f32 %v3137, %v3189
        %v3242 = vsub.f32 %v3138, %v3190
        %v3243 = vsub.f32 %v3139, %v3191
        %v3244 = vsub.f32 %v3140, %v3192
        %v3245 = vsub.f32 %v3141, %v3193
        %v3246 = vsub.f32 %v3142, %v3194
        %v3247 = vsub.f32 %v3143, %v3195
        %v3248 = vsub.f32 %v3144, %v3196
        %v3249 = vsub.f32 %v3145, %v3197
        %v3250 = vsub.f32 %v3146, %v3198
        %v3251 = vsub.f32 %v3147, %v3199
        %v3252 = vsub.f32 %v3148, %v3200
        %v3253 = vsub.f32 %v3149, %v3201
        %v3254 = vsub.f32 %v3150, %v3202
        %v3255 = vsub.f32 %v3151, %v3203
        %v3256 = vsub.f32 %v3152, %v3204
        %v3257 = vsub.f32 %v3153, %v3205
        %v3258 = vsub.f32 %v3154, %v3206
        %v3259 = vsub.f32 %v3155, %v3207
        %v3260 = vsub.f32 %v3156, %v3208
        %v3261 = vsub.f32 %v3157, %v3209
        %v3262 = vsub.f32 %v3158, %v3210
        %v3263 = vsub.f32 %v3159, %v3211
        %v3264 = vsub.f32 %v3160, %v3212
        %v3265 = vsub.f32 %v3161, %v3213
        %v3266 = vsub.f32 %v3162, %v3214
        %v3267 = vsub.f32 %v3163, %v3215
        %v3268 = vsub.f32 %v3164, %v3216
        %v3269 = vsub.f32 %v3165, %v3217
        %v3270 = vsub.f32 %v3166, %v3218
        %v3271 = vsub.f32 %v3167, %v3219
        %v3272 = vsub.f32 %v3168, %v3220
        %v3273 = vsub.f32 %v3169, %v3221
        %v3274 = vsub.f32 %v3170, %v3222
        %v3275 = vsub.f32 %v3171, %v3223
        %v3276 = vsub.f32 %v3172, %v3224
        %v3277 = vsub.f32 %v3173, %v3225
        %v3278 = vsub.f32 %v3174, %v3226
        %v3279 = vsub.f32 %v3175, %v3227
        %v3280 = vsub.f32 %v3176, %v3228
        %v3281 = vsub.f32 %v3177, %v3229
        %v3282 = vsub.f32 %v3178, %v3230
        %v3283 = vsub.f32 %v3179, %v3231
        %v3284 = vsub.f32 %v3180, %v3232
        %v3285 = vsub.f32 %v3181, %v3233
        %v3286 = vsub.f32 %v3182, %v3234
        %v3287 = vadd.f32 %v3235, %v2860
        %v3288 = vadd.f32 %v3236, %v2862
        %v3289 = vadd.f32 %v3237, %v2864
        %v3290 = vadd.f32 %v3238, %v3014
        %v3291 = vadd.f32 %v3239, %v2867
        %v3292 = vadd.f32 %v3240, %v2869
        %v3293 = vadd.f32 %v3241, %v2871
        %v3294 = vadd.f32 %v3242, %v3015
        %v3295 = vadd.f32 %v3243, %v2874
        %v3296 = vadd.f32 %v3244, %v2876
        %v3297 = vadd.f32 %v3245, %v2878
        %v3298 = vadd.f32 %v3246, %v3016
        %v3299 = vadd.f32 %v3247, %v2881
        %v3300 = vadd.f32 %v3248, %v2883
        %v3301 = vadd.f32 %v3249, %v2885
        %v3302 = vadd.f32 %v3250, %v3017
        %v3303 = vadd.f32 %v3251, %v2888
        %v3304 = vadd.f32 %v3252, %v2890
        %v3305 = vadd.f32 %v3253, %v2892
        %v3306 = vadd.f32 %v3254, %v3018
        %v3307 = vadd.f32 %v3255, %v2895
        %v3308 = vadd.f32 %v3256, %v2897
        %v3309 = vadd.f32 %v3257, %v2899
        %v3310 = vadd.f32 %v3258, %v3019
        %v3311 = vadd.f32 %v3259, %v2902
        %v3312 = vadd.f32 %v3260, %v2904
        %v3313 = vadd.f32 %v3261, %v2906
        %v3314 = vadd.f32 %v3262, %v3020
        %v3315 = vadd.f32 %v3263, %v2909
        %v3316 = vadd.f32 %v3264, %v2911
        %v3317 = vadd.f32 %v3265, %v2913
        %v3318 = vadd.f32 %v3266, %v3021
        %v3319 = vadd.f32 %v3267, %v2916
        %v3320 = vadd.f32 %v3268, %v2918
        %v3321 = vadd.f32 %v3269, %v2920
        %v3322 = vadd.f32 %v3270, %v3022
        %v3323 = vadd.f32 %v3271, %v2923
        %v3324 = vadd.f32 %v3272, %v2925
        %v3325 = vadd.f32 %v3273, %v2927
        %v3326 = vadd.f32 %v3274, %v3023
        %v3327 = vadd.f32 %v3275, %v2930
        %v3328 = vadd.f32 %v3276, %v2932
        %v3329 = vadd.f32 %v3277, %v2934
        %v3330 = vadd.f32 %v3278, %v3024
        %v3331 = vadd.f32 %v3279, %v2937
        %v3332 = vadd.f32 %v3280, %v2939
        %v3333 = vadd.f32 %v3281, %v2941
        %v3334 = vadd.f32 %v3282, %v3025
        %v3335 = vadd.f32 %v3283, %v2944
        %v3336 = vadd.f32 %v3284, %v2946
        %v3337 = vadd.f32 %v3285, %v2948
        %v3338 = vadd.f32 %v3286, %v3026
        %v3339 = vsub.f32 %v2860, %v415
        %v3340 = vsub.f32 %v2862, %v416
        %v3341 = vsub.f32 %v2864, %v417
        %v3342 = vsub.f32 %v3014, %v418
        %v3343 = vsub.f32 %v2867, %v419
        %v3344 = vsub.f32 %v2869, %v420
        %v3345 = vsub.f32 %v2871, %v421
        %v3346 = vsub.f32 %v3015, %v422
        %v3347 = vsub.f32 %v2874, %v423
        %v3348 = vsub.f32 %v2876, %v424
        %v3349 = vsub.f32 %v2878, %v425
        %v3350 = vsub.f32 %v3016, %v426
        %v3351 = vsub.f32 %v2881, %v427
        %v3352 = vsub.f32 %v2883, %v428
        %v3353 = vsub.f32 %v2885, %v429
        %v3354 = vsub.f32 %v3017, %v430
        %v3355 = vsub.f32 %v2888, %v431
        %v3356 = vsub.f32 %v2890, %v432
        %v3357 = vsub.f32 %v2892, %v433
        %v3358 = vsub.f32 %v3018, %v434
        %v3359 = vsub.f32 %v2895, %v435
        %v3360 = vsub.f32 %v2897, %v436
        %v3361 = vsub.f32 %v2899, %v437
        %v3362 = vsub.f32 %v3019, %v438
        %v3363 = vsub.f32 %v2902, %v439
        %v3364 = vsub.f32 %v2904, %v440
        %v3365 = vsub.f32 %v2906, %v441
        %v3366 = vsub.f32 %v3020, %v442
        %v3367 = vsub.f32 %v2909, %v443
        %v3368 = vsub.f32 %v2911, %v444
        %v3369 = vsub.f32 %v2913, %v445
        %v3370 = vsub.f32 %v3021, %v446
        %v3371 = vsub.f32 %v2916, %v447
        %v3372 = vsub.f32 %v2918, %v448
        %v3373 = vsub.f32 %v2920, %v449
        %v3374 = vsub.f32 %v3022, %v450
        %v3375 = vsub.f32 %v2923, %v451
        %v3376 = vsub.f32 %v2925, %v452
        %v3377 = vsub.f32 %v2927, %v453
        %v3378 = vsub.f32 %v3023, %v454
        %v3379 = vsub.f32 %v2930, %v455
        %v3380 = vsub.f32 %v2932, %v456
        %v3381 = vsub.f32 %v2934, %v457
        %v3382 = vsub.f32 %v3024, %v458
        %v3383 = vsub.f32 %v2937, %v459
        %v3384 = vsub.f32 %v2939, %v460
        %v3385 = vsub.f32 %v2941, %v461
        %v3386 = vsub.f32 %v3025, %v462
        %v3387 = vsub.f32 %v2944, %v463
        %v3388 = vsub.f32 %v2946, %v464
        %v3389 = vsub.f32 %v2948, %v465
        %v3390 = vsub.f32 %v3026, %v466
        %v3391 = vsel %vm347, %v3339, %v3287
        %v3392 = vsel %vm348, %v3340, %v3288
        %v3393 = vsel %vm349, %v3341, %v3289
        %v3394 = vsel %vm350, %v3342, %v3290
        %v3395 = vsel %vm347, %v3343, %v3291
        %v3396 = vsel %vm348, %v3344, %v3292
        %v3397 = vsel %vm349, %v3345, %v3293
        %v3398 = vsel %vm350, %v3346, %v3294
        %v3399 = vsel %vm347, %v3347, %v3295
        %v3400 = vsel %vm348, %v3348, %v3296
        %v3401 = vsel %vm349, %v3349, %v3297
        %v3402 = vsel %vm350, %v3350, %v3298
        %v3403 = vsel %vm347, %v3351, %v3299
        %v3404 = vsel %vm348, %v3352, %v3300
        %v3405 = vsel %vm349, %v3353, %v3301
        %v3406 = vsel %vm350, %v3354, %v3302
        %v3407 = vsel %vm347, %v3355, %v3303
        %v3408 = vsel %vm348, %v3356, %v3304
        %v3409 = vsel %vm349, %v3357, %v3305
        %v3410 = vsel %vm350, %v3358, %v3306
        %v3411 = vsel %vm347, %v3359, %v3307
        %v3412 = vsel %vm348, %v3360, %v3308
        %v3413 = vsel %vm349, %v3361, %v3309
        %v3414 = vsel %vm350, %v3362, %v3310
        %v3415 = vsel %vm347, %v3363, %v3311
        %v3416 = vsel %vm348, %v3364, %v3312
        %v3417 = vsel %vm349, %v3365, %v3313
        %v3418 = vsel %vm350, %v3366, %v3314
        %v3419 = vsel %vm347, %v3367, %v3315
        %v3420 = vsel %vm348, %v3368, %v3316
        %v3421 = vsel %vm349, %v3369, %v3317
        %v3422 = vsel %vm350, %v3370, %v3318
        %v3423 = vsel %vm347, %v3371, %v3319
        %v3424 = vsel %vm348, %v3372, %v3320
        %v3425 = vsel %vm349, %v3373, %v3321
        %v3426 = vsel %vm350, %v3374, %v3322
        %v3427 = vsel %vm347, %v3375, %v3323
        %v3428 = vsel %vm348, %v3376, %v3324
        %v3429 = vsel %vm349, %v3377, %v3325
        %v3430 = vsel %vm350, %v3378, %v3326
        %v3431 = vsel %vm347, %v3379, %v3327
        %v3432 = vsel %vm348, %v3380, %v3328
        %v3433 = vsel %vm349, %v3381, %v3329
        %v3434 = vsel %vm350, %v3382, %v3330
        %v3435 = vsel %vm347, %v3383, %v3331
        %v3436 = vsel %vm348, %v3384, %v3332
        %v3437 = vsel %vm349, %v3385, %v3333
        %v3438 = vsel %vm350, %v3386, %v3334
        %v3439 = vsel %vm347, %v3387, %v3335
        %v3440 = vsel %vm348, %v3388, %v3336
        %v3441 = vsel %vm349, %v3389, %v3337
        %v3442 = vsel %vm350, %v3390, %v3338
        %v3443 = vsub.f32 0.0, %v415
        %v3444 = vsub.f32 0.0, %v416
        %v3445 = vsub.f32 0.0, %v417
        %v3446 = vsub.f32 0.0, %v418
        %v3447 = vsub.f32 0.0, %v419
        %v3448 = vsub.f32 0.0, %v420
        %v3449 = vsub.f32 0.0, %v421
        %v3450 = vsub.f32 0.0, %v422
        %v3451 = vsub.f32 0.0, %v423
        %v3452 = vsub.f32 0.0, %v424
        %v3453 = vsub.f32 0.0, %v425
        %v3454 = vsub.f32 0.0, %v426
        %v3455 = vsub.f32 0.0, %v427
        %v3456 = vsub.f32 0.0, %v428
        %v3457 = vsub.f32 0.0, %v429
        %v3458 = vsub.f32 0.0, %v430
        %v3459 = vsub.f32 0.0, %v431
        %v3460 = vsub.f32 0.0, %v432
        %v3461 = vsub.f32 0.0, %v433
        %v3462 = vsub.f32 0.0, %v434
        %v3463 = vsub.f32 0.0, %v435
        %v3464 = vsub.f32 0.0, %v436
        %v3465 = vsub.f32 0.0, %v437
        %v3466 = vsub.f32 0.0, %v438
        %v3467 = vsub.f32 0.0, %v439
        %v3468 = vsub.f32 0.0, %v440
        %v3469 = vsub.f32 0.0, %v441
        %v3470 = vsub.f32 0.0, %v442
        %v3471 = vsub.f32 0.0, %v443
        %v3472 = vsub.f32 0.0, %v444
        %v3473 = vsub.f32 0.0, %v445
        %v3474 = vsub.f32 0.0, %v446
        %v3475 = vsub.f32 0.0, %v447
        %v3476 = vsub.f32 0.0, %v448
        %v3477 = vsub.f32 0.0, %v449
        %v3478 = vsub.f32 0.0, %v450
        %v3479 = vsub.f32 0.0, %v451
        %v3480 = vsub.f32 0.0, %v452
        %v3481 = vsub.f32 0.0, %v453
        %v3482 = vsub.f32 0.0, %v454
        %v3483 = vsub.f32 0.0, %v455
        %v3484 = vsub.f32 0.0, %v456
        %v3485 = vsub.f32 0.0, %v457
        %v3486 = vsub.f32 0.0, %v458
        %v3487 = vsub.f32 0.0, %v459
        %v3488 = vsub.f32 0.0, %v460
        %v3489 = vsub.f32 0.0, %v461
        %v3490 = vsub.f32 0.0, %v462
        %v3491 = vsub.f32 0.0, %v463
        %v3492 = vsub.f32 0.0, %v464
        %v3493 = vsub.f32 0.0, %v465
        %v3494 = vsub.f32 0.0, %v466
        %v3495 = vadd.f32 %v3443, %v3079
        %v3496 = vadd.f32 %v3444, %v3080
        %v3497 = vadd.f32 %v3445, %v3081
        %v3498 = vadd.f32 %v3446, %v3082
        %v3499 = vadd.f32 %v3447, %v3083
        %v3500 = vadd.f32 %v3448, %v3084
        %v3501 = vadd.f32 %v3449, %v3085
        %v3502 = vadd.f32 %v3450, %v3086
        %v3503 = vadd.f32 %v3451, %v3087
        %v3504 = vadd.f32 %v3452, %v3088
        %v3505 = vadd.f32 %v3453, %v3089
        %v3506 = vadd.f32 %v3454, %v3090
        %v3507 = vadd.f32 %v3455, %v3091
        %v3508 = vadd.f32 %v3456, %v3092
        %v3509 = vadd.f32 %v3457, %v3093
        %v3510 = vadd.f32 %v3458, %v3094
        %v3511 = vadd.f32 %v3459, %v3095
        %v3512 = vadd.f32 %v3460, %v3096
        %v3513 = vadd.f32 %v3461, %v3097
        %v3514 = vadd.f32 %v3462, %v3098
        %v3515 = vadd.f32 %v3463, %v3099
        %v3516 = vadd.f32 %v3464, %v3100
        %v3517 = vadd.f32 %v3465, %v3101
        %v3518 = vadd.f32 %v3466, %v3102
        %v3519 = vadd.f32 %v3467, %v3103
        %v3520 = vadd.f32 %v3468, %v3104
        %v3521 = vadd.f32 %v3469, %v3105
        %v3522 = vadd.f32 %v3470, %v3106
        %v3523 = vadd.f32 %v3471, %v3107
        %v3524 = vadd.f32 %v3472, %v3108
        %v3525 = vadd.f32 %v3473, %v3109
        %v3526 = vadd.f32 %v3474, %v3110
        %v3527 = vadd.f32 %v3475, %v3111
        %v3528 = vadd.f32 %v3476, %v3112
        %v3529 = vadd.f32 %v3477, %v3113
        %v3530 = vadd.f32 %v3478, %v3114
        %v3531 = vadd.f32 %v3479, %v3115
        %v3532 = vadd.f32 %v3480, %v3116
        %v3533 = vadd.f32 %v3481, %v3117
        %v3534 = vadd.f32 %v3482, %v3118
        %v3535 = vadd.f32 %v3483, %v3119
        %v3536 = vadd.f32 %v3484, %v3120
        %v3537 = vadd.f32 %v3485, %v3121
        %v3538 = vadd.f32 %v3486, %v3122
        %v3539 = vadd.f32 %v3487, %v3123
        %v3540 = vadd.f32 %v3488, %v3124
        %v3541 = vadd.f32 %v3489, %v3125
        %v3542 = vadd.f32 %v3490, %v3126
        %v3543 = vadd.f32 %v3491, %v3127
        %v3544 = vadd.f32 %v3492, %v3128
        %v3545 = vadd.f32 %v3493, %v3129
        %v3546 = vadd.f32 %v3494, %v3130
        %v3547 = vsub.f32 %v3495, %v3183
        %v3548 = vsub.f32 %v3496, %v3184
        %v3549 = vsub.f32 %v3497, %v3185
        %v3550 = vsub.f32 %v3498, %v3186
        %v3551 = vsub.f32 %v3499, %v3187
        %v3552 = vsub.f32 %v3500, %v3188
        %v3553 = vsub.f32 %v3501, %v3189
        %v3554 = vsub.f32 %v3502, %v3190
        %v3555 = vsub.f32 %v3503, %v3191
        %v3556 = vsub.f32 %v3504, %v3192
        %v3557 = vsub.f32 %v3505, %v3193
        %v3558 = vsub.f32 %v3506, %v3194
        %v3559 = vsub.f32 %v3507, %v3195
        %v3560 = vsub.f32 %v3508, %v3196
        %v3561 = vsub.f32 %v3509, %v3197
        %v3562 = vsub.f32 %v3510, %v3198
        %v3563 = vsub.f32 %v3511, %v3199
        %v3564 = vsub.f32 %v3512, %v3200
        %v3565 = vsub.f32 %v3513, %v3201
        %v3566 = vsub.f32 %v3514, %v3202
        %v3567 = vsub.f32 %v3515, %v3203
        %v3568 = vsub.f32 %v3516, %v3204
        %v3569 = vsub.f32 %v3517, %v3205
        %v3570 = vsub.f32 %v3518, %v3206
        %v3571 = vsub.f32 %v3519, %v3207
        %v3572 = vsub.f32 %v3520, %v3208
        %v3573 = vsub.f32 %v3521, %v3209
        %v3574 = vsub.f32 %v3522, %v3210
        %v3575 = vsub.f32 %v3523, %v3211
        %v3576 = vsub.f32 %v3524, %v3212
        %v3577 = vsub.f32 %v3525, %v3213
        %v3578 = vsub.f32 %v3526, %v3214
        %v3579 = vsub.f32 %v3527, %v3215
        %v3580 = vsub.f32 %v3528, %v3216
        %v3581 = vsub.f32 %v3529, %v3217
        %v3582 = vsub.f32 %v3530, %v3218
        %v3583 = vsub.f32 %v3531, %v3219
        %v3584 = vsub.f32 %v3532, %v3220
        %v3585 = vsub.f32 %v3533, %v3221
        %v3586 = vsub.f32 %v3534, %v3222
        %v3587 = vsub.f32 %v3535, %v3223
        %v3588 = vsub.f32 %v3536, %v3224
        %v3589 = vsub.f32 %v3537, %v3225
        %v3590 = vsub.f32 %v3538, %v3226
        %v3591 = vsub.f32 %v3539, %v3227
        %v3592 = vsub.f32 %v3540, %v3228
        %v3593 = vsub.f32 %v3541, %v3229
        %v3594 = vsub.f32 %v3542, %v3230
        %v3595 = vsub.f32 %v3543, %v3231
        %v3596 = vsub.f32 %v3544, %v3232
        %v3597 = vsub.f32 %v3545, %v3233
        %v3598 = vsub.f32 %v3546, %v3234
        %v3599 = vadd.f32 %v3547, %v2860
        %v3600 = vadd.f32 %v3548, %v2862
        %v3601 = vadd.f32 %v3549, %v2864
        %v3602 = vadd.f32 %v3550, %v3014
        %v3603 = vadd.f32 %v3551, %v2867
        %v3604 = vadd.f32 %v3552, %v2869
        %v3605 = vadd.f32 %v3553, %v2871
        %v3606 = vadd.f32 %v3554, %v3015
        %v3607 = vadd.f32 %v3555, %v2874
        %v3608 = vadd.f32 %v3556, %v2876
        %v3609 = vadd.f32 %v3557, %v2878
        %v3610 = vadd.f32 %v3558, %v3016
        %v3611 = vadd.f32 %v3559, %v2881
        %v3612 = vadd.f32 %v3560, %v2883
        %v3613 = vadd.f32 %v3561, %v2885
        %v3614 = vadd.f32 %v3562, %v3017
        %v3615 = vadd.f32 %v3563, %v2888
        %v3616 = vadd.f32 %v3564, %v2890
        %v3617 = vadd.f32 %v3565, %v2892
        %v3618 = vadd.f32 %v3566, %v3018
        %v3619 = vadd.f32 %v3567, %v2895
        %v3620 = vadd.f32 %v3568, %v2897
        %v3621 = vadd.f32 %v3569, %v2899
        %v3622 = vadd.f32 %v3570, %v3019
        %v3623 = vadd.f32 %v3571, %v2902
        %v3624 = vadd.f32 %v3572, %v2904
        %v3625 = vadd.f32 %v3573, %v2906
        %v3626 = vadd.f32 %v3574, %v3020
        %v3627 = vadd.f32 %v3575, %v2909
        %v3628 = vadd.f32 %v3576, %v2911
        %v3629 = vadd.f32 %v3577, %v2913
        %v3630 = vadd.f32 %v3578, %v3021
        %v3631 = vadd.f32 %v3579, %v2916
        %v3632 = vadd.f32 %v3580, %v2918
        %v3633 = vadd.f32 %v3581, %v2920
        %v3634 = vadd.f32 %v3582, %v3022
        %v3635 = vadd.f32 %v3583, %v2923
        %v3636 = vadd.f32 %v3584, %v2925
        %v3637 = vadd.f32 %v3585, %v2927
        %v3638 = vadd.f32 %v3586, %v3023
        %v3639 = vadd.f32 %v3587, %v2930
        %v3640 = vadd.f32 %v3588, %v2932
        %v3641 = vadd.f32 %v3589, %v2934
        %v3642 = vadd.f32 %v3590, %v3024
        %v3643 = vadd.f32 %v3591, %v2937
        %v3644 = vadd.f32 %v3592, %v2939
        %v3645 = vadd.f32 %v3593, %v2941
        %v3646 = vadd.f32 %v3594, %v3025
        %v3647 = vadd.f32 %v3595, %v2944
        %v3648 = vadd.f32 %v3596, %v2946
        %v3649 = vadd.f32 %v3597, %v2948
        %v3650 = vadd.f32 %v3598, %v3026
        %v3651 = vsel %vm351, %v3599, %v3391
        %v3652 = vsel %vm352, %v3600, %v3392
        %v3653 = vsel %vm353, %v3601, %v3393
        %v3654 = vsel %vm354, %v3602, %v3394
        %v3655 = vsel %vm351, %v3603, %v3395
        %v3656 = vsel %vm352, %v3604, %v3396
        %v3657 = vsel %vm353, %v3605, %v3397
        %v3658 = vsel %vm354, %v3606, %v3398
        %v3659 = vsel %vm351, %v3607, %v3399
        %v3660 = vsel %vm352, %v3608, %v3400
        %v3661 = vsel %vm353, %v3609, %v3401
        %v3662 = vsel %vm354, %v3610, %v3402
        %v3663 = vsel %vm351, %v3611, %v3403
        %v3664 = vsel %vm352, %v3612, %v3404
        %v3665 = vsel %vm353, %v3613, %v3405
        %v3666 = vsel %vm354, %v3614, %v3406
        %v3667 = vsel %vm351, %v3615, %v3407
        %v3668 = vsel %vm352, %v3616, %v3408
        %v3669 = vsel %vm353, %v3617, %v3409
        %v3670 = vsel %vm354, %v3618, %v3410
        %v3671 = vsel %vm351, %v3619, %v3411
        %v3672 = vsel %vm352, %v3620, %v3412
        %v3673 = vsel %vm353, %v3621, %v3413
        %v3674 = vsel %vm354, %v3622, %v3414
        %v3675 = vsel %vm351, %v3623, %v3415
        %v3676 = vsel %vm352, %v3624, %v3416
        %v3677 = vsel %vm353, %v3625, %v3417
        %v3678 = vsel %vm354, %v3626, %v3418
        %v3679 = vsel %vm351, %v3627, %v3419
        %v3680 = vsel %vm352, %v3628, %v3420
        %v3681 = vsel %vm353, %v3629, %v3421
        %v3682 = vsel %vm354, %v3630, %v3422
        %v3683 = vsel %vm351, %v3631, %v3423
        %v3684 = vsel %vm352, %v3632, %v3424
        %v3685 = vsel %vm353, %v3633, %v3425
        %v3686 = vsel %vm354, %v3634, %v3426
        %v3687 = vsel %vm351, %v3635, %v3427
        %v3688 = vsel %vm352, %v3636, %v3428
        %v3689 = vsel %vm353, %v3637, %v3429
        %v3690 = vsel %vm354, %v3638, %v3430
        %v3691 = vsel %vm351, %v3639, %v3431
        %v3692 = vsel %vm352, %v3640, %v3432
        %v3693 = vsel %vm353, %v3641, %v3433
        %v3694 = vsel %vm354, %v3642, %v3434
        %v3695 = vsel %vm351, %v3643, %v3435
        %v3696 = vsel %vm352, %v3644, %v3436
        %v3697 = vsel %vm353, %v3645, %v3437
        %v3698 = vsel %vm354, %v3646, %v3438
        %v3699 = vsel %vm351, %v3647, %v3439
        %v3700 = vsel %vm352, %v3648, %v3440
        %v3701 = vsel %vm353, %v3649, %v3441
        %v3702 = vsel %vm354, %v3650, %v3442
        %v3703 = vadd.f32 %v3235, %v415
        %v3704 = vadd.f32 %v3236, %v416
        %v3705 = vadd.f32 %v3237, %v417
        %v3706 = vadd.f32 %v3238, %v418
        %v3707 = vadd.f32 %v3239, %v419
        %v3708 = vadd.f32 %v3240, %v420
        %v3709 = vadd.f32 %v3241, %v421
        %v3710 = vadd.f32 %v3242, %v422
        %v3711 = vadd.f32 %v3243, %v423
        %v3712 = vadd.f32 %v3244, %v424
        %v3713 = vadd.f32 %v3245, %v425
        %v3714 = vadd.f32 %v3246, %v426
        %v3715 = vadd.f32 %v3247, %v427
        %v3716 = vadd.f32 %v3248, %v428
        %v3717 = vadd.f32 %v3249, %v429
        %v3718 = vadd.f32 %v3250, %v430
        %v3719 = vadd.f32 %v3251, %v431
        %v3720 = vadd.f32 %v3252, %v432
        %v3721 = vadd.f32 %v3253, %v433
        %v3722 = vadd.f32 %v3254, %v434
        %v3723 = vadd.f32 %v3255, %v435
        %v3724 = vadd.f32 %v3256, %v436
        %v3725 = vadd.f32 %v3257, %v437
        %v3726 = vadd.f32 %v3258, %v438
        %v3727 = vadd.f32 %v3259, %v439
        %v3728 = vadd.f32 %v3260, %v440
        %v3729 = vadd.f32 %v3261, %v441
        %v3730 = vadd.f32 %v3262, %v442
        %v3731 = vadd.f32 %v3263, %v443
        %v3732 = vadd.f32 %v3264, %v444
        %v3733 = vadd.f32 %v3265, %v445
        %v3734 = vadd.f32 %v3266, %v446
        %v3735 = vadd.f32 %v3267, %v447
        %v3736 = vadd.f32 %v3268, %v448
        %v3737 = vadd.f32 %v3269, %v449
        %v3738 = vadd.f32 %v3270, %v450
        %v3739 = vadd.f32 %v3271, %v451
        %v3740 = vadd.f32 %v3272, %v452
        %v3741 = vadd.f32 %v3273, %v453
        %v3742 = vadd.f32 %v3274, %v454
        %v3743 = vadd.f32 %v3275, %v455
        %v3744 = vadd.f32 %v3276, %v456
        %v3745 = vadd.f32 %v3277, %v457
        %v3746 = vadd.f32 %v3278, %v458
        %v3747 = vadd.f32 %v3279, %v459
        %v3748 = vadd.f32 %v3280, %v460
        %v3749 = vadd.f32 %v3281, %v461
        %v3750 = vadd.f32 %v3282, %v462
        %v3751 = vadd.f32 %v3283, %v463
        %v3752 = vadd.f32 %v3284, %v464
        %v3753 = vadd.f32 %v3285, %v465
        %v3754 = vadd.f32 %v3286, %v466
        %v3755 = vsel %vm355, %v3703, %v3651
        %v3756 = vsel %vm356, %v3704, %v3652
        %v3757 = vsel %vm357, %v3705, %v3653
        %v3758 = vsel %vm358, %v3706, %v3654
        %v3759 = vsel %vm355, %v3707, %v3655
        %v3760 = vsel %vm356, %v3708, %v3656
        %v3761 = vsel %vm357, %v3709, %v3657
        %v3762 = vsel %vm358, %v3710, %v3658
        %v3763 = vsel %vm355, %v3711, %v3659
        %v3764 = vsel %vm356, %v3712, %v3660
        %v3765 = vsel %vm357, %v3713, %v3661
        %v3766 = vsel %vm358, %v3714, %v3662
        %v3767 = vsel %vm355, %v3715, %v3663
        %v3768 = vsel %vm356, %v3716, %v3664
        %v3769 = vsel %vm357, %v3717, %v3665
        %v3770 = vsel %vm358, %v3718, %v3666
        %v3771 = vsel %vm355, %v3719, %v3667
        %v3772 = vsel %vm356, %v3720, %v3668
        %v3773 = vsel %vm357, %v3721, %v3669
        %v3774 = vsel %vm358, %v3722, %v3670
        %v3775 = vsel %vm355, %v3723, %v3671
        %v3776 = vsel %vm356, %v3724, %v3672
        %v3777 = vsel %vm357, %v3725, %v3673
        %v3778 = vsel %vm358, %v3726, %v3674
        %v3779 = vsel %vm355, %v3727, %v3675
        %v3780 = vsel %vm356, %v3728, %v3676
        %v3781 = vsel %vm357, %v3729, %v3677
        %v3782 = vsel %vm358, %v3730, %v3678
        %v3783 = vsel %vm355, %v3731, %v3679
        %v3784 = vsel %vm356, %v3732, %v3680
        %v3785 = vsel %vm357, %v3733, %v3681
        %v3786 = vsel %vm358, %v3734, %v3682
        %v3787 = vsel %vm355, %v3735, %v3683
        %v3788 = vsel %vm356, %v3736, %v3684
        %v3789 = vsel %vm357, %v3737, %v3685
        %v3790 = vsel %vm358, %v3738, %v3686
        %v3791 = vsel %vm355, %v3739, %v3687
        %v3792 = vsel %vm356, %v3740, %v3688
        %v3793 = vsel %vm357, %v3741, %v3689
        %v3794 = vsel %vm358, %v3742, %v3690
        %v3795 = vsel %vm355, %v3743, %v3691
        %v3796 = vsel %vm356, %v3744, %v3692
        %v3797 = vsel %vm357, %v3745, %v3693
        %v3798 = vsel %vm358, %v3746, %v3694
        %v3799 = vsel %vm355, %v3747, %v3695
        %v3800 = vsel %vm356, %v3748, %v3696
        %v3801 = vsel %vm357, %v3749, %v3697
        %v3802 = vsel %vm358, %v3750, %v3698
        %v3803 = vsel %vm355, %v3751, %v3699
        %v3804 = vsel %vm356, %v3752, %v3700
        %v3805 = vsel %vm357, %v3753, %v3701
        %v3806 = vsel %vm358, %v3754, %v3702
        %v3807 = vsub.f32 %v415, %v2504
        %v3808 = vsub.f32 %v416, %v2376
        %v3809 = vsub.f32 %v417, %v2378
        %v3810 = vsub.f32 %v418, %v2379
        %v3811 = vsub.f32 %v419, %v2505
        %v3812 = vsub.f32 %v420, %v2382
        %v3813 = vsub.f32 %v421, %v2384
        %v3814 = vsub.f32 %v422, %v2385
        %v3815 = vsub.f32 %v423, %v2506
        %v3816 = vsub.f32 %v424, %v2388
        %v3817 = vsub.f32 %v425, %v2390
        %v3818 = vsub.f32 %v426, %v2391
        %v3819 = vsub.f32 %v427, %v2507
        %v3820 = vsub.f32 %v428, %v2394
        %v3821 = vsub.f32 %v429, %v2396
        %v3822 = vsub.f32 %v430, %v2397
        %v3823 = vsub.f32 %v431, %v2508
        %v3824 = vsub.f32 %v432, %v2400
        %v3825 = vsub.f32 %v433, %v2402
        %v3826 = vsub.f32 %v434, %v2403
        %v3827 = vsub.f32 %v435, %v2509
        %v3828 = vsub.f32 %v436, %v2406
        %v3829 = vsub.f32 %v437, %v2408
        %v3830 = vsub.f32 %v438, %v2409
        %v3831 = vsub.f32 %v439, %v2510
        %v3832 = vsub.f32 %v440, %v2412
        %v3833 = vsub.f32 %v441, %v2414
        %v3834 = vsub.f32 %v442, %v2415
        %v3835 = vsub.f32 %v443, %v2511
        %v3836 = vsub.f32 %v444, %v2418
        %v3837 = vsub.f32 %v445, %v2420
        %v3838 = vsub.f32 %v446, %v2421
        %v3839 = vsub.f32 %v447, %v2512
        %v3840 = vsub.f32 %v448, %v2424
        %v3841 = vsub.f32 %v449, %v2426
        %v3842 = vsub.f32 %v450, %v2427
        %v3843 = vsub.f32 %v451, %v2513
        %v3844 = vsub.f32 %v452, %v2430
        %v3845 = vsub.f32 %v453, %v2432
        %v3846 = vsub.f32 %v454, %v2433
        %v3847 = vsub.f32 %v455, %v2514
        %v3848 = vsub.f32 %v456, %v2436
        %v3849 = vsub.f32 %v457, %v2438
        %v3850 = vsub.f32 %v458, %v2439
        %v3851 = vsub.f32 %v459, %v2515
        %v3852 = vsub.f32 %v460, %v2442
        %v3853 = vsub.f32 %v461, %v2444
        %v3854 = vsub.f32 %v462, %v2445
        %v3855 = vsub.f32 %v463, %v2516
        %v3856 = vsub.f32 %v464, %v2448
        %v3857 = vsub.f32 %v465, %v2450
        %v3858 = vsub.f32 %v466, %v2451
        %v3859 = vsel %vm359, %v3807, %v3755
        %v3860 = vsel %vm360, %v3808, %v3756
        %v3861 = vsel %vm361, %v3809, %v3757
        %v3862 = vsel %vm362, %v3810, %v3758
        %v3863 = vsel %vm359, %v3811, %v3759
        %v3864 = vsel %vm360, %v3812, %v3760
        %v3865 = vsel %vm361, %v3813, %v3761
        %v3866 = vsel %vm362, %v3814, %v3762
        %v3867 = vsel %vm359, %v3815, %v3763
        %v3868 = vsel %vm360, %v3816, %v3764
        %v3869 = vsel %vm361, %v3817, %v3765
        %v3870 = vsel %vm362, %v3818, %v3766
        %v3871 = vsel %vm359, %v3819, %v3767
        %v3872 = vsel %vm360, %v3820, %v3768
        %v3873 = vsel %vm361, %v3821, %v3769
        %v3874 = vsel %vm362, %v3822, %v3770
        %v3875 = vsel %vm359, %v3823, %v3771
        %v3876 = vsel %vm360, %v3824, %v3772
        %v3877 = vsel %vm361, %v3825, %v3773
        %v3878 = vsel %vm362, %v3826, %v3774
        %v3879 = vsel %vm359, %v3827, %v3775
        %v3880 = vsel %vm360, %v3828, %v3776
        %v3881 = vsel %vm361, %v3829, %v3777
        %v3882 = vsel %vm362, %v3830, %v3778
        %v3883 = vsel %vm359, %v3831, %v3779
        %v3884 = vsel %vm360, %v3832, %v3780
        %v3885 = vsel %vm361, %v3833, %v3781
        %v3886 = vsel %vm362, %v3834, %v3782
        %v3887 = vsel %vm359, %v3835, %v3783
        %v3888 = vsel %vm360, %v3836, %v3784
        %v3889 = vsel %vm361, %v3837, %v3785
        %v3890 = vsel %vm362, %v3838, %v3786
        %v3891 = vsel %vm359, %v3839, %v3787
        %v3892 = vsel %vm360, %v3840, %v3788
        %v3893 = vsel %vm361, %v3841, %v3789
        %v3894 = vsel %vm362, %v3842, %v3790
        %v3895 = vsel %vm359, %v3843, %v3791
        %v3896 = vsel %vm360, %v3844, %v3792
        %v3897 = vsel %vm361, %v3845, %v3793
        %v3898 = vsel %vm362, %v3846, %v3794
        %v3899 = vsel %vm359, %v3847, %v3795
        %v3900 = vsel %vm360, %v3848, %v3796
        %v3901 = vsel %vm361, %v3849, %v3797
        %v3902 = vsel %vm362, %v3850, %v3798
        %v3903 = vsel %vm359, %v3851, %v3799
        %v3904 = vsel %vm360, %v3852, %v3800
        %v3905 = vsel %vm361, %v3853, %v3801
        %v3906 = vsel %vm362, %v3854, %v3802
        %v3907 = vsel %vm359, %v3855, %v3803
        %v3908 = vsel %vm360, %v3856, %v3804
        %v3909 = vsel %vm361, %v3857, %v3805
        %v3910 = vsel %vm362, %v3858, %v3806
        %v3911 = vmul.f32 %v3859, 1.3739636e-07
        %v3912 = vmul.f32 %v3860, 1.3739636e-07
        %v3913 = vmul.f32 %v3861, 1.3739636e-07
        %v3914 = vmul.f32 %v3862, 1.3739636e-07
        %v3915 = vmul.f32 %v3863, 1.3739636e-07
        %v3916 = vmul.f32 %v3864, 1.3739636e-07
        %v3917 = vmul.f32 %v3865, 1.3739636e-07
        %v3918 = vmul.f32 %v3866, 1.3739636e-07
        %v3919 = vmul.f32 %v3867, 1.3739636e-07
        %v3920 = vmul.f32 %v3868, 1.3739636e-07
        %v3921 = vmul.f32 %v3869, 1.3739636e-07
        %v3922 = vmul.f32 %v3870, 1.3739636e-07
        %v3923 = vmul.f32 %v3871, 1.3739636e-07
        %v3924 = vmul.f32 %v3872, 1.3739636e-07
        %v3925 = vmul.f32 %v3873, 1.3739636e-07
        %v3926 = vmul.f32 %v3874, 1.3739636e-07
        %v3927 = vmul.f32 %v3875, 1.3739636e-07
        %v3928 = vmul.f32 %v3876, 1.3739636e-07
        %v3929 = vmul.f32 %v3877, 1.3739636e-07
        %v3930 = vmul.f32 %v3878, 1.3739636e-07
        %v3931 = vmul.f32 %v3879, 1.3739636e-07
        %v3932 = vmul.f32 %v3880, 1.3739636e-07
        %v3933 = vmul.f32 %v3881, 1.3739636e-07
        %v3934 = vmul.f32 %v3882, 1.3739636e-07
        %v3935 = vmul.f32 %v3883, 1.3739636e-07
        %v3936 = vmul.f32 %v3884, 1.3739636e-07
        %v3937 = vmul.f32 %v3885, 1.3739636e-07
        %v3938 = vmul.f32 %v3886, 1.3739636e-07
        %v3939 = vmul.f32 %v3887, 1.3739636e-07
        %v3940 = vmul.f32 %v3888, 1.3739636e-07
        %v3941 = vmul.f32 %v3889, 1.3739636e-07
        %v3942 = vmul.f32 %v3890, 1.3739636e-07
        %v3943 = vmul.f32 %v3891, 1.3739636e-07
        %v3944 = vmul.f32 %v3892, 1.3739636e-07
        %v3945 = vmul.f32 %v3893, 1.3739636e-07
        %v3946 = vmul.f32 %v3894, 1.3739636e-07
        %v3947 = vmul.f32 %v3895, 1.3739636e-07
        %v3948 = vmul.f32 %v3896, 1.3739636e-07
        %v3949 = vmul.f32 %v3897, 1.3739636e-07
        %v3950 = vmul.f32 %v3898, 1.3739636e-07
        %v3951 = vmul.f32 %v3899, 1.3739636e-07
        %v3952 = vmul.f32 %v3900, 1.3739636e-07
        %v3953 = vmul.f32 %v3901, 1.3739636e-07
        %v3954 = vmul.f32 %v3902, 1.3739636e-07
        %v3955 = vmul.f32 %v3903, 1.3739636e-07
        %v3956 = vmul.f32 %v3904, 1.3739636e-07
        %v3957 = vmul.f32 %v3905, 1.3739636e-07
        %v3958 = vmul.f32 %v3906, 1.3739636e-07
        %v3959 = vmul.f32 %v3907, 1.3739636e-07
        %v3960 = vmul.f32 %v3908, 1.3739636e-07
        %v3961 = vmul.f32 %v3909, 1.3739636e-07
        %v3962 = vmul.f32 %v3910, 1.3739636e-07
        %vm3963 = vcmask 523264
        %3964 = vst.msk [vmem:[%s327] sm:$0xff] %vm3963, %v2243
        %3965 = vst.msk [vmem:[%s327 + $0x8] sm:$0xff] %vm3963, %v2244
        %3966 = vst.msk [vmem:[%s327 + $0x10] sm:$0xff] %vm3963, %v2245
        %3967 = vst.msk [vmem:[%s327 + $0x18] sm:$0xff] %vm3963, %v2246
        %3968 = vst.msk [vmem:[%s327 + $0x20] sm:$0xff] %vm3963, %v2247
        %3969 = vst.msk [vmem:[%s327 + $0x28] sm:$0xff] %vm3963, %v2248
        %3970 = vst.msk [vmem:[%s327 + $0x30] sm:$0xff] %vm3963, %v2249
        %3971 = vst.msk [vmem:[%s327 + $0x38] sm:$0xff] %vm3963, %v2250
        %3972 = vst.msk [vmem:[%s327 + $0x40] sm:$0xff] %vm3963, %v2251
        %3973 = vst.msk [vmem:[%s327 + $0x48] sm:$0xff] %vm3963, %v2252
        %3974 = vst.msk [vmem:[%s327 + $0x50] sm:$0xff] %vm3963, %v2253
        %3975 = vst.msk [vmem:[%s327 + $0x58] sm:$0xff] %vm3963, %v2254
        %3976 = vst.msk [vmem:[%s327 + $0x60] sm:$0xff] %vm3963, %v2255
        %3977 = vst.msk [vmem:[%s327 + $0x68] sm:$0xff] %vm3963, %v2256
        %3978 = vst.msk [vmem:[%s327 + $0x70] sm:$0xff] %vm3963, %v2257
        %3979 = vst.msk [vmem:[%s327 + $0x78] sm:$0xff] %vm3963, %v2258
        %3980 = vst.msk [vmem:[%s327 + $0x80] sm:$0xff] %vm3963, %v2259
        %3981 = vst.msk [vmem:[%s327 + $0x88] sm:$0xff] %vm3963, %v2260
        %3982 = vst.msk [vmem:[%s327 + $0x90] sm:$0xff] %vm3963, %v2261
        %3983 = vst.msk [vmem:[%s327 + $0x98] sm:$0xff] %vm3963, %v2262
        %3984 = vst.msk [vmem:[%s327 + $0xa0] sm:$0xff] %vm3963, %v2263
        %3985 = vst.msk [vmem:[%s327 + $0xa8] sm:$0xff] %vm3963, %v2264
        %3986 = vst.msk [vmem:[%s327 + $0xb0] sm:$0xff] %vm3963, %v2265
        %3987 = vst.msk [vmem:[%s327 + $0xb8] sm:$0xff] %vm3963, %v2266
        %3988 = vst.msk [vmem:[%s327 + $0xc0] sm:$0xff] %vm3963, %v2267
        %3989 = vst.msk [vmem:[%s327 + $0xc8] sm:$0xff] %vm3963, %v2268
        %3990 = vst.msk [vmem:[%s327 + $0xd0] sm:$0xff] %vm3963, %v2269
        %3991 = vst.msk [vmem:[%s327 + $0xd8] sm:$0xff] %vm3963, %v2270
        %3992 = vst.msk [vmem:[%s327 + $0xe0] sm:$0xff] %vm3963, %v2271
        %3993 = vst.msk [vmem:[%s327 + $0xe8] sm:$0xff] %vm3963, %v2272
        %3994 = vst.msk [vmem:[%s327 + $0xf0] sm:$0xff] %vm3963, %v2273
        %3995 = vst.msk [vmem:[%s327 + $0xf8] sm:$0xff] %vm3963, %v2274
        %3996 = vst.msk [vmem:[%s327 + $0x100] sm:$0xff] %vm3963, %v2275
        %3997 = vst.msk [vmem:[%s327 + $0x108] sm:$0xff] %vm3963, %v2276
        %3998 = vst.msk [vmem:[%s327 + $0x110] sm:$0xff] %vm3963, %v2277
        %3999 = vst.msk [vmem:[%s327 + $0x118] sm:$0xff] %vm3963, %v2278
        %4000 = vst.msk [vmem:[%s327 + $0x120] sm:$0xff] %vm3963, %v2279
        %4001 = vst.msk [vmem:[%s327 + $0x128] sm:$0xff] %vm3963, %v2280
        %4002 = vst.msk [vmem:[%s327 + $0x130] sm:$0xff] %vm3963, %v2281
        %4003 = vst.msk [vmem:[%s327 + $0x138] sm:$0xff] %vm3963, %v2282
        %4004 = vst.msk [vmem:[%s327 + $0x140] sm:$0xff] %vm3963, %v2283
        %4005 = vst.msk [vmem:[%s327 + $0x148] sm:$0xff] %vm3963, %v2284
        %4006 = vst.msk [vmem:[%s327 + $0x150] sm:$0xff] %vm3963, %v2285
        %4007 = vst.msk [vmem:[%s327 + $0x158] sm:$0xff] %vm3963, %v2286
        %4008 = vst.msk [vmem:[%s327 + $0x160] sm:$0xff] %vm3963, %v2287
        %4009 = vst.msk [vmem:[%s327 + $0x168] sm:$0xff] %vm3963, %v2288
        %4010 = vst.msk [vmem:[%s327 + $0x170] sm:$0xff] %vm3963, %v2289
        %4011 = vst.msk [vmem:[%s327 + $0x178] sm:$0xff] %vm3963, %v2290
        %4012 = vst.msk [vmem:[%s327 + $0x180] sm:$0xff] %vm3963, %v2291
        %4013 = vst.msk [vmem:[%s327 + $0x188] sm:$0xff] %vm3963, %v2292
        %4014 = vst.msk [vmem:[%s327 + $0x190] sm:$0xff] %vm3963, %v2293
        %4015 = vst.msk [vmem:[%s327 + $0x198] sm:$0xff] %vm3963, %v2294
        %4016 = vst.msk [vmem:[%s334] sm:$0xff] %vm3963, %v3911
        %4017 = vst.msk [vmem:[%s334 + $0x8] sm:$0xff] %vm3963, %v3912
        %4018 = vst.msk [vmem:[%s334 + $0x10] sm:$0xff] %vm3963, %v3913
        %4019 = vst.msk [vmem:[%s334 + $0x18] sm:$0xff] %vm3963, %v3914
        %4020 = vst.msk [vmem:[%s334 + $0x20] sm:$0xff] %vm3963, %v3915
        %4021 = vst.msk [vmem:[%s334 + $0x28] sm:$0xff] %vm3963, %v3916
        %4022 = vst.msk [vmem:[%s334 + $0x30] sm:$0xff] %vm3963, %v3917
        %4023 = vst.msk [vmem:[%s334 + $0x38] sm:$0xff] %vm3963, %v3918
        %4024 = vst.msk [vmem:[%s334 + $0x40] sm:$0xff] %vm3963, %v3919
        %4025 = vst.msk [vmem:[%s334 + $0x48] sm:$0xff] %vm3963, %v3920
        %4026 = vst.msk [vmem:[%s334 + $0x50] sm:$0xff] %vm3963, %v3921
        %4027 = vst.msk [vmem:[%s334 + $0x58] sm:$0xff] %vm3963, %v3922
        %4028 = vst.msk [vmem:[%s334 + $0x60] sm:$0xff] %vm3963, %v3923
        %4029 = vst.msk [vmem:[%s334 + $0x68] sm:$0xff] %vm3963, %v3924
        %4030 = vst.msk [vmem:[%s334 + $0x70] sm:$0xff] %vm3963, %v3925
        %4031 = vst.msk [vmem:[%s334 + $0x78] sm:$0xff] %vm3963, %v3926
        %4032 = vst.msk [vmem:[%s334 + $0x80] sm:$0xff] %vm3963, %v3927
        %4033 = vst.msk [vmem:[%s334 + $0x88] sm:$0xff] %vm3963, %v3928
        %4034 = vst.msk [vmem:[%s334 + $0x90] sm:$0xff] %vm3963, %v3929
        %4035 = vst.msk [vmem:[%s334 + $0x98] sm:$0xff] %vm3963, %v3930
        %4036 = vst.msk [vmem:[%s334 + $0xa0] sm:$0xff] %vm3963, %v3931
        %4037 = vst.msk [vmem:[%s334 + $0xa8] sm:$0xff] %vm3963, %v3932
        %4038 = vst.msk [vmem:[%s334 + $0xb0] sm:$0xff] %vm3963, %v3933
        %4039 = vst.msk [vmem:[%s334 + $0xb8] sm:$0xff] %vm3963, %v3934
        %4040 = vst.msk [vmem:[%s334 + $0xc0] sm:$0xff] %vm3963, %v3935
        %4041 = vst.msk [vmem:[%s334 + $0xc8] sm:$0xff] %vm3963, %v3936
        %4042 = vst.msk [vmem:[%s334 + $0xd0] sm:$0xff] %vm3963, %v3937
        %4043 = vst.msk [vmem:[%s334 + $0xd8] sm:$0xff] %vm3963, %v3938
        %4044 = vst.msk [vmem:[%s334 + $0xe0] sm:$0xff] %vm3963, %v3939
        %4045 = vst.msk [vmem:[%s334 + $0xe8] sm:$0xff] %vm3963, %v3940
        %4046 = vst.msk [vmem:[%s334 + $0xf0] sm:$0xff] %vm3963, %v3941
        %4047 = vst.msk [vmem:[%s334 + $0xf8] sm:$0xff] %vm3963, %v3942
        %4048 = vst.msk [vmem:[%s334 + $0x100] sm:$0xff] %vm3963, %v3943
        %4049 = vst.msk [vmem:[%s334 + $0x108] sm:$0xff] %vm3963, %v3944
        %4050 = vst.msk [vmem:[%s334 + $0x110] sm:$0xff] %vm3963, %v3945
        %4051 = vst.msk [vmem:[%s334 + $0x118] sm:$0xff] %vm3963, %v3946
        %4052 = vst.msk [vmem:[%s334 + $0x120] sm:$0xff] %vm3963, %v3947
        %4053 = vst.msk [vmem:[%s334 + $0x128] sm:$0xff] %vm3963, %v3948
        %4054 = vst.msk [vmem:[%s334 + $0x130] sm:$0xff] %vm3963, %v3949
        %4055 = vst.msk [vmem:[%s334 + $0x138] sm:$0xff] %vm3963, %v3950
        %4056 = vst.msk [vmem:[%s334 + $0x140] sm:$0xff] %vm3963, %v3951
        %4057 = vst.msk [vmem:[%s334 + $0x148] sm:$0xff] %vm3963, %v3952
        %4058 = vst.msk [vmem:[%s334 + $0x150] sm:$0xff] %vm3963, %v3953
        %4059 = vst.msk [vmem:[%s334 + $0x158] sm:$0xff] %vm3963, %v3954
        %4060 = vst.msk [vmem:[%s334 + $0x160] sm:$0xff] %vm3963, %v3955
        %4061 = vst.msk [vmem:[%s334 + $0x168] sm:$0xff] %vm3963, %v3956
        %4062 = vst.msk [vmem:[%s334 + $0x170] sm:$0xff] %vm3963, %v3957
        %4063 = vst.msk [vmem:[%s334 + $0x178] sm:$0xff] %vm3963, %v3958
        %4064 = vst.msk [vmem:[%s334 + $0x180] sm:$0xff] %vm3963, %v3959
        %4065 = vst.msk [vmem:[%s334 + $0x188] sm:$0xff] %vm3963, %v3960
        %4066 = vst.msk [vmem:[%s334 + $0x190] sm:$0xff] %vm3963, %v3961
        %4067 = vst.msk [vmem:[%s334 + $0x198] sm:$0xff] %vm3963, %v3962
        %v4068 = vadd.f32 %v2243, %v3911
        %v4069 = vadd.f32 %v2244, %v3912
        %v4070 = vadd.f32 %v2245, %v3913
        %v4071 = vadd.f32 %v2246, %v3914
        %v4072 = vadd.f32 %v2247, %v3915
        %v4073 = vadd.f32 %v2248, %v3916
        %v4074 = vadd.f32 %v2249, %v3917
        %v4075 = vadd.f32 %v2250, %v3918
        %v4076 = vadd.f32 %v2251, %v3919
        %v4077 = vadd.f32 %v2252, %v3920
        %v4078 = vadd.f32 %v2253, %v3921
        %v4079 = vadd.f32 %v2254, %v3922
        %v4080 = vadd.f32 %v2255, %v3923
        %v4081 = vadd.f32 %v2256, %v3924
        %v4082 = vadd.f32 %v2257, %v3925
        %v4083 = vadd.f32 %v2258, %v3926
        %v4084 = vadd.f32 %v2259, %v3927
        %v4085 = vadd.f32 %v2260, %v3928
        %v4086 = vadd.f32 %v2261, %v3929
        %v4087 = vadd.f32 %v2262, %v3930
        %v4088 = vadd.f32 %v2263, %v3931
        %v4089 = vadd.f32 %v2264, %v3932
        %v4090 = vadd.f32 %v2265, %v3933
        %v4091 = vadd.f32 %v2266, %v3934
        %v4092 = vadd.f32 %v2267, %v3935
        %v4093 = vadd.f32 %v2268, %v3936
        %v4094 = vadd.f32 %v2269, %v3937
        %v4095 = vadd.f32 %v2270, %v3938
        %v4096 = vadd.f32 %v2271, %v3939
        %v4097 = vadd.f32 %v2272, %v3940
        %v4098 = vadd.f32 %v2273, %v3941
        %v4099 = vadd.f32 %v2274, %v3942
        %v4100 = vadd.f32 %v2275, %v3943
        %v4101 = vadd.f32 %v2276, %v3944
        %v4102 = vadd.f32 %v2277, %v3945
        %v4103 = vadd.f32 %v2278, %v3946
        %v4104 = vadd.f32 %v2279, %v3947
        %v4105 = vadd.f32 %v2280, %v3948
        %v4106 = vadd.f32 %v2281, %v3949
        %v4107 = vadd.f32 %v2282, %v3950
        %v4108 = vadd.f32 %v2283, %v3951
        %v4109 = vadd.f32 %v2284, %v3952
        %v4110 = vadd.f32 %v2285, %v3953
        %v4111 = vadd.f32 %v2286, %v3954
        %v4112 = vadd.f32 %v2287, %v3955
        %v4113 = vadd.f32 %v2288, %v3956
        %v4114 = vadd.f32 %v2289, %v3957
        %v4115 = vadd.f32 %v2290, %v3958
        %v4116 = vadd.f32 %v2291, %v3959
        %v4117 = vadd.f32 %v2292, %v3960
        %v4118 = vadd.f32 %v2293, %v3961
        %v4119 = vadd.f32 %v2294, %v3962
        %v4120 = vsub.f32 0.0, %v4068
        %v4121 = vsub.f32 0.0, %v4069
        %v4122 = vsub.f32 0.0, %v4070
        %v4123 = vsub.f32 0.0, %v4071
        %v4124 = vsub.f32 0.0, %v4072
        %v4125 = vsub.f32 0.0, %v4073
        %v4126 = vsub.f32 0.0, %v4074
        %v4127 = vsub.f32 0.0, %v4075
        %v4128 = vsub.f32 0.0, %v4076
        %v4129 = vsub.f32 0.0, %v4077
        %v4130 = vsub.f32 0.0, %v4078
        %v4131 = vsub.f32 0.0, %v4079
        %v4132 = vsub.f32 0.0, %v4080
        %v4133 = vsub.f32 0.0, %v4081
        %v4134 = vsub.f32 0.0, %v4082
        %v4135 = vsub.f32 0.0, %v4083
        %v4136 = vsub.f32 0.0, %v4084
        %v4137 = vsub.f32 0.0, %v4085
        %v4138 = vsub.f32 0.0, %v4086
        %v4139 = vsub.f32 0.0, %v4087
        %v4140 = vsub.f32 0.0, %v4088
        %v4141 = vsub.f32 0.0, %v4089
        %v4142 = vsub.f32 0.0, %v4090
        %v4143 = vsub.f32 0.0, %v4091
        %v4144 = vsub.f32 0.0, %v4092
        %v4145 = vsub.f32 0.0, %v4093
        %v4146 = vsub.f32 0.0, %v4094
        %v4147 = vsub.f32 0.0, %v4095
        %v4148 = vsub.f32 0.0, %v4096
        %v4149 = vsub.f32 0.0, %v4097
        %v4150 = vsub.f32 0.0, %v4098
        %v4151 = vsub.f32 0.0, %v4099
        %v4152 = vsub.f32 0.0, %v4100
        %v4153 = vsub.f32 0.0, %v4101
        %v4154 = vsub.f32 0.0, %v4102
        %v4155 = vsub.f32 0.0, %v4103
        %v4156 = vsub.f32 0.0, %v4104
        %v4157 = vsub.f32 0.0, %v4105
        %v4158 = vsub.f32 0.0, %v4106
        %v4159 = vsub.f32 0.0, %v4107
        %v4160 = vsub.f32 0.0, %v4108
        %v4161 = vsub.f32 0.0, %v4109
        %v4162 = vsub.f32 0.0, %v4110
        %v4163 = vsub.f32 0.0, %v4111
        %v4164 = vsub.f32 0.0, %v4112
        %v4165 = vsub.f32 0.0, %v4113
        %v4166 = vsub.f32 0.0, %v4114
        %v4167 = vsub.f32 0.0, %v4115
        %v4168 = vsub.f32 0.0, %v4116
        %v4169 = vsub.f32 0.0, %v4117
        %v4170 = vsub.f32 0.0, %v4118
        %v4171 = vsub.f32 0.0, %v4119
        %v4172 = vld [vmem:[%s3] sm:$0x1]
        %v4173 = vld [vmem:[%s3 + $0x1] sm:$0x1]
        %v4174 = vld [vmem:[%s3 + $0x2] sm:$0x1]
        %v4175 = vld [vmem:[%s3 + $0x3] sm:$0x1]
        %v4176 = vld [vmem:[%s3 + $0x4] sm:$0x1]
        %v4177 = vld [vmem:[%s3 + $0x5] sm:$0x1]
        %v4178 = vld [vmem:[%s3 + $0x6] sm:$0x1]
        %v4179 = vld [vmem:[%s3 + $0x7] sm:$0x1]
        %v4180 = vld [vmem:[%s3 + $0x8] sm:$0x1]
        %v4181 = vld [vmem:[%s3 + $0x9] sm:$0x1]
        %v4182 = vld [vmem:[%s3 + $0xa] sm:$0x1]
        %v4183 = vld [vmem:[%s3 + $0xb] sm:$0x1]
        %v4184 = vld [vmem:[%s3 + $0xc] sm:$0x1]
        %v4198 = vlaneseq
        %v4199 = vshrl.u32 %v4198, 7
        %v4200 = vsub.s32 0, %v4199
        %v4201 = vrot.slane %v4172, %v4200
        %v4202 = vlaneseq
        %v4203 = vshrl.u32 %v4202, 7
        %v4204 = vsub.s32 0, %v4203
        %v4205 = vrot.slane %v4173, %v4204
        %v4206 = vlaneseq
        %v4207 = vshrl.u32 %v4206, 7
        %v4208 = vsub.s32 0, %v4207
        %v4209 = vrot.slane %v4174, %v4208
        %v4210 = vlaneseq
        %v4211 = vshrl.u32 %v4210, 7
        %v4212 = vsub.s32 0, %v4211
        %v4213 = vrot.slane %v4175, %v4212
        %v4214 = vlaneseq
        %v4215 = vshrl.u32 %v4214, 7
        %v4216 = vsub.s32 0, %v4215
        %v4217 = vrot.slane %v4176, %v4216
        %v4218 = vlaneseq
        %v4219 = vshrl.u32 %v4218, 7
        %v4220 = vsub.s32 0, %v4219
        %v4221 = vrot.slane %v4177, %v4220
        %v4222 = vlaneseq
        %v4223 = vshrl.u32 %v4222, 7
        %v4224 = vsub.s32 0, %v4223
        %v4225 = vrot.slane %v4178, %v4224
        %v4226 = vlaneseq
        %v4227 = vshrl.u32 %v4226, 7
        %v4228 = vsub.s32 0, %v4227
        %v4229 = vrot.slane %v4179, %v4228
        %v4230 = vlaneseq
        %v4231 = vshrl.u32 %v4230, 7
        %v4232 = vsub.s32 0, %v4231
        %v4233 = vrot.slane %v4180, %v4232
        %v4234 = vlaneseq
        %v4235 = vshrl.u32 %v4234, 7
        %v4236 = vsub.s32 0, %v4235
        %v4237 = vrot.slane %v4181, %v4236
        %v4238 = vlaneseq
        %v4239 = vshrl.u32 %v4238, 7
        %v4240 = vsub.s32 0, %v4239
        %v4241 = vrot.slane %v4182, %v4240
        %v4242 = vlaneseq
        %v4243 = vshrl.u32 %v4242, 7
        %v4244 = vsub.s32 0, %v4243
        %v4245 = vrot.slane %v4183, %v4244
        %v4246 = vlaneseq
        %v4247 = vshrl.u32 %v4246, 7
        %v4248 = vsub.s32 0, %v4247
        %v4249 = vrot.slane %v4184, %v4248
        %4250 = vset.pattern.permute.xlu0 0
        %4251 = vperm.xlu0 %4250, %v4201
        %v4252 = vpop.permute.xlu0 %4251
        %4254 = vset.pattern.permute.xlu0 0
        %4255 = vperm.xlu0 %4254, %v4205
        %v4256 = vpop.permute.xlu0 %4255
        %4258 = vset.pattern.permute.xlu0 0
        %4259 = vperm.xlu0 %4258, %v4209
        %v4260 = vpop.permute.xlu0 %4259
        %4262 = vset.pattern.permute.xlu0 0
        %4263 = vperm.xlu0 %4262, %v4213
        %v4264 = vpop.permute.xlu0 %4263
        %4266 = vset.pattern.permute.xlu0 0
        %4267 = vperm.xlu0 %4266, %v4217
        %v4268 = vpop.permute.xlu0 %4267
        %4270 = vset.pattern.permute.xlu0 0
        %4271 = vperm.xlu0 %4270, %v4221
        %v4272 = vpop.permute.xlu0 %4271
        %4274 = vset.pattern.permute.xlu0 0
        %4275 = vperm.xlu0 %4274, %v4225
        %v4276 = vpop.permute.xlu0 %4275
        %4278 = vset.pattern.permute.xlu0 0
        %4279 = vperm.xlu0 %4278, %v4229
        %v4280 = vpop.permute.xlu0 %4279
        %4282 = vset.pattern.permute.xlu0 0
        %4283 = vperm.xlu0 %4282, %v4233
        %v4284 = vpop.permute.xlu0 %4283
        %4286 = vset.pattern.permute.xlu0 0
        %4287 = vperm.xlu0 %4286, %v4237
        %v4288 = vpop.permute.xlu0 %4287
        %4290 = vset.pattern.permute.xlu0 0
        %4291 = vperm.xlu0 %4290, %v4241
        %v4292 = vpop.permute.xlu0 %4291
        %4294 = vset.pattern.permute.xlu0 0
        %4295 = vperm.xlu0 %4294, %v4245
        %v4296 = vpop.permute.xlu0 %4295
        %4298 = vset.pattern.permute.xlu0 0
        %4299 = vperm.xlu0 %4298, %v4249
        %v4300 = vpop.permute.xlu0 %4299
        %v4302 = vmul.f32 %v4120, %v4252
        %v4303 = vmul.f32 %v4121, %v4252
        %v4304 = vmul.f32 %v4122, %v4252
        %v4305 = vmul.f32 %v4123, %v4252
        %v4306 = vmul.f32 %v4124, %v4256
        %v4307 = vmul.f32 %v4125, %v4256
        %v4308 = vmul.f32 %v4126, %v4256
        %v4309 = vmul.f32 %v4127, %v4256
        %v4310 = vmul.f32 %v4128, %v4260
        %v4311 = vmul.f32 %v4129, %v4260
        %v4312 = vmul.f32 %v4130, %v4260
        %v4313 = vmul.f32 %v4131, %v4260
        %v4314 = vmul.f32 %v4132, %v4264
        %v4315 = vmul.f32 %v4133, %v4264
        %v4316 = vmul.f32 %v4134, %v4264
        %v4317 = vmul.f32 %v4135, %v4264
        %v4318 = vmul.f32 %v4136, %v4268
        %v4319 = vmul.f32 %v4137, %v4268
        %v4320 = vmul.f32 %v4138, %v4268
        %v4321 = vmul.f32 %v4139, %v4268
        %v4322 = vmul.f32 %v4140, %v4272
        %v4323 = vmul.f32 %v4141, %v4272
        %v4324 = vmul.f32 %v4142, %v4272
        %v4325 = vmul.f32 %v4143, %v4272
        %v4326 = vmul.f32 %v4144, %v4276
        %v4327 = vmul.f32 %v4145, %v4276
        %v4328 = vmul.f32 %v4146, %v4276
        %v4329 = vmul.f32 %v4147, %v4276
        %v4330 = vmul.f32 %v4148, %v4280
        %v4331 = vmul.f32 %v4149, %v4280
        %v4332 = vmul.f32 %v4150, %v4280
        %v4333 = vmul.f32 %v4151, %v4280
        %v4334 = vmul.f32 %v4152, %v4284
        %v4335 = vmul.f32 %v4153, %v4284
        %v4336 = vmul.f32 %v4154, %v4284
        %v4337 = vmul.f32 %v4155, %v4284
        %v4338 = vmul.f32 %v4156, %v4288
        %v4339 = vmul.f32 %v4157, %v4288
        %v4340 = vmul.f32 %v4158, %v4288
        %v4341 = vmul.f32 %v4159, %v4288
        %v4342 = vmul.f32 %v4160, %v4292
        %v4343 = vmul.f32 %v4161, %v4292
        %v4344 = vmul.f32 %v4162, %v4292
        %v4345 = vmul.f32 %v4163, %v4292
        %v4346 = vmul.f32 %v4164, %v4296
        %v4347 = vmul.f32 %v4165, %v4296
        %v4348 = vmul.f32 %v4166, %v4296
        %v4349 = vmul.f32 %v4167, %v4296
        %v4350 = vmul.f32 %v4168, %v4300
        %v4351 = vmul.f32 %v4169, %v4300
        %v4352 = vmul.f32 %v4170, %v4300
        %v4353 = vmul.f32 %v4171, %v4300
        %v4354 = vadd.f32 %v4302, %v4306
        %v4355 = vadd.f32 %v4303, %v4307
        %v4356 = vadd.f32 %v4304, %v4308
        %v4357 = vadd.f32 %v4305, %v4309
        %v4358 = vadd.f32 %v4354, %v4310
        %v4359 = vadd.f32 %v4355, %v4311
        %v4360 = vadd.f32 %v4356, %v4312
        %v4361 = vadd.f32 %v4357, %v4313
        %v4362 = vadd.f32 %v4358, %v4314
        %v4363 = vadd.f32 %v4359, %v4315
        %v4364 = vadd.f32 %v4360, %v4316
        %v4365 = vadd.f32 %v4361, %v4317
        %v4366 = vadd.f32 %v4362, %v4318
        %v4367 = vadd.f32 %v4363, %v4319
        %v4368 = vadd.f32 %v4364, %v4320
        %v4369 = vadd.f32 %v4365, %v4321
        %v4370 = vadd.f32 %v4366, %v4322
        %v4371 = vadd.f32 %v4367, %v4323
        %v4372 = vadd.f32 %v4368, %v4324
        %v4373 = vadd.f32 %v4369, %v4325
        %v4374 = vadd.f32 %v4370, %v4326
        %v4375 = vadd.f32 %v4371, %v4327
        %v4376 = vadd.f32 %v4372, %v4328
        %v4377 = vadd.f32 %v4373, %v4329
        %v4378 = vadd.f32 %v4374, %v4330
        %v4379 = vadd.f32 %v4375, %v4331
        %v4380 = vadd.f32 %v4376, %v4332
        %v4381 = vadd.f32 %v4377, %v4333
        %v4382 = vadd.f32 %v4378, %v4334
        %v4383 = vadd.f32 %v4379, %v4335
        %v4384 = vadd.f32 %v4380, %v4336
        %v4385 = vadd.f32 %v4381, %v4337
        %v4386 = vadd.f32 %v4382, %v4338
        %v4387 = vadd.f32 %v4383, %v4339
        %v4388 = vadd.f32 %v4384, %v4340
        %v4389 = vadd.f32 %v4385, %v4341
        %v4390 = vadd.f32 %v4386, %v4342
        %v4391 = vadd.f32 %v4387, %v4343
        %v4392 = vadd.f32 %v4388, %v4344
        %v4393 = vadd.f32 %v4389, %v4345
        %v4394 = vadd.f32 %v4390, %v4346
        %v4395 = vadd.f32 %v4391, %v4347
        %v4396 = vadd.f32 %v4392, %v4348
        %v4397 = vadd.f32 %v4393, %v4349
        %v4398 = vadd.f32 %v4394, %v4350
        %v4399 = vadd.f32 %v4395, %v4351
        %v4400 = vadd.f32 %v4396, %v4352
        %v4401 = vadd.f32 %v4397, %v4353
        %4402 = vst.msk [vmem:[%s341] sm:$0xff] %vm3963, %v4302
        %4403 = vst.msk [vmem:[%s341 + $0x8] sm:$0xff] %vm3963, %v4303
        %4404 = vst.msk [vmem:[%s341 + $0x10] sm:$0xff] %vm3963, %v4304
        %4405 = vst.msk [vmem:[%s341 + $0x18] sm:$0xff] %vm3963, %v4305
        %4406 = vst.msk [vmem:[%s341 + $0x20] sm:$0xff] %vm3963, %v4354
        %4407 = vst.msk [vmem:[%s341 + $0x28] sm:$0xff] %vm3963, %v4355
        %4408 = vst.msk [vmem:[%s341 + $0x30] sm:$0xff] %vm3963, %v4356
        %4409 = vst.msk [vmem:[%s341 + $0x38] sm:$0xff] %vm3963, %v4357
        %4410 = vst.msk [vmem:[%s341 + $0x40] sm:$0xff] %vm3963, %v4358
        %4411 = vst.msk [vmem:[%s341 + $0x48] sm:$0xff] %vm3963, %v4359
        %4412 = vst.msk [vmem:[%s341 + $0x50] sm:$0xff] %vm3963, %v4360
        %4413 = vst.msk [vmem:[%s341 + $0x58] sm:$0xff] %vm3963, %v4361
        %4414 = vst.msk [vmem:[%s341 + $0x60] sm:$0xff] %vm3963, %v4362
        %4415 = vst.msk [vmem:[%s341 + $0x68] sm:$0xff] %vm3963, %v4363
        %4416 = vst.msk [vmem:[%s341 + $0x70] sm:$0xff] %vm3963, %v4364
        %4417 = vst.msk [vmem:[%s341 + $0x78] sm:$0xff] %vm3963, %v4365
        %4418 = vst.msk [vmem:[%s341 + $0x80] sm:$0xff] %vm3963, %v4366
        %4419 = vst.msk [vmem:[%s341 + $0x88] sm:$0xff] %vm3963, %v4367
        %4420 = vst.msk [vmem:[%s341 + $0x90] sm:$0xff] %vm3963, %v4368
        %4421 = vst.msk [vmem:[%s341 + $0x98] sm:$0xff] %vm3963, %v4369
        %4422 = vst.msk [vmem:[%s341 + $0xa0] sm:$0xff] %vm3963, %v4370
        %4423 = vst.msk [vmem:[%s341 + $0xa8] sm:$0xff] %vm3963, %v4371
        %4424 = vst.msk [vmem:[%s341 + $0xb0] sm:$0xff] %vm3963, %v4372
        %4425 = vst.msk [vmem:[%s341 + $0xb8] sm:$0xff] %vm3963, %v4373
        %4426 = vst.msk [vmem:[%s341 + $0xc0] sm:$0xff] %vm3963, %v4374
        %4427 = vst.msk [vmem:[%s341 + $0xc8] sm:$0xff] %vm3963, %v4375
        %4428 = vst.msk [vmem:[%s341 + $0xd0] sm:$0xff] %vm3963, %v4376
        %4429 = vst.msk [vmem:[%s341 + $0xd8] sm:$0xff] %vm3963, %v4377
        %4430 = vst.msk [vmem:[%s341 + $0xe0] sm:$0xff] %vm3963, %v4378
        %4431 = vst.msk [vmem:[%s341 + $0xe8] sm:$0xff] %vm3963, %v4379
        %4432 = vst.msk [vmem:[%s341 + $0xf0] sm:$0xff] %vm3963, %v4380
        %4433 = vst.msk [vmem:[%s341 + $0xf8] sm:$0xff] %vm3963, %v4381
        %4434 = vst.msk [vmem:[%s341 + $0x100] sm:$0xff] %vm3963, %v4382
        %4435 = vst.msk [vmem:[%s341 + $0x108] sm:$0xff] %vm3963, %v4383
        %4436 = vst.msk [vmem:[%s341 + $0x110] sm:$0xff] %vm3963, %v4384
        %4437 = vst.msk [vmem:[%s341 + $0x118] sm:$0xff] %vm3963, %v4385
        %4438 = vst.msk [vmem:[%s341 + $0x120] sm:$0xff] %vm3963, %v4386
        %4439 = vst.msk [vmem:[%s341 + $0x128] sm:$0xff] %vm3963, %v4387
        %4440 = vst.msk [vmem:[%s341 + $0x130] sm:$0xff] %vm3963, %v4388
        %4441 = vst.msk [vmem:[%s341 + $0x138] sm:$0xff] %vm3963, %v4389
        %4442 = vst.msk [vmem:[%s341 + $0x140] sm:$0xff] %vm3963, %v4390
        %4443 = vst.msk [vmem:[%s341 + $0x148] sm:$0xff] %vm3963, %v4391
        %4444 = vst.msk [vmem:[%s341 + $0x150] sm:$0xff] %vm3963, %v4392
        %4445 = vst.msk [vmem:[%s341 + $0x158] sm:$0xff] %vm3963, %v4393
        %4446 = vst.msk [vmem:[%s341 + $0x160] sm:$0xff] %vm3963, %v4394
        %4447 = vst.msk [vmem:[%s341 + $0x168] sm:$0xff] %vm3963, %v4395
        %4448 = vst.msk [vmem:[%s341 + $0x170] sm:$0xff] %vm3963, %v4396
        %4449 = vst.msk [vmem:[%s341 + $0x178] sm:$0xff] %vm3963, %v4397
        %4450 = vst.msk [vmem:[%s341 + $0x180] sm:$0xff] %vm3963, %v4398
        %4451 = vst.msk [vmem:[%s341 + $0x188] sm:$0xff] %vm3963, %v4399
        %4452 = vst.msk [vmem:[%s341 + $0x190] sm:$0xff] %vm3963, %v4400
        %4453 = vst.msk [vmem:[%s341 + $0x198] sm:$0xff] %vm3963, %v4401
        %s4454 = sand.u32 %s132, 1
        %s4455 = scalar_lea.sflag [#allocation4], %s4454
        %s4456 = sand.u32 %s132, 1
        %s4457 = smul.addr %s4456, 416
        %s4458 = scalar_lea.vmem [#allocation8], %s4457
        %s4459 = sand.u32 %s30, 1
        %s4460 = scalar_lea.sflag [#allocation10], %s4459
        %s4461 = sand.u32 %s158, 1
        %s4462 = smul.addr %s4461, 416
        %s4463 = scalar_lea.vmem [#allocation9], %s4462
        %s4464 = sand.u32 %s30, 1
        %s4465 = scalar_lea.sflag [#allocation10], %s4464
        %s4466 = sand.u32 %s184, 1
        %s4467 = smul.addr %s4466, 416
        %s4468 = scalar_lea.vmem [#allocation11], %s4467
        // Predicated region
        $region49: #{tpu_custom_call.1} parent=35 // pred_check
          %p4469 = pneg %p142
        $region50: #{tpu_custom_call.1} parent=35 // pred_check_branch
          %4471 = sbr.rel (%p4469) target = $region52
        $region51: #{tpu_custom_call.1} parent=35 // pred_region
          %s4473 = ssub.s32 6656, 6656
          %4474 = vsyncadd %s4455, %s4473
          %s4475 = smul.addr %s30, 52
          %s4476 = smul.addr %s4475, 128
          %s4477 = scalar_lea.hbm %s4, %s4476
          %s4478 = sshll.u32 %s4458, 4
          %s4479 = int_to_ptr.vmem [resolvable:$true] %s4478
          %4484 = dma.vmem_to_hbm [thread:$0]  %s4479, 6656, %s4477, %s4455, 128, 128, 8
        $region52: #{tpu_custom_call.1} parent=35 // pred_fallthru
          _
        // Predicated region
        $region53: #{tpu_custom_call.1} parent=35 // pred_check
          %p4485 = pneg %p168
        $region54: #{tpu_custom_call.1} parent=35 // pred_check_branch
          %4487 = sbr.rel (%p4485) target = $region56
        $region55: #{tpu_custom_call.1} parent=35 // pred_region
          %s4489 = ssub.s32 6656, 6656
          %4490 = vsyncadd %s4460, %s4489
          %s4491 = smul.addr %s30, 52
          %s4492 = smul.addr %s4491, 128
          %s4493 = scalar_lea.hbm %s5, %s4492
          %s4494 = sshll.u32 %s4463, 4
          %s4495 = int_to_ptr.vmem [resolvable:$true] %s4494
          %4500 = dma.vmem_to_hbm [thread:$0]  %s4495, 6656, %s4493, %s4460, 128, 128, 8
        $region56: #{tpu_custom_call.1} parent=35 // pred_fallthru
          _
        // Predicated region
        $region57: #{tpu_custom_call.1} parent=35 // pred_check
          %p4501 = pneg %p194
        $region58: #{tpu_custom_call.1} parent=35 // pred_check_branch
          %4503 = sbr.rel (%p4501) target = $region60
        $region59: #{tpu_custom_call.1} parent=35 // pred_region
          %s4505 = ssub.s32 6656, 6656
          %4506 = vsyncadd %s4465, %s4505
          %s4507 = smul.addr %s30, 52
          %s4508 = smul.addr %s4507, 128
          %s4509 = scalar_lea.hbm %s6, %s4508
          %s4510 = sshll.u32 %s4468, 4
          %s4511 = int_to_ptr.vmem [resolvable:$true] %s4510
          %4516 = dma.vmem_to_hbm [thread:$0]  %s4511, 6656, %s4509, %s4465, 128, 128, 8
        $region60: #{tpu_custom_call.1} parent=35 // pred_fallthru
          _
      $region36: #{tpu_custom_call.1} parent=5 // pred_fallthru
        _
      %p4517 = scmp.le.s32.totalorder 2, %s25
      // Predicated region
      $region61: #{tpu_custom_call.1} parent=5 // pred_check
        %p4518 = pneg %p4517
      $region62: #{tpu_custom_call.1} parent=5 // pred_check_branch
        %4520 = sbr.rel (%p4518) target = $region64
      $region63: #{tpu_custom_call.1} parent=5 // pred_region
        %s4521 = ssub.s32 %s25, 2
        // Predicated region
        $region65: #{tpu_custom_call.1} parent=63 // pred_check
          %p4522 = pneg %p148
        $region66: #{tpu_custom_call.1} parent=63 // pred_check_branch
          %4524 = sbr.rel (%p4522) target = $region68
        $region67: #{tpu_custom_call.1} parent=63 // pred_region
          %s4525 = sand.u32 %s133, 1
          %s4526 = scalar_lea.sflag [#allocation4], %s4525
          %s4527 = sand.u32 %s133, 1
          %s4528 = smul.addr %s4527, 416
          %s4529 = scalar_lea.vmem [#allocation8], %s4528
          %4530 = dma.done %s4526, 6656
        $region68: #{tpu_custom_call.1} parent=63 // pred_fallthru
          _
        // Predicated region
        $region69: #{tpu_custom_call.1} parent=63 // pred_check
          %p4531 = pneg %p174
        $region70: #{tpu_custom_call.1} parent=63 // pred_check_branch
          %4533 = sbr.rel (%p4531) target = $region72
        $region71: #{tpu_custom_call.1} parent=63 // pred_region
          %s4534 = sand.u32 %s31, 1
          %s4535 = scalar_lea.sflag [#allocation10], %s4534
          %s4536 = sand.u32 %s159, 1
          %s4537 = smul.addr %s4536, 416
          %s4538 = scalar_lea.vmem [#allocation9], %s4537
          %4539 = dma.done %s4535, 6656
        $region72: #{tpu_custom_call.1} parent=63 // pred_fallthru
          _
        // Predicated region
        $region73: #{tpu_custom_call.1} parent=63 // pred_check
          %p4540 = pneg %p200
        $region74: #{tpu_custom_call.1} parent=63 // pred_check_branch
          %4542 = sbr.rel (%p4540) target = $region76
        $region75: #{tpu_custom_call.1} parent=63 // pred_region
          %s4543 = sand.u32 %s31, 1
          %s4544 = scalar_lea.sflag [#allocation10], %s4543
          %s4545 = sand.u32 %s185, 1
          %s4546 = smul.addr %s4545, 416
          %s4547 = scalar_lea.vmem [#allocation11], %s4546
          %4548 = dma.done %s4544, 6656
        $region76: #{tpu_custom_call.1} parent=63 // pred_fallthru
          _
      $region64: #{tpu_custom_call.1} parent=5 // pred_fallthru
        _
    $region6: #{tpu_custom_call.1} parent=1 // loop_footer
      %s29 = sadd.s32 1, %s25
    $region7: #{tpu_custom_call.1} parent=1 // loop_footer_branch
      %24 = sbr.rel target = $region3
    $region8: #{tpu_custom_call.1} parent=1 // loop_exit
      _
    %4549 = vsyncpa [#allocation3], 1
    %s4550 = scalar_lea.sflag [#allocation3], 1
    %4551 = vsyncpa %s4550, 1
    %4552 = vsyncpa [#allocation6], 1
    %s4553 = scalar_lea.sflag [#allocation6], 1
    %4554 = vsyncpa %s4553, 1
    %4555 = vsyncpa [#allocation4], 1
    %s4556 = scalar_lea.sflag [#allocation4], 1
    %4557 = vsyncpa %s4556, 1
    %4558 = vsyncpa [#allocation10], 1
    %s4559 = scalar_lea.sflag [#allocation10], 1
    %4560 = vsyncpa %s4559, 1

</llo_original>
